<compile_context>
chip_gen: v7x
topology: tpu7x:2x2x1
jax: 0.10.0
libtpu: 0.0.40
codegen_flags: <defaults>
</compile_context>

<pallas_src>
import functools

import jax
import jax.numpy as jnp
from jax.experimental import pallas as pl
from jax.experimental.pallas import tpu as pltpu

NEG_SLOPE = 0.1   # nn.LeakyReLU(negative_slope=0.1)
BN_EPS = 1e-5     # nn.BatchNorm2d default eps
LANE = 128
VMEM_LIMIT = 32 * 1024 * 1024


def _round_up(v, m):
    return (v + m - 1) // m * m


def _pick_tile(dim, candidates):
    for c in candidates:
        if dim % c == 0:
            return c
    return dim


# ----------------------------------------------------------------------------
# Kernel 1a: gridded BatchNorm statistics (fp32 sum / sum-of-squares
# accumulated across row tiles; padded rows/channels are zero => no bias).
# ----------------------------------------------------------------------------
def _bn_stats_kernel(x_ref, sum_ref, sq_ref):
    @pl.when(pl.program_id(0) == 0)
    def _():
        sum_ref[...] = jnp.zeros_like(sum_ref)
        sq_ref[...] = jnp.zeros_like(sq_ref)

    x = x_ref[...]
    sum_ref[...] += jnp.sum(x, axis=0, keepdims=True)
    sq_ref[...] += jnp.sum(x * x, axis=0, keepdims=True)


# ----------------------------------------------------------------------------
# Kernel 1b: gridded BN affine (scale/shift) + LeakyReLU(0.1), bf16 output.
# ----------------------------------------------------------------------------
def _bn_apply_lrelu_kernel(x_ref, scale_ref, shift_ref, o_ref):
    y = x_ref[...] * scale_ref[...] + shift_ref[...]
    o_ref[...] = jnp.where(y >= 0, y, NEG_SLOPE * y).astype(o_ref.dtype)


def _bn_lrelu(x, gamma, beta):
    """Training-mode BatchNorm2d (batch stats, eps=1e-5) + LeakyReLU(0.1).

    x: (N, H, W, C) float32 -> returns bfloat16 (N, H, W, C) for the GEMMs.
    """
    N, H, W, C = x.shape
    R = N * H * W
    C_pad = _round_up(C, LANE)
    tr = min(512, _round_up(R, 8))
    R_pad = _round_up(R, tr)
    n_tiles = R_pad // tr

    x2 = x.reshape(R, C).astype(jnp.float32)
    x2 = jnp.pad(x2, ((0, R_pad - R), (0, C_pad - C)))

    s_sum, s_sq = pl.pallas_call(
        _bn_stats_kernel,
        out_shape=(jax.ShapeDtypeStruct((1, C_pad), jnp.float32),
                   jax.ShapeDtypeStruct((1, C_pad), jnp.float32)),
        grid=(n_tiles,),
        in_specs=[pl.BlockSpec((tr, C_pad), lambda i: (i, 0))],
        out_specs=(pl.BlockSpec((1, C_pad), lambda i: (0, 0)),
                   pl.BlockSpec((1, C_pad), lambda i: (0, 0))),
        compiler_params=pltpu.CompilerParams(
            dimension_semantics=("arbitrary",),
            vmem_limit_bytes=VMEM_LIMIT),
    )(x2)

    count = jnp.float32(R)
    mean = s_sum[0] / count
    var = jnp.maximum(s_sq[0] / count - mean * mean, 0.0)  # biased, like torch BN
    gamma_p = jnp.pad(gamma.astype(jnp.float32), (0, C_pad - C))
    beta_p = jnp.pad(beta.astype(jnp.float32), (0, C_pad - C))
    scale = gamma_p * jax.lax.rsqrt(var + BN_EPS)
    shift = beta_p - mean * scale

    y = pl.pallas_call(
        _bn_apply_lrelu_kernel,
        out_shape=jax.ShapeDtypeStruct((R_pad, C_pad), jnp.bfloat16),
        grid=(n_tiles,),
        in_specs=[pl.BlockSpec((tr, C_pad), lambda i: (i, 0)),
                  pl.BlockSpec((1, C_pad), lambda i: (0, 0)),
                  pl.BlockSpec((1, C_pad), lambda i: (0, 0))],
        out_specs=pl.BlockSpec((tr, C_pad), lambda i: (i, 0)),
        compiler_params=pltpu.CompilerParams(
            dimension_semantics=("parallel",),
            vmem_limit_bytes=VMEM_LIMIT),
    )(x2, scale.reshape(1, C_pad), shift.reshape(1, C_pad))

    return y[:R, :C].reshape(N, H, W, C)


# ----------------------------------------------------------------------------
# Kernel 2: tiled GEMM (conv hot path), bf16 operands, fp32 accumulation,
# optional residual add fused into the last-K-step epilogue.
# ----------------------------------------------------------------------------
def _mm_kernel(a_ref, b_ref, o_ref, acc_ref):
    @pl.when(pl.program_id(2) == 0)
    def _():
        acc_ref[...] = jnp.zeros_like(acc_ref)

    acc_ref[...] += jnp.dot(a_ref[...], b_ref[...],
                            preferred_element_type=jnp.float32)

    @pl.when(pl.program_id(2) == pl.num_programs(2) - 1)
    def _():
        o_ref[...] = acc_ref[...].astype(o_ref.dtype)


def _mm_res_kernel(a_ref, b_ref, r_ref, o_ref, acc_ref):
    @pl.when(pl.program_id(2) == 0)
    def _():
        acc_ref[...] = jnp.zeros_like(acc_ref)

    acc_ref[...] += jnp.dot(a_ref[...], b_ref[...],
                            preferred_element_type=jnp.float32)

    @pl.when(pl.program_id(2) == pl.num_programs(2) - 1)
    def _():
        o_ref[...] = (acc_ref[...] + r_ref[...]).astype(o_ref.dtype)


def _matmul(a, b, res=None):
    """a: (M, K), b: (K, Cout) [cast to bf16]; res: optional (M, Cout) f32.

    Returns f32 (M, Cout). K / Cout padded to multiples of 128 (lane-dense).
    """
    M, K = a.shape
    Cout = b.shape[1]

    K_pad = _round_up(K, LANE)
    Cout_pad = _round_up(Cout, LANE)
    tm = min(512, _round_up(M, 8))
    M_pad = _round_up(M, tm)
    tk = _pick_tile(K_pad, (512, 384, 256, 128))
    tn = _pick_tile(Cout_pad, (512, 384, 256, 128))

    a_p = jnp.pad(a.astype(jnp.bfloat16), ((0, M_pad - M), (0, K_pad - K)))
    b_p = jnp.pad(b.astype(jnp.bfloat16), ((0, K_pad - K), (0, Cout_pad - Cout)))

    grid = (M_pad // tm, Cout_pad // tn, K_pad // tk)
    in_specs = [
        pl.BlockSpec((tm, tk), lambda i, j, k: (i, k)),
        pl.BlockSpec((tk, tn), lambda i, j, k: (k, j)),
    ]
    args = [a_p, b_p]
    kernel = _mm_kernel
    bytes_accessed = (M_pad * K_pad * 2 + K_pad * Cout_pad * 2
                      + M_pad * Cout_pad * 4)
    if res is not None:
        res_p = jnp.pad(res.astype(jnp.float32),
                        ((0, M_pad - M), (0, Cout_pad - Cout)))
        # index_map independent of k -> residual tile DMA'd once per output
        # tile; only consumed in the last-K-step epilogue (VPU slot).
        in_specs.append(pl.BlockSpec((tm, tn), lambda i, j, k: (i, j)))
        args.append(res_p)
        kernel = _mm_res_kernel
        bytes_accessed += M_pad * Cout_pad * 4

    out = pl.pallas_call(
        kernel,
        out_shape=jax.ShapeDtypeStruct((M_pad, Cout_pad), jnp.float32),
        grid=grid,
        in_specs=in_specs,
        out_specs=pl.BlockSpec((tm, tn), lambda i, j, k: (i, j)),
        scratch_shapes=[pltpu.VMEM((tm, tn), jnp.float32)],
        compiler_params=pltpu.CompilerParams(
            dimension_semantics=("parallel", "parallel", "arbitrary"),
            vmem_limit_bytes=VMEM_LIMIT),
        cost_estimate=pl.CostEstimate(
            flops=2 * M_pad * K_pad * Cout_pad,
            transcendentals=0,
            bytes_accessed=bytes_accessed),
    )(*args)
    return out[:M, :Cout]


# ----------------------------------------------------------------------------
# Convolution wrappers (im2col glue in JAX, GEMM in Pallas)
# ----------------------------------------------------------------------------
def _im2col_3x3(x, stride):
    # TODO(synk): im2col patches are still materialized in HBM (bf16);
    # building the (tm, 9*Cin) patch tile inside the GEMM kernel (9-position
    # accumulation axis) would remove the ~9x input re-read but needs
    # overlapping/strided BlockSpec windows.
    N, H, W, C = x.shape
    xpad = jnp.pad(x, ((0, 0), (1, 1), (1, 1), (0, 0)))
    Ho = (H + 2 - 3) // stride + 1
    Wo = (W + 2 - 3) // stride + 1
    cols = []
    for ky in range(3):
        for kx in range(3):
            patch = jax.lax.slice(
                xpad,
                (0, ky, kx, 0),
                (N, ky + (Ho - 1) * stride + 1, kx + (Wo - 1) * stride + 1, C),
                (1, stride, stride, 1),
            )
            cols.append(patch)
    cols = jnp.concatenate(cols, axis=-1)          # (N, Ho, Wo, 9*C)
    return cols, Ho, Wo


def _conv3x3(x, w_hwio, stride, residual=None):
    # x: (N, H, W, Cin); w_hwio: (3, 3, Cin, Cout); padding=1, bias=False
    x = x.astype(jnp.bfloat16)
    N, H, W, Cin = x.shape
    Cout = w_hwio.shape[-1]
    cols, Ho, Wo = _im2col_3x3(x, stride)
    a = cols.reshape(N * Ho * Wo, 9 * Cin)                 # batch folded into M
    wmat = w_hwio.astype(jnp.bfloat16).reshape(9 * Cin, Cout)
    res2 = None if residual is None else residual.reshape(N * Ho * Wo, Cout)
    out = _matmul(a, wmat, res2)
    return out.reshape(N, Ho, Wo, Cout)


def _conv1x1(x, w_io, stride):
    # 1x1 conv, padding=0, bias=False; stride == spatial subsample then GEMM
    xs = x[:, ::stride, ::stride, :].astype(jnp.bfloat16)
    N, Ho, Wo, Cin = xs.shape
    Cout = w_io.shape[-1]
    out = _matmul(xs.reshape(N * Ho * Wo, Cin), w_io.astype(jnp.bfloat16))
    return out.reshape(N, Ho, Wo, Cout)


# ----------------------------------------------------------------------------
# BasicBlock forward (reproduces the PyTorch control flow exactly)
# ----------------------------------------------------------------------------
def basic_block_forward(x_nchw, params, *, stride=1, droprate=0.0,
                        activate_before_residual=False):
    in_planes = x_nchw.shape[1]
    out_planes = params["conv1_w"].shape[-1]
    equal_in_out = in_planes == out_planes

    x = jnp.transpose(x_nchw, (0, 2, 3, 1)).astype(jnp.float32)   # NCHW -> NHWC

    residual = None
    if equal_in_out:
        act1 = _bn_lrelu(x, params["bn1_gamma"], params["bn1_beta"])   # bf16
        conv1_in = act1
        short_in = None
        residual = x                                  # identity residual (fp32)
    elif activate_before_residual:
        act1 = _bn_lrelu(x, params["bn1_gamma"], params["bn1_beta"])   # x replaced
        conv1_in = act1
        short_in = act1
    else:
        # In PyTorch this branch computes relu1(bn1(x)) but never consumes it;
        # skipping it saves a full BN+LeakyReLU HBM pass with identical output.
        conv1_in = x
        short_in = x

    out = _conv3x3(conv1_in, params["conv1_w"], stride)                 # fp32
    out = _bn_lrelu(out, params["bn2_gamma"], params["bn2_beta"])       # bf16

    if droprate > 0:
        # TODO(synk): F.dropout (droprate > 0) not implemented; demo uses dropRate=0.0.
        pass

    if not equal_in_out:
        residual = _conv1x1(short_in, params["short_w"], stride)        # fp32

    # conv2 (stride 1) with the residual add fused into the GEMM epilogue.
    out = _conv3x3(out, params["conv2_w"], stride=1, residual=residual)
    return jnp.transpose(out, (0, 3, 1, 2))                             # NHWC -> NCHW


# ----------------------------------------------------------------------------
# Pure-JAX fp32 reference (mirrors the PyTorch BasicBlock control flow)
# ----------------------------------------------------------------------------
def _reference_forward(x_nchw, params, *, stride=1, activate_before_residual=False):
    x = x_nchw.astype(jnp.float32)
    in_planes = x.shape[1]
    out_planes = params["conv1_w"].shape[-1]
    equal_in_out = in_planes == out_planes

    def bn_lrelu(v, gamma, beta):
        mean = jnp.mean(v, axis=(0, 2, 3), keepdims=True)
        var = jnp.mean((v - mean) ** 2, axis=(0, 2, 3), keepdims=True)
        y = ((v - mean) / jnp.sqrt(var + BN_EPS) * gamma.reshape(1, -1, 1, 1)
             + beta.reshape(1, -1, 1, 1))
        return jnp.where(y >= 0, y, NEG_SLOPE * y)

    def conv(v, w_hwio, s, pad):
        return jax.lax.conv_general_dilated(
            v, w_hwio, window_strides=(s, s), padding=pad,
            dimension_numbers=("NCHW", "HWIO", "NCHW"))

    if (not equal_in_out) and activate_before_residual:
        x = bn_lrelu(x, params["bn1_gamma"], params["bn1_beta"])
        conv1_in = x
    else:
        act = bn_lrelu(x, params["bn1_gamma"], params["bn1_beta"])
        conv1_in = act if equal_in_out else x
    out = conv(conv1_in, params["conv1_w"], stride, [(1, 1), (1, 1)])
    out = bn_lrelu(out, params["bn2_gamma"], params["bn2_beta"])
    out = conv(out, params["conv2_w"], 1, [(1, 1), (1, 1)])
    if equal_in_out:
        res = x
    else:
        res = conv(x, params["short_w"].reshape(1, 1, in_planes, out_planes),
                   stride, [(0, 0), (0, 0)])
    return res + out


# ----------------------------------------------------------------------------
# Deterministic parameter initialization (shapes from BasicBlock.__init__)
# ----------------------------------------------------------------------------
def init_params(key, in_planes, out_planes):
    ks = jax.random.split(key, 7)

    def conv_init(k, shape, fan_in):
        return (jax.random.normal(k, shape, jnp.float32)
                * jnp.sqrt(2.0 / fan_in)).astype(jnp.float32)

    return {
        # BatchNorm2d(in_planes)
        "bn1_gamma": 1.0 + 0.1 * jax.random.normal(ks[0], (in_planes,), jnp.float32),
        "bn1_beta": 0.1 * jax.random.normal(ks[1], (in_planes,), jnp.float32),
        # Conv2d(in_planes, out_planes, 3, stride, pad=1, bias=False)  [HWIO]
        "conv1_w": conv_init(ks[2], (3, 3, in_planes, out_planes), 9 * in_planes),
        # BatchNorm2d(out_planes)
        "bn2_gamma": 1.0 + 0.1 * jax.random.normal(ks[3], (out_planes,), jnp.float32),
        "bn2_beta": 0.1 * jax.random.normal(ks[4], (out_planes,), jnp.float32),
        # Conv2d(out_planes, out_planes, 3, 1, pad=1, bias=False)      [HWIO]
        "conv2_w": conv_init(ks[5], (3, 3, out_planes, out_planes), 9 * out_planes),
        # Conv2d(in_planes, out_planes, 1, stride, pad=0, bias=False)  [IO]
        "short_w": conv_init(ks[6], (in_planes, out_planes), in_planes),
    }


if __name__ == "__main__":
    key = jax.random.PRNGKey(0)
    keys = jax.random.split(key, 6)

    def run_case(in_planes, out_planes, stride, abr, kx, kp):
        x = jax.random.normal(kx, (2, in_planes, 16, 16), jnp.float32)  # NCHW
        params = init_params(kp, in_planes, out_planes)
        fwd = jax.jit(functools.partial(
            basic_block_forward, stride=stride, droprate=0.0,
            activate_before_residual=abr))
        y = fwd(x, params)
        jax.block_until_ready(y)
        y_ref = _reference_forward(x, params, stride=stride,
                                   activate_before_residual=abr)
        assert y.shape == y_ref.shape, (y.shape, y_ref.shape)
        assert bool(jnp.all(jnp.isfinite(y)))
        rel = float(jnp.max(jnp.abs(y - y_ref))
                    / (jnp.max(jnp.abs(y_ref)) + 1e-6))
        assert rel < 0.08, rel   # bf16 GEMM operands vs fp32 reference
        return y

    # Shortcut path: in_planes != out_planes, activate_before_residual=True.
    run_case(4, 8, 1, True, keys[0], keys[1])
    # Identity-residual path: in_planes == out_planes.
    run_case(8, 8, 1, False, keys[2], keys[3])
    # Strided shortcut path: in_planes != out_planes, stride=2, abr=False.
    run_case(4, 8, 2, False, keys[4], keys[5])

    print("KERNEL_OK")
</pallas_src>

<mosaic_0001>
module attributes {stable_mosaic.version = 11 : i64} {
  func.func @_bn_stats_kernel(%arg0: i32, %arg1: memref<512x128xf32, #tpu.memory_space<vmem>>, %arg2: memref<1x128xf32, #tpu.memory_space<vmem>>, %arg3: memref<1x128xf32, #tpu.memory_space<vmem>>) attributes {dimension_semantics = [#tpu.dimension_semantics<arbitrary>], iteration_bounds = array<i64: 1>, scalar_prefetch = 0 : i64, scratch_operands = 0 : i64, tpu.core_type = #tpu.core_type<tc>, window_params = [{transform_indices = @transform_0, window_bounds = array<i64: 512, 128>}, {pipeline_mode = #tpu.pipeline_mode<synchronous>, transform_indices = @transform_1, window_bounds = array<i64: 1, 128>}, {pipeline_mode = #tpu.pipeline_mode<synchronous>, transform_indices = @transform_2, window_bounds = array<i64: 1, 128>}]} {
    %c0_i32 = arith.constant 0 : i32
    %0 = arith.cmpi eq, %arg0, %c0_i32 : i32
    %1 = arith.extui %0 : i1 to i32
    %c0_i32_0 = arith.constant 0 : i32
    %2 = arith.cmpi ne, %1, %c0_i32_0 : i32
    scf.if %2 {
      %cst_11 = arith.constant 0.000000e+00 : f32
      %15 = vector.broadcast %cst_11 : f32 to vector<1x128xf32>
      %c0_12 = arith.constant 0 : index
      %c0_13 = arith.constant 0 : index
      %16 = vector.load %arg2[%c0_12, %c0_13] : memref<1x128xf32, #tpu.memory_space<vmem>>, vector<1x128xf32>
      tpu.vector_store %arg2[%c0_12, %c0_13], %15 {strides = array<i32>} : memref<1x128xf32, #tpu.memory_space<vmem>>, vector<1x128xf32>,
      %cst_14 = arith.constant 0.000000e+00 : f32
      %17 = vector.broadcast %cst_14 : f32 to vector<1x128xf32>
      %c0_15 = arith.constant 0 : index
      %c0_16 = arith.constant 0 : index
      %18 = vector.load %arg3[%c0_15, %c0_16] : memref<1x128xf32, #tpu.memory_space<vmem>>, vector<1x128xf32>
      tpu.vector_store %arg3[%c0_15, %c0_16], %17 {strides = array<i32>} : memref<1x128xf32, #tpu.memory_space<vmem>>, vector<1x128xf32>,
    } else {
    }
    %c0 = arith.constant 0 : index
    %c0_1 = arith.constant 0 : index
    %3 = vector.load %arg1[%c0, %c0_1] : memref<512x128xf32, #tpu.memory_space<vmem>>, vector<512x128xf32>
    %c0_2 = arith.constant 0 : index
    %c0_3 = arith.constant 0 : index
    %4 = vector.load %arg2[%c0_2, %c0_3] : memref<1x128xf32, #tpu.memory_space<vmem>>, vector<1x128xf32>
    %cst = arith.constant dense<0.000000e+00> : vector<128xf32>
    %5 = vector.multi_reduction <add>, %3, %cst [0] : vector<512x128xf32> to vector<128xf32>
    %6 = vector.shape_cast %5 : vector<128xf32> to vector<1x128xf32>
    %7 = arith.addf %4, %6 : vector<1x128xf32>
    %c0_4 = arith.constant 0 : index
    %c0_5 = arith.constant 0 : index
    %8 = vector.load %arg2[%c0_4, %c0_5] : memref<1x128xf32, #tpu.memory_space<vmem>>, vector<1x128xf32>
    tpu.vector_store %arg2[%c0_4, %c0_5], %7 {strides = array<i32>} : memref<1x128xf32, #tpu.memory_space<vmem>>, vector<1x128xf32>,
    %c0_6 = arith.constant 0 : index
    %c0_7 = arith.constant 0 : index
    %9 = vector.load %arg3[%c0_6, %c0_7] : memref<1x128xf32, #tpu.memory_space<vmem>>, vector<1x128xf32>
    %10 = arith.mulf %3, %3 : vector<512x128xf32>
    %cst_8 = arith.constant dense<0.000000e+00> : vector<128xf32>
    %11 = vector.multi_reduction <add>, %10, %cst_8 [0] : vector<512x128xf32> to vector<128xf32>
    %12 = vector.shape_cast %11 : vector<128xf32> to vector<1x128xf32>
    %13 = arith.addf %9, %12 : vector<1x128xf32>
    %c0_9 = arith.constant 0 : index
    %c0_10 = arith.constant 0 : index
    %14 = vector.load %arg3[%c0_9, %c0_10] : memref<1x128xf32, #tpu.memory_space<vmem>>, vector<1x128xf32>
    tpu.vector_store %arg3[%c0_9, %c0_10], %13 {strides = array<i32>} : memref<1x128xf32, #tpu.memory_space<vmem>>, vector<1x128xf32>,
    return
  }
  func.func @transform_0(%arg0: i32) -> (i32, i32) {
    %c0_i32 = arith.constant 0 : i32
    %c0_i32_0 = arith.constant 0 : i32
    return %arg0, %c0_i32 : i32, i32
  }
  func.func @transform_1(%arg0: i32) -> (i32, i32) {
    %c0_i32 = arith.constant 0 : i32
    %c0_i32_0 = arith.constant 0 : i32
    %c0_i32_1 = arith.constant 0 : i32
    return %c0_i32, %c0_i32_0 : i32, i32
  }
  func.func @transform_2(%arg0: i32) -> (i32, i32) {
    %c0_i32 = arith.constant 0 : i32
    %c0_i32_0 = arith.constant 0 : i32
    %c0_i32_1 = arith.constant 0 : i32
    return %c0_i32, %c0_i32_0 : i32, i32
  }
}

module attributes {stable_mosaic.version = 11 : i64} {
  func.func @_bn_apply_lrelu_kernel(%arg0: i32, %arg1: memref<512x128xf32, #tpu.memory_space<vmem>>, %arg2: memref<1x128xf32, #tpu.memory_space<vmem>>, %arg3: memref<1x128xf32, #tpu.memory_space<vmem>>, %arg4: memref<512x128xbf16, #tpu.memory_space<vmem>>) attributes {dimension_semantics = [#tpu.dimension_semantics<parallel>], iteration_bounds = array<i64: 1>, scalar_prefetch = 0 : i64, scratch_operands = 0 : i64, tpu.core_type = #tpu.core_type<tc>, window_params = [{transform_indices = @transform_0, window_bounds = array<i64: 512, 128>}, {pipeline_mode = #tpu.pipeline_mode<synchronous>, transform_indices = @transform_1, window_bounds = array<i64: 1, 128>}, {pipeline_mode = #tpu.pipeline_mode<synchronous>, transform_indices = @transform_2, window_bounds = array<i64: 1, 128>}, {transform_indices = @transform_3, window_bounds = array<i64: 512, 128>}]} {
    %c0 = arith.constant 0 : index
    %c0_0 = arith.constant 0 : index
    %0 = vector.load %arg1[%c0, %c0_0] : memref<512x128xf32, #tpu.memory_space<vmem>>, vector<512x128xf32>
    %c0_1 = arith.constant 0 : index
    %c0_2 = arith.constant 0 : index
    %1 = vector.load %arg2[%c0_1, %c0_2] : memref<1x128xf32, #tpu.memory_space<vmem>>, vector<1x128xf32>
    %2 = vector.broadcast %1 : vector<1x128xf32> to vector<512x128xf32>
    %3 = arith.mulf %0, %2 : vector<512x128xf32>
    %c0_3 = arith.constant 0 : index
    %c0_4 = arith.constant 0 : index
    %4 = vector.load %arg3[%c0_3, %c0_4] : memref<1x128xf32, #tpu.memory_space<vmem>>, vector<1x128xf32>
    %5 = vector.broadcast %4 : vector<1x128xf32> to vector<512x128xf32>
    %6 = arith.addf %3, %5 : vector<512x128xf32>
    %cst = arith.constant 0.000000e+00 : f32
    %7 = vector.broadcast %cst : f32 to vector<512x128xf32>
    %8 = arith.cmpf oge, %6, %7 : vector<512x128xf32>
    %cst_5 = arith.constant 1.000000e-01 : f32
    %9 = vector.broadcast %cst_5 : f32 to vector<512x128xf32>
    %10 = arith.mulf %9, %6 : vector<512x128xf32>
    %11 = arith.select %8, %6, %10 : vector<512x128xi1>, vector<512x128xf32>
    %12 = arith.truncf %11 : vector<512x128xf32> to vector<512x128xbf16>
    %c0_6 = arith.constant 0 : index
    %c0_7 = arith.constant 0 : index
    %13 = vector.load %arg4[%c0_6, %c0_7] : memref<512x128xbf16, #tpu.memory_space<vmem>>, vector<512x128xbf16>
    tpu.vector_store %arg4[%c0_6, %c0_7], %12 {strides = array<i32>} : memref<512x128xbf16, #tpu.memory_space<vmem>>, vector<512x128xbf16>,
    return
  }
  func.func @transform_0(%arg0: i32) -> (i32, i32) {
    %c0_i32 = arith.constant 0 : i32
    %c0_i32_0 = arith.constant 0 : i32
    return %arg0, %c0_i32 : i32, i32
  }
  func.func @transform_1(%arg0: i32) -> (i32, i32) {
    %c0_i32 = arith.constant 0 : i32
    %c0_i32_0 = arith.constant 0 : i32
    %c0_i32_1 = arith.constant 0 : i32
    return %c0_i32, %c0_i32_0 : i32, i32
  }
  func.func @transform_2(%arg0: i32) -> (i32, i32) {
    %c0_i32 = arith.constant 0 : i32
    %c0_i32_0 = arith.constant 0 : i32
    %c0_i32_1 = arith.constant 0 : i32
    return %c0_i32, %c0_i32_0 : i32, i32
  }
  func.func @transform_3(%arg0: i32) -> (i32, i32) {
    %c0_i32 = arith.constant 0 : i32
    %c0_i32_0 = arith.constant 0 : i32
    return %arg0, %c0_i32 : i32, i32
  }
}

module attributes {stable_mosaic.version = 11 : i64} {
  func.func @_mm_kernel(%arg0: i32, %arg1: i32, %arg2: i32, %arg3: memref<512x128xbf16, #tpu.memory_space<vmem>>, %arg4: memref<128x128xbf16, #tpu.memory_space<vmem>>, %arg5: memref<512x128xf32, #tpu.memory_space<vmem>>, %arg6: memref<512x128xf32, #tpu.memory_space<vmem>>) attributes {dimension_semantics = [#tpu.dimension_semantics<parallel>, #tpu.dimension_semantics<parallel>, #tpu.dimension_semantics<arbitrary>], iteration_bounds = array<i64: 1, 1, 1>, scalar_prefetch = 0 : i64, scratch_operands = 1 : i64, tpu.core_type = #tpu.core_type<tc>, window_params = [{transform_indices = @transform_0, window_bounds = array<i64: 512, 128>}, {transform_indices = @transform_1, window_bounds = array<i64: 128, 128>}, {transform_indices = @transform_2, window_bounds = array<i64: 512, 128>}]} {
    %c0_i32 = arith.constant 0 : i32
    %0 = arith.cmpi eq, %arg2, %c0_i32 : i32
    %1 = arith.extui %0 : i1 to i32
    %c0_i32_0 = arith.constant 0 : i32
    %2 = arith.cmpi ne, %1, %c0_i32_0 : i32
    scf.if %2 {
      %cst_10 = arith.constant 0.000000e+00 : f32
      %12 = vector.broadcast %cst_10 : f32 to vector<512x128xf32>
      %c0_11 = arith.constant 0 : index
      %c0_12 = arith.constant 0 : index
      %13 = vector.load %arg6[%c0_11, %c0_12] : memref<512x128xf32, #tpu.memory_space<vmem>>, vector<512x128xf32>
      tpu.vector_store %arg6[%c0_11, %c0_12], %12 {strides = array<i32>} : memref<512x128xf32, #tpu.memory_space<vmem>>, vector<512x128xf32>,
    } else {
    }
    %c0 = arith.constant 0 : index
    %c0_1 = arith.constant 0 : index
    %3 = vector.load %arg6[%c0, %c0_1] : memref<512x128xf32, #tpu.memory_space<vmem>>, vector<512x128xf32>
    %c0_2 = arith.constant 0 : index
    %c0_3 = arith.constant 0 : index
    %4 = vector.load %arg3[%c0_2, %c0_3] : memref<512x128xbf16, #tpu.memory_space<vmem>>, vector<512x128xbf16>
    %c0_4 = arith.constant 0 : index
    %c0_5 = arith.constant 0 : index
    %5 = vector.load %arg4[%c0_4, %c0_5] : memref<128x128xbf16, #tpu.memory_space<vmem>>, vector<128x128xbf16>
    %cst = arith.constant dense<0.000000e+00> : vector<512x128xf32>
    %6 = tpu.matmul %4, %5, %cst {dimension_numbers = #tpu.dot_dimension_numbers<[1], [0], [0], [1], [0, 0, 1, 1], [], []>} : vector<512x128xbf16>, vector<128x128xbf16>, vector<512x128xf32> -> vector<512x128xf32>
    %7 = arith.addf %3, %6 : vector<512x128xf32>
    %c0_6 = arith.constant 0 : index
    %c0_7 = arith.constant 0 : index
    %8 = vector.load %arg6[%c0_6, %c0_7] : memref<512x128xf32, #tpu.memory_space<vmem>>, vector<512x128xf32>
    tpu.vector_store %arg6[%c0_6, %c0_7], %7 {strides = array<i32>} : memref<512x128xf32, #tpu.memory_space<vmem>>, vector<512x128xf32>,
    %c0_i32_8 = arith.constant 0 : i32
    %9 = arith.cmpi eq, %arg2, %c0_i32_8 : i32
    %10 = arith.extui %9 : i1 to i32
    %c0_i32_9 = arith.constant 0 : i32
    %11 = arith.cmpi ne, %10, %c0_i32_9 : i32
    scf.if %11 {
      %c0_10 = arith.constant 0 : index
      %c0_11 = arith.constant 0 : index
      %12 = vector.load %arg6[%c0_10, %c0_11] : memref<512x128xf32, #tpu.memory_space<vmem>>, vector<512x128xf32>
      %c0_12 = arith.constant 0 : index
      %c0_13 = arith.constant 0 : index
      %13 = vector.load %arg5[%c0_12, %c0_13] : memref<512x128xf32, #tpu.memory_space<vmem>>, vector<512x128xf32>
      tpu.vector_store %arg5[%c0_12, %c0_13], %12 {strides = array<i32>} : memref<512x128xf32, #tpu.memory_space<vmem>>, vector<512x128xf32>,
    } else {
    }
    return
  }
  func.func @transform_0(%arg0: i32, %arg1: i32, %arg2: i32) -> (i32, i32) {
    %c0_i32 = arith.constant 0 : i32
    return %arg0, %arg2 : i32, i32
  }
  func.func @transform_1(%arg0: i32, %arg1: i32, %arg2: i32) -> (i32, i32) {
    %c0_i32 = arith.constant 0 : i32
    return %arg2, %arg1 : i32, i32
  }
  func.func @transform_2(%arg0: i32, %arg1: i32, %arg2: i32) -> (i32, i32) {
    %c0_i32 = arith.constant 0 : i32
    return %arg0, %arg1 : i32, i32
  }
}

module attributes {stable_mosaic.version = 11 : i64} {
  func.func @_mm_res_kernel(%arg0: i32, %arg1: i32, %arg2: i32, %arg3: memref<512x128xbf16, #tpu.memory_space<vmem>>, %arg4: memref<128x128xbf16, #tpu.memory_space<vmem>>, %arg5: memref<512x128xf32, #tpu.memory_space<vmem>>, %arg6: memref<512x128xf32, #tpu.memory_space<vmem>>, %arg7: memref<512x128xf32, #tpu.memory_space<vmem>>) attributes {dimension_semantics = [#tpu.dimension_semantics<parallel>, #tpu.dimension_semantics<parallel>, #tpu.dimension_semantics<arbitrary>], iteration_bounds = array<i64: 1, 1, 1>, scalar_prefetch = 0 : i64, scratch_operands = 1 : i64, tpu.core_type = #tpu.core_type<tc>, window_params = [{transform_indices = @transform_0, window_bounds = array<i64: 512, 128>}, {transform_indices = @transform_1, window_bounds = array<i64: 128, 128>}, {transform_indices = @transform_2, window_bounds = array<i64: 512, 128>}, {transform_indices = @transform_3, window_bounds = array<i64: 512, 128>}]} {
    %c0_i32 = arith.constant 0 : i32
    %0 = arith.cmpi eq, %arg2, %c0_i32 : i32
    %1 = arith.extui %0 : i1 to i32
    %c0_i32_0 = arith.constant 0 : i32
    %2 = arith.cmpi ne, %1, %c0_i32_0 : i32
    scf.if %2 {
      %cst_10 = arith.constant 0.000000e+00 : f32
      %12 = vector.broadcast %cst_10 : f32 to vector<512x128xf32>
      %c0_11 = arith.constant 0 : index
      %c0_12 = arith.constant 0 : index
      %13 = vector.load %arg7[%c0_11, %c0_12] : memref<512x128xf32, #tpu.memory_space<vmem>>, vector<512x128xf32>
      tpu.vector_store %arg7[%c0_11, %c0_12], %12 {strides = array<i32>} : memref<512x128xf32, #tpu.memory_space<vmem>>, vector<512x128xf32>,
    } else {
    }
    %c0 = arith.constant 0 : index
    %c0_1 = arith.constant 0 : index
    %3 = vector.load %arg7[%c0, %c0_1] : memref<512x128xf32, #tpu.memory_space<vmem>>, vector<512x128xf32>
    %c0_2 = arith.constant 0 : index
    %c0_3 = arith.constant 0 : index
    %4 = vector.load %arg3[%c0_2, %c0_3] : memref<512x128xbf16, #tpu.memory_space<vmem>>, vector<512x128xbf16>
    %c0_4 = arith.constant 0 : index
    %c0_5 = arith.constant 0 : index
    %5 = vector.load %arg4[%c0_4, %c0_5] : memref<128x128xbf16, #tpu.memory_space<vmem>>, vector<128x128xbf16>
    %cst = arith.constant dense<0.000000e+00> : vector<512x128xf32>
    %6 = tpu.matmul %4, %5, %cst {dimension_numbers = #tpu.dot_dimension_numbers<[1], [0], [0], [1], [0, 0, 1, 1], [], []>} : vector<512x128xbf16>, vector<128x128xbf16>, vector<512x128xf32> -> vector<512x128xf32>
    %7 = arith.addf %3, %6 : vector<512x128xf32>
    %c0_6 = arith.constant 0 : index
    %c0_7 = arith.constant 0 : index
    %8 = vector.load %arg7[%c0_6, %c0_7] : memref<512x128xf32, #tpu.memory_space<vmem>>, vector<512x128xf32>
    tpu.vector_store %arg7[%c0_6, %c0_7], %7 {strides = array<i32>} : memref<512x128xf32, #tpu.memory_space<vmem>>, vector<512x128xf32>,
    %c0_i32_8 = arith.constant 0 : i32
    %9 = arith.cmpi eq, %arg2, %c0_i32_8 : i32
    %10 = arith.extui %9 : i1 to i32
    %c0_i32_9 = arith.constant 0 : i32
    %11 = arith.cmpi ne, %10, %c0_i32_9 : i32
    scf.if %11 {
      %c0_10 = arith.constant 0 : index
      %c0_11 = arith.constant 0 : index
      %12 = vector.load %arg7[%c0_10, %c0_11] : memref<512x128xf32, #tpu.memory_space<vmem>>, vector<512x128xf32>
      %c0_12 = arith.constant 0 : index
      %c0_13 = arith.constant 0 : index
      %13 = vector.load %arg5[%c0_12, %c0_13] : memref<512x128xf32, #tpu.memory_space<vmem>>, vector<512x128xf32>
      %14 = arith.addf %12, %13 : vector<512x128xf32>
      %c0_14 = arith.constant 0 : index
      %c0_15 = arith.constant 0 : index
      %15 = vector.load %arg6[%c0_14, %c0_15] : memref<512x128xf32, #tpu.memory_space<vmem>>, vector<512x128xf32>
      tpu.vector_store %arg6[%c0_14, %c0_15], %14 {strides = array<i32>} : memref<512x128xf32, #tpu.memory_space<vmem>>, vector<512x128xf32>,
    } else {
    }
    return
  }
  func.func @transform_0(%arg0: i32, %arg1: i32, %arg2: i32) -> (i32, i32) {
    %c0_i32 = arith.constant 0 : i32
    return %arg0, %arg2 : i32, i32
  }
  func.func @transform_1(%arg0: i32, %arg1: i32, %arg2: i32) -> (i32, i32) {
    %c0_i32 = arith.constant 0 : i32
    return %arg2, %arg1 : i32, i32
  }
  func.func @transform_2(%arg0: i32, %arg1: i32, %arg2: i32) -> (i32, i32) {
    %c0_i32 = arith.constant 0 : i32
    return %arg0, %arg1 : i32, i32
  }
  func.func @transform_3(%arg0: i32, %arg1: i32, %arg2: i32) -> (i32, i32) {
    %c0_i32 = arith.constant 0 : i32
    return %arg0, %arg1 : i32, i32
  }
}

</mosaic_0001>

<llo_original>
// kernel: basic_block_forward.7
$region0: #{basic_block_forward.7}
  #allocation0 [shape = 'u32[]', space=smem, size = 0x4, offset = 0x4, fixed_abs, tag = 'smem constant byte address 0x4 - core index']
  #allocation1 [shape = 'u32[144,128]{1,0:T(1,128)}', space=vmem, size = 0x12000, scoped, tag = 'internal scratch']
  %s0 = inlined_call_operand.vmem [shape: f32[512,128], index: 0, kind: input, shape index: {}]
  %s1 = inlined_call_operand.vmem [shape: f32[1,128], index: 1, kind: output, shape index: {0}]
  %s2 = inlined_call_operand.vmem [shape: f32[1,128], index: 2, kind: output, shape index: {1}]
  %3 = xla_tuple %s1, %s2
  %s4 = sld [smem:[#allocation0]]
  $region26: #{basic_block_forward.7} parent=0
    _
  %s6 = ssub.s32 1, %s4
  %s7 = scalar_select 0, %s6, %s4
  // Predicated region
  $region2: #{basic_block_forward.7} parent=0 // pred_check
    _
  $region3: #{basic_block_forward.7} parent=0 // pred_check_branch
    %9 = sbr.rel (0) target = $region5
  $region4: #{basic_block_forward.7} parent=0 // pred_region
    _
  $region5: #{basic_block_forward.7} parent=0 // pred_fallthru
    _
  %p10 = scmp.eq.s32.totalorder 0, 0
  // Predicated region
  $region6: #{basic_block_forward.7} parent=0 // pred_check
    %p11 = pneg %p10
  $region7: #{basic_block_forward.7} parent=0 // pred_check_branch
    %13 = sbr.rel (%p11) target = $region9
  $region8: #{basic_block_forward.7} parent=0 // pred_region
    %14 = vst [vmem:[%s1] sm:$0x1] 0.0
    %15 = vst [vmem:[%s2] sm:$0x1] 0.0
  $region9: #{basic_block_forward.7} parent=0 // pred_fallthru
    _
  %v16 = vld [vmem:[%s0] sm:$0xff]
  %v17 = vld [vmem:[%s0 + $0x8] sm:$0xff]
  %v18 = vld [vmem:[%s0 + $0x10] sm:$0xff]
  %v19 = vld [vmem:[%s0 + $0x18] sm:$0xff]
  %v20 = vld [vmem:[%s0 + $0x20] sm:$0xff]
  %v21 = vld [vmem:[%s0 + $0x28] sm:$0xff]
  %v22 = vld [vmem:[%s0 + $0x30] sm:$0xff]
  %v23 = vld [vmem:[%s0 + $0x38] sm:$0xff]
  %v24 = vld [vmem:[%s0 + $0x40] sm:$0xff]
  %v25 = vld [vmem:[%s0 + $0x48] sm:$0xff]
  %v26 = vld [vmem:[%s0 + $0x50] sm:$0xff]
  %v27 = vld [vmem:[%s0 + $0x58] sm:$0xff]
  %v28 = vld [vmem:[%s0 + $0x60] sm:$0xff]
  %v29 = vld [vmem:[%s0 + $0x68] sm:$0xff]
  %v30 = vld [vmem:[%s0 + $0x70] sm:$0xff]
  %v31 = vld [vmem:[%s0 + $0x78] sm:$0xff]
  %v32 = vld [vmem:[%s0 + $0x80] sm:$0xff]
  %v33 = vld [vmem:[%s0 + $0x88] sm:$0xff]
  %v34 = vld [vmem:[%s0 + $0x90] sm:$0xff]
  %v35 = vld [vmem:[%s0 + $0x98] sm:$0xff]
  %v36 = vld [vmem:[%s0 + $0xa0] sm:$0xff]
  %v37 = vld [vmem:[%s0 + $0xa8] sm:$0xff]
  %v38 = vld [vmem:[%s0 + $0xb0] sm:$0xff]
  %v39 = vld [vmem:[%s0 + $0xb8] sm:$0xff]
  %v40 = vld [vmem:[%s0 + $0xc0] sm:$0xff]
  %v41 = vld [vmem:[%s0 + $0xc8] sm:$0xff]
  %v42 = vld [vmem:[%s0 + $0xd0] sm:$0xff]
  %v43 = vld [vmem:[%s0 + $0xd8] sm:$0xff]
  %v44 = vld [vmem:[%s0 + $0xe0] sm:$0xff]
  %v45 = vld [vmem:[%s0 + $0xe8] sm:$0xff]
  %v46 = vld [vmem:[%s0 + $0xf0] sm:$0xff]
  %v47 = vld [vmem:[%s0 + $0xf8] sm:$0xff]
  %v48 = vld [vmem:[%s0 + $0x100] sm:$0xff]
  %v49 = vld [vmem:[%s0 + $0x108] sm:$0xff]
  %v50 = vld [vmem:[%s0 + $0x110] sm:$0xff]
  %v51 = vld [vmem:[%s0 + $0x118] sm:$0xff]
  %v52 = vld [vmem:[%s0 + $0x120] sm:$0xff]
  %v53 = vld [vmem:[%s0 + $0x128] sm:$0xff]
  %v54 = vld [vmem:[%s0 + $0x130] sm:$0xff]
  %v55 = vld [vmem:[%s0 + $0x138] sm:$0xff]
  %v56 = vld [vmem:[%s0 + $0x140] sm:$0xff]
  %v57 = vld [vmem:[%s0 + $0x148] sm:$0xff]
  %v58 = vld [vmem:[%s0 + $0x150] sm:$0xff]
  %v59 = vld [vmem:[%s0 + $0x158] sm:$0xff]
  %v60 = vld [vmem:[%s0 + $0x160] sm:$0xff]
  %v61 = vld [vmem:[%s0 + $0x168] sm:$0xff]
  %v62 = vld [vmem:[%s0 + $0x170] sm:$0xff]
  %v63 = vld [vmem:[%s0 + $0x178] sm:$0xff]
  %v64 = vld [vmem:[%s0 + $0x180] sm:$0xff]
  %v65 = vld [vmem:[%s0 + $0x188] sm:$0xff]
  %v66 = vld [vmem:[%s0 + $0x190] sm:$0xff]
  %v67 = vld [vmem:[%s0 + $0x198] sm:$0xff]
  %v68 = vld [vmem:[%s0 + $0x1a0] sm:$0xff]
  %v69 = vld [vmem:[%s0 + $0x1a8] sm:$0xff]
  %v70 = vld [vmem:[%s0 + $0x1b0] sm:$0xff]
  %v71 = vld [vmem:[%s0 + $0x1b8] sm:$0xff]
  %v72 = vld [vmem:[%s0 + $0x1c0] sm:$0xff]
  %v73 = vld [vmem:[%s0 + $0x1c8] sm:$0xff]
  %v74 = vld [vmem:[%s0 + $0x1d0] sm:$0xff]
  %v75 = vld [vmem:[%s0 + $0x1d8] sm:$0xff]
  %v76 = vld [vmem:[%s0 + $0x1e0] sm:$0xff]
  %v77 = vld [vmem:[%s0 + $0x1e8] sm:$0xff]
  %v78 = vld [vmem:[%s0 + $0x1f0] sm:$0xff]
  %v79 = vld [vmem:[%s0 + $0x1f8] sm:$0xff]
  %v80 = vld [vmem:[%s1] sm:$0x1]
  %v81 = vadd.f32 %v16, %v17
  %v82 = vadd.f32 %v81, %v18
  %v83 = vadd.f32 %v82, %v19
  %v84 = vadd.f32 %v83, %v20
  %v85 = vadd.f32 %v84, %v21
  %v86 = vadd.f32 %v85, %v22
  %v87 = vadd.f32 %v86, %v23
  %v88 = vadd.f32 %v87, %v24
  %v89 = vadd.f32 %v88, %v25
  %v90 = vadd.f32 %v89, %v26
  %v91 = vadd.f32 %v90, %v27
  %v92 = vadd.f32 %v91, %v28
  %v93 = vadd.f32 %v92, %v29
  %v94 = vadd.f32 %v93, %v30
  %v95 = vadd.f32 %v94, %v31
  %v96 = vadd.f32 %v95, %v32
  %v97 = vadd.f32 %v96, %v33
  %v98 = vadd.f32 %v97, %v34
  %v99 = vadd.f32 %v98, %v35
  %v100 = vadd.f32 %v99, %v36
  %v101 = vadd.f32 %v100, %v37
  %v102 = vadd.f32 %v101, %v38
  %v103 = vadd.f32 %v102, %v39
  %v104 = vadd.f32 %v103, %v40
  %v105 = vadd.f32 %v104, %v41
  %v106 = vadd.f32 %v105, %v42
  %v107 = vadd.f32 %v106, %v43
  %v108 = vadd.f32 %v107, %v44
  %v109 = vadd.f32 %v108, %v45
  %v110 = vadd.f32 %v109, %v46
  %v111 = vadd.f32 %v110, %v47
  %v112 = vadd.f32 %v111, %v48
  %v113 = vadd.f32 %v112, %v49
  %v114 = vadd.f32 %v113, %v50
  %v115 = vadd.f32 %v114, %v51
  %v116 = vadd.f32 %v115, %v52
  %v117 = vadd.f32 %v116, %v53
  %v118 = vadd.f32 %v117, %v54
  %v119 = vadd.f32 %v118, %v55
  %v120 = vadd.f32 %v119, %v56
  %v121 = vadd.f32 %v120, %v57
  %v122 = vadd.f32 %v121, %v58
  %v123 = vadd.f32 %v122, %v59
  %v124 = vadd.f32 %v123, %v60
  %v125 = vadd.f32 %v124, %v61
  %v126 = vadd.f32 %v125, %v62
  %v127 = vadd.f32 %v126, %v63
  %v128 = vadd.f32 %v127, %v64
  %v129 = vadd.f32 %v128, %v65
  %v130 = vadd.f32 %v129, %v66
  %v131 = vadd.f32 %v130, %v67
  %v132 = vadd.f32 %v131, %v68
  %v133 = vadd.f32 %v132, %v69
  %v134 = vadd.f32 %v133, %v70
  %v135 = vadd.f32 %v134, %v71
  %v136 = vadd.f32 %v135, %v72
  %v137 = vadd.f32 %v136, %v73
  %v138 = vadd.f32 %v137, %v74
  %v139 = vadd.f32 %v138, %v75
  %v140 = vadd.f32 %v139, %v76
  %v141 = vadd.f32 %v140, %v77
  %v142 = vadd.f32 %v141, %v78
  %v143 = vadd.f32 %v142, %v79
  %v144 = vrot.slane %v143, 4
  %v145 = vadd.f32 %v143, %v144
  %v146 = vrot.slane %v145, 2
  %v147 = vadd.f32 %v145, %v146
  %v148 = vrot.slane %v147, 1
  %v149 = vadd.f32 %v147, %v148
  %v150 = vadd.f32 %v80, %v149
  %151 = vst [vmem:[%s1] sm:$0x1] %v150
  %v152 = vld [vmem:[%s2] sm:$0x1]
  %v153 = vmul.f32 %v16, %v16
  %v154 = vmul.f32 %v17, %v17
  %v155 = vmul.f32 %v18, %v18
  %v156 = vmul.f32 %v19, %v19
  %v157 = vmul.f32 %v20, %v20
  %v158 = vmul.f32 %v21, %v21
  %v159 = vmul.f32 %v22, %v22
  %v160 = vmul.f32 %v23, %v23
  %v161 = vmul.f32 %v24, %v24
  %v162 = vmul.f32 %v25, %v25
  %v163 = vmul.f32 %v26, %v26
  %v164 = vmul.f32 %v27, %v27
  %v165 = vmul.f32 %v28, %v28
  %v166 = vmul.f32 %v29, %v29
  %v167 = vmul.f32 %v30, %v30
  %v168 = vmul.f32 %v31, %v31
  %v169 = vmul.f32 %v32, %v32
  %v170 = vmul.f32 %v33, %v33
  %v171 = vmul.f32 %v34, %v34
  %v172 = vmul.f32 %v35, %v35
  %v173 = vmul.f32 %v36, %v36
  %v174 = vmul.f32 %v37, %v37
  %v175 = vmul.f32 %v38, %v38
  %v176 = vmul.f32 %v39, %v39
  %v177 = vmul.f32 %v40, %v40
  %v178 = vmul.f32 %v41, %v41
  %v179 = vmul.f32 %v42, %v42
  %v180 = vmul.f32 %v43, %v43
  %v181 = vmul.f32 %v44, %v44
  %v182 = vmul.f32 %v45, %v45
  %v183 = vmul.f32 %v46, %v46
  %v184 = vmul.f32 %v47, %v47
  %v185 = vmul.f32 %v48, %v48
  %v186 = vmul.f32 %v49, %v49
  %v187 = vmul.f32 %v50, %v50
  %v188 = vmul.f32 %v51, %v51
  %v189 = vmul.f32 %v52, %v52
  %v190 = vmul.f32 %v53, %v53
  %v191 = vmul.f32 %v54, %v54
  %v192 = vmul.f32 %v55, %v55
  %v193 = vmul.f32 %v56, %v56
  %v194 = vmul.f32 %v57, %v57
  %v195 = vmul.f32 %v58, %v58
  %v196 = vmul.f32 %v59, %v59
  %v197 = vmul.f32 %v60, %v60
  %v198 = vmul.f32 %v61, %v61
  %v199 = vmul.f32 %v62, %v62
  %v200 = vmul.f32 %v63, %v63
  %v201 = vmul.f32 %v64, %v64
  %v202 = vmul.f32 %v65, %v65
  %v203 = vmul.f32 %v66, %v66
  %v204 = vmul.f32 %v67, %v67
  %v205 = vmul.f32 %v68, %v68
  %v206 = vmul.f32 %v69, %v69
  %v207 = vmul.f32 %v70, %v70
  %v208 = vmul.f32 %v71, %v71
  %v209 = vmul.f32 %v72, %v72
  %v210 = vmul.f32 %v73, %v73
  %v211 = vmul.f32 %v74, %v74
  %v212 = vmul.f32 %v75, %v75
  %v213 = vmul.f32 %v76, %v76
  %v214 = vmul.f32 %v77, %v77
  %v215 = vmul.f32 %v78, %v78
  %v216 = vmul.f32 %v79, %v79
  %v217 = vadd.f32 %v153, %v154
  %v218 = vadd.f32 %v217, %v155
  %v219 = vadd.f32 %v218, %v156
  %v220 = vadd.f32 %v219, %v157
  %v221 = vadd.f32 %v220, %v158
  %v222 = vadd.f32 %v221, %v159
  %v223 = vadd.f32 %v222, %v160
  %v224 = vadd.f32 %v223, %v161
  %v225 = vadd.f32 %v224, %v162
  %v226 = vadd.f32 %v225, %v163
  %v227 = vadd.f32 %v226, %v164
  %v228 = vadd.f32 %v227, %v165
  %v229 = vadd.f32 %v228, %v166
  %v230 = vadd.f32 %v229, %v167
  %v231 = vadd.f32 %v230, %v168
  %v232 = vadd.f32 %v231, %v169
  %v233 = vadd.f32 %v232, %v170
  %v234 = vadd.f32 %v233, %v171
  %v235 = vadd.f32 %v234, %v172
  %v236 = vadd.f32 %v235, %v173
  %v237 = vadd.f32 %v236, %v174
  %v238 = vadd.f32 %v237, %v175
  %v239 = vadd.f32 %v238, %v176
  %v240 = vadd.f32 %v239, %v177
  %v241 = vadd.f32 %v240, %v178
  %v242 = vadd.f32 %v241, %v179
  %v243 = vadd.f32 %v242, %v180
  %v244 = vadd.f32 %v243, %v181
  %v245 = vadd.f32 %v244, %v182
  %v246 = vadd.f32 %v245, %v183
  %v247 = vadd.f32 %v246, %v184
  %v248 = vadd.f32 %v247, %v185
  %v249 = vadd.f32 %v248, %v186
  %v250 = vadd.f32 %v249, %v187
  %v251 = vadd.f32 %v250, %v188
  %v252 = vadd.f32 %v251, %v189
  %v253 = vadd.f32 %v252, %v190
  %v254 = vadd.f32 %v253, %v191
  %v255 = vadd.f32 %v254, %v192
  %v256 = vadd.f32 %v255, %v193
  %v257 = vadd.f32 %v256, %v194
  %v258 = vadd.f32 %v257, %v195
  %v259 = vadd.f32 %v258, %v196
  %v260 = vadd.f32 %v259, %v197
  %v261 = vadd.f32 %v260, %v198
  %v262 = vadd.f32 %v261, %v199
  %v263 = vadd.f32 %v262, %v200
  %v264 = vadd.f32 %v263, %v201
  %v265 = vadd.f32 %v264, %v202
  %v266 = vadd.f32 %v265, %v203
  %v267 = vadd.f32 %v266, %v204
  %v268 = vadd.f32 %v267, %v205
  %v269 = vadd.f32 %v268, %v206
  %v270 = vadd.f32 %v269, %v207
  %v271 = vadd.f32 %v270, %v208
  %v272 = vadd.f32 %v271, %v209
  %v273 = vadd.f32 %v272, %v210
  %v274 = vadd.f32 %v273, %v211
  %v275 = vadd.f32 %v274, %v212
  %v276 = vadd.f32 %v275, %v213
  %v277 = vadd.f32 %v276, %v214
  %v278 = vadd.f32 %v277, %v215
  %v279 = vadd.f32 %v278, %v216
  %v280 = vrot.slane %v279, 4
  %v281 = vadd.f32 %v279, %v280
  %v282 = vrot.slane %v281, 2
  %v283 = vadd.f32 %v281, %v282
  %v284 = vrot.slane %v283, 1
  %v285 = vadd.f32 %v283, %v284
  %v286 = vadd.f32 %v152, %v285
  %287 = vst [vmem:[%s2] sm:$0x1] %v286
  // Predicated region
  $region10: #{basic_block_forward.7} parent=0 // pred_check
    _
  $region11: #{basic_block_forward.7} parent=0 // pred_check_branch
    %289 = sbr.rel (0) target = $region13
  $region12: #{basic_block_forward.7} parent=0 // pred_region
    _
  $region13: #{basic_block_forward.7} parent=0 // pred_fallthru
    _
  // Predicated region
  $region14: #{basic_block_forward.7} parent=0 // pred_check
    _
  $region15: #{basic_block_forward.7} parent=0 // pred_check_branch
    %291 = sbr.rel (0) target = $region17
  $region16: #{basic_block_forward.7} parent=0 // pred_region
    _
  $region17: #{basic_block_forward.7} parent=0 // pred_fallthru
    _
  // Predicated region
  $region18: #{basic_block_forward.7} parent=0 // pred_check
    _
  $region19: #{basic_block_forward.7} parent=0 // pred_check_branch
    %293 = sbr.rel (0) target = $region21
  $region20: #{basic_block_forward.7} parent=0 // pred_region
    _
  $region21: #{basic_block_forward.7} parent=0 // pred_fallthru
    _
  // Predicated region
  $region22: #{basic_block_forward.7} parent=0 // pred_check
    _
  $region23: #{basic_block_forward.7} parent=0 // pred_check_branch
    %295 = sbr.rel (0) target = $region25
  $region24: #{basic_block_forward.7} parent=0 // pred_region
    _
  $region25: #{basic_block_forward.7} parent=0 // pred_fallthru
    _

// kernel: basic_block_forward.8
$region0: #{basic_block_forward.8}
  #allocation0 [shape = 'u32[]', space=smem, size = 0x4, offset = 0x4, fixed_abs, tag = 'smem constant byte address 0x4 - core index']
  #allocation1 [shape = 'u32[144,128]{1,0:T(1,128)}', space=vmem, size = 0x12000, scoped, tag = 'internal scratch']
  %s0 = inlined_call_operand.vmem [shape: f32[512,128], index: 0, kind: input, shape index: {}]
  %s1 = inlined_call_operand.vmem [shape: f32[1,128], index: 1, kind: input, shape index: {}]
  %s2 = inlined_call_operand.vmem [shape: f32[1,128], index: 2, kind: input, shape index: {}]
  %s3 = inlined_call_operand.vmem [shape: bf16[512,128], index: 3, kind: output, shape index: {}]
  %s4 = sld [smem:[#allocation0]]
  $region22: #{basic_block_forward.8} parent=0
    _
  %s6 = ssub.s32 1, %s4
  %s7 = scalar_select 0, %s6, %s4
  // Predicated region
  $region2: #{basic_block_forward.8} parent=0 // pred_check
    _
  $region3: #{basic_block_forward.8} parent=0 // pred_check_branch
    %9 = sbr.rel (0) target = $region5
  $region4: #{basic_block_forward.8} parent=0 // pred_region
    _
  $region5: #{basic_block_forward.8} parent=0 // pred_fallthru
    _
  // Predicated region
  $region6: #{basic_block_forward.8} parent=0 // pred_check
    _
  $region7: #{basic_block_forward.8} parent=0 // pred_check_branch
    %11 = sbr.rel (0) target = $region9
  $region8: #{basic_block_forward.8} parent=0 // pred_region
    _
  $region9: #{basic_block_forward.8} parent=0 // pred_fallthru
    _
  // Predicated region
  $region10: #{basic_block_forward.8} parent=0 // pred_check
    _
  $region11: #{basic_block_forward.8} parent=0 // pred_check_branch
    %13 = sbr.rel (0) target = $region13
  $region12: #{basic_block_forward.8} parent=0 // pred_region
    _
  $region13: #{basic_block_forward.8} parent=0 // pred_fallthru
    _
  %v14 = vld [vmem:[%s0] sm:$0xff]
  %v15 = vld [vmem:[%s0 + $0x8] sm:$0xff]
  %v16 = vld [vmem:[%s0 + $0x10] sm:$0xff]
  %v17 = vld [vmem:[%s0 + $0x18] sm:$0xff]
  %v18 = vld [vmem:[%s0 + $0x20] sm:$0xff]
  %v19 = vld [vmem:[%s0 + $0x28] sm:$0xff]
  %v20 = vld [vmem:[%s0 + $0x30] sm:$0xff]
  %v21 = vld [vmem:[%s0 + $0x38] sm:$0xff]
  %v22 = vld [vmem:[%s0 + $0x40] sm:$0xff]
  %v23 = vld [vmem:[%s0 + $0x48] sm:$0xff]
  %v24 = vld [vmem:[%s0 + $0x50] sm:$0xff]
  %v25 = vld [vmem:[%s0 + $0x58] sm:$0xff]
  %v26 = vld [vmem:[%s0 + $0x60] sm:$0xff]
  %v27 = vld [vmem:[%s0 + $0x68] sm:$0xff]
  %v28 = vld [vmem:[%s0 + $0x70] sm:$0xff]
  %v29 = vld [vmem:[%s0 + $0x78] sm:$0xff]
  %v30 = vld [vmem:[%s0 + $0x80] sm:$0xff]
  %v31 = vld [vmem:[%s0 + $0x88] sm:$0xff]
  %v32 = vld [vmem:[%s0 + $0x90] sm:$0xff]
  %v33 = vld [vmem:[%s0 + $0x98] sm:$0xff]
  %v34 = vld [vmem:[%s0 + $0xa0] sm:$0xff]
  %v35 = vld [vmem:[%s0 + $0xa8] sm:$0xff]
  %v36 = vld [vmem:[%s0 + $0xb0] sm:$0xff]
  %v37 = vld [vmem:[%s0 + $0xb8] sm:$0xff]
  %v38 = vld [vmem:[%s0 + $0xc0] sm:$0xff]
  %v39 = vld [vmem:[%s0 + $0xc8] sm:$0xff]
  %v40 = vld [vmem:[%s0 + $0xd0] sm:$0xff]
  %v41 = vld [vmem:[%s0 + $0xd8] sm:$0xff]
  %v42 = vld [vmem:[%s0 + $0xe0] sm:$0xff]
  %v43 = vld [vmem:[%s0 + $0xe8] sm:$0xff]
  %v44 = vld [vmem:[%s0 + $0xf0] sm:$0xff]
  %v45 = vld [vmem:[%s0 + $0xf8] sm:$0xff]
  %v46 = vld [vmem:[%s0 + $0x100] sm:$0xff]
  %v47 = vld [vmem:[%s0 + $0x108] sm:$0xff]
  %v48 = vld [vmem:[%s0 + $0x110] sm:$0xff]
  %v49 = vld [vmem:[%s0 + $0x118] sm:$0xff]
  %v50 = vld [vmem:[%s0 + $0x120] sm:$0xff]
  %v51 = vld [vmem:[%s0 + $0x128] sm:$0xff]
  %v52 = vld [vmem:[%s0 + $0x130] sm:$0xff]
  %v53 = vld [vmem:[%s0 + $0x138] sm:$0xff]
  %v54 = vld [vmem:[%s0 + $0x140] sm:$0xff]
  %v55 = vld [vmem:[%s0 + $0x148] sm:$0xff]
  %v56 = vld [vmem:[%s0 + $0x150] sm:$0xff]
  %v57 = vld [vmem:[%s0 + $0x158] sm:$0xff]
  %v58 = vld [vmem:[%s0 + $0x160] sm:$0xff]
  %v59 = vld [vmem:[%s0 + $0x168] sm:$0xff]
  %v60 = vld [vmem:[%s0 + $0x170] sm:$0xff]
  %v61 = vld [vmem:[%s0 + $0x178] sm:$0xff]
  %v62 = vld [vmem:[%s0 + $0x180] sm:$0xff]
  %v63 = vld [vmem:[%s0 + $0x188] sm:$0xff]
  %v64 = vld [vmem:[%s0 + $0x190] sm:$0xff]
  %v65 = vld [vmem:[%s0 + $0x198] sm:$0xff]
  %v66 = vld [vmem:[%s0 + $0x1a0] sm:$0xff]
  %v67 = vld [vmem:[%s0 + $0x1a8] sm:$0xff]
  %v68 = vld [vmem:[%s0 + $0x1b0] sm:$0xff]
  %v69 = vld [vmem:[%s0 + $0x1b8] sm:$0xff]
  %v70 = vld [vmem:[%s0 + $0x1c0] sm:$0xff]
  %v71 = vld [vmem:[%s0 + $0x1c8] sm:$0xff]
  %v72 = vld [vmem:[%s0 + $0x1d0] sm:$0xff]
  %v73 = vld [vmem:[%s0 + $0x1d8] sm:$0xff]
  %v74 = vld [vmem:[%s0 + $0x1e0] sm:$0xff]
  %v75 = vld [vmem:[%s0 + $0x1e8] sm:$0xff]
  %v76 = vld [vmem:[%s0 + $0x1f0] sm:$0xff]
  %v77 = vld [vmem:[%s0 + $0x1f8] sm:$0xff]
  %v78 = vld [vmem:[%s1] sm:$0x1]
  %v80 = vlaneseq
  %v81 = vshrl.u32 %v80, 7
  %v82 = vsub.s32 0, %v81
  %v83 = vrot.slane %v78, %v82
  %v85 = vmul.f32 %v14, %v83
  %v86 = vmul.f32 %v15, %v83
  %v87 = vmul.f32 %v16, %v83
  %v88 = vmul.f32 %v17, %v83
  %v89 = vmul.f32 %v18, %v83
  %v90 = vmul.f32 %v19, %v83
  %v91 = vmul.f32 %v20, %v83
  %v92 = vmul.f32 %v21, %v83
  %v93 = vmul.f32 %v22, %v83
  %v94 = vmul.f32 %v23, %v83
  %v95 = vmul.f32 %v24, %v83
  %v96 = vmul.f32 %v25, %v83
  %v97 = vmul.f32 %v26, %v83
  %v98 = vmul.f32 %v27, %v83
  %v99 = vmul.f32 %v28, %v83
  %v100 = vmul.f32 %v29, %v83
  %v101 = vmul.f32 %v30, %v83
  %v102 = vmul.f32 %v31, %v83
  %v103 = vmul.f32 %v32, %v83
  %v104 = vmul.f32 %v33, %v83
  %v105 = vmul.f32 %v34, %v83
  %v106 = vmul.f32 %v35, %v83
  %v107 = vmul.f32 %v36, %v83
  %v108 = vmul.f32 %v37, %v83
  %v109 = vmul.f32 %v38, %v83
  %v110 = vmul.f32 %v39, %v83
  %v111 = vmul.f32 %v40, %v83
  %v112 = vmul.f32 %v41, %v83
  %v113 = vmul.f32 %v42, %v83
  %v114 = vmul.f32 %v43, %v83
  %v115 = vmul.f32 %v44, %v83
  %v116 = vmul.f32 %v45, %v83
  %v117 = vmul.f32 %v46, %v83
  %v118 = vmul.f32 %v47, %v83
  %v119 = vmul.f32 %v48, %v83
  %v120 = vmul.f32 %v49, %v83
  %v121 = vmul.f32 %v50, %v83
  %v122 = vmul.f32 %v51, %v83
  %v123 = vmul.f32 %v52, %v83
  %v124 = vmul.f32 %v53, %v83
  %v125 = vmul.f32 %v54, %v83
  %v126 = vmul.f32 %v55, %v83
  %v127 = vmul.f32 %v56, %v83
  %v128 = vmul.f32 %v57, %v83
  %v129 = vmul.f32 %v58, %v83
  %v130 = vmul.f32 %v59, %v83
  %v131 = vmul.f32 %v60, %v83
  %v132 = vmul.f32 %v61, %v83
  %v133 = vmul.f32 %v62, %v83
  %v134 = vmul.f32 %v63, %v83
  %v135 = vmul.f32 %v64, %v83
  %v136 = vmul.f32 %v65, %v83
  %v137 = vmul.f32 %v66, %v83
  %v138 = vmul.f32 %v67, %v83
  %v139 = vmul.f32 %v68, %v83
  %v140 = vmul.f32 %v69, %v83
  %v141 = vmul.f32 %v70, %v83
  %v142 = vmul.f32 %v71, %v83
  %v143 = vmul.f32 %v72, %v83
  %v144 = vmul.f32 %v73, %v83
  %v145 = vmul.f32 %v74, %v83
  %v146 = vmul.f32 %v75, %v83
  %v147 = vmul.f32 %v76, %v83
  %v148 = vmul.f32 %v77, %v83
  %v149 = vld [vmem:[%s2] sm:$0x1]
  %v151 = vlaneseq
  %v152 = vshrl.u32 %v151, 7
  %v153 = vsub.s32 0, %v152
  %v154 = vrot.slane %v149, %v153
  %v156 = vadd.f32 %v85, %v154
  %v157 = vadd.f32 %v86, %v154
  %v158 = vadd.f32 %v87, %v154
  %v159 = vadd.f32 %v88, %v154
  %v160 = vadd.f32 %v89, %v154
  %v161 = vadd.f32 %v90, %v154
  %v162 = vadd.f32 %v91, %v154
  %v163 = vadd.f32 %v92, %v154
  %v164 = vadd.f32 %v93, %v154
  %v165 = vadd.f32 %v94, %v154
  %v166 = vadd.f32 %v95, %v154
  %v167 = vadd.f32 %v96, %v154
  %v168 = vadd.f32 %v97, %v154
  %v169 = vadd.f32 %v98, %v154
  %v170 = vadd.f32 %v99, %v154
  %v171 = vadd.f32 %v100, %v154
  %v172 = vadd.f32 %v101, %v154
  %v173 = vadd.f32 %v102, %v154
  %v174 = vadd.f32 %v103, %v154
  %v175 = vadd.f32 %v104, %v154
  %v176 = vadd.f32 %v105, %v154
  %v177 = vadd.f32 %v106, %v154
  %v178 = vadd.f32 %v107, %v154
  %v179 = vadd.f32 %v108, %v154
  %v180 = vadd.f32 %v109, %v154
  %v181 = vadd.f32 %v110, %v154
  %v182 = vadd.f32 %v111, %v154
  %v183 = vadd.f32 %v112, %v154
  %v184 = vadd.f32 %v113, %v154
  %v185 = vadd.f32 %v114, %v154
  %v186 = vadd.f32 %v115, %v154
  %v187 = vadd.f32 %v116, %v154
  %v188 = vadd.f32 %v117, %v154
  %v189 = vadd.f32 %v118, %v154
  %v190 = vadd.f32 %v119, %v154
  %v191 = vadd.f32 %v120, %v154
  %v192 = vadd.f32 %v121, %v154
  %v193 = vadd.f32 %v122, %v154
  %v194 = vadd.f32 %v123, %v154
  %v195 = vadd.f32 %v124, %v154
  %v196 = vadd.f32 %v125, %v154
  %v197 = vadd.f32 %v126, %v154
  %v198 = vadd.f32 %v127, %v154
  %v199 = vadd.f32 %v128, %v154
  %v200 = vadd.f32 %v129, %v154
  %v201 = vadd.f32 %v130, %v154
  %v202 = vadd.f32 %v131, %v154
  %v203 = vadd.f32 %v132, %v154
  %v204 = vadd.f32 %v133, %v154
  %v205 = vadd.f32 %v134, %v154
  %v206 = vadd.f32 %v135, %v154
  %v207 = vadd.f32 %v136, %v154
  %v208 = vadd.f32 %v137, %v154
  %v209 = vadd.f32 %v138, %v154
  %v210 = vadd.f32 %v139, %v154
  %v211 = vadd.f32 %v140, %v154
  %v212 = vadd.f32 %v141, %v154
  %v213 = vadd.f32 %v142, %v154
  %v214 = vadd.f32 %v143, %v154
  %v215 = vadd.f32 %v144, %v154
  %v216 = vadd.f32 %v145, %v154
  %v217 = vadd.f32 %v146, %v154
  %v218 = vadd.f32 %v147, %v154
  %v219 = vadd.f32 %v148, %v154
  %vm220 = vcmp.ge.f32.partialorder %v156, 0.0
  %vm221 = vcmp.ge.f32.partialorder %v157, 0.0
  %vm222 = vcmp.ge.f32.partialorder %v158, 0.0
  %vm223 = vcmp.ge.f32.partialorder %v159, 0.0
  %vm224 = vcmp.ge.f32.partialorder %v160, 0.0
  %vm225 = vcmp.ge.f32.partialorder %v161, 0.0
  %vm226 = vcmp.ge.f32.partialorder %v162, 0.0
  %vm227 = vcmp.ge.f32.partialorder %v163, 0.0
  %vm228 = vcmp.ge.f32.partialorder %v164, 0.0
  %vm229 = vcmp.ge.f32.partialorder %v165, 0.0
  %vm230 = vcmp.ge.f32.partialorder %v166, 0.0
  %vm231 = vcmp.ge.f32.partialorder %v167, 0.0
  %vm232 = vcmp.ge.f32.partialorder %v168, 0.0
  %vm233 = vcmp.ge.f32.partialorder %v169, 0.0
  %vm234 = vcmp.ge.f32.partialorder %v170, 0.0
  %vm235 = vcmp.ge.f32.partialorder %v171, 0.0
  %vm236 = vcmp.ge.f32.partialorder %v172, 0.0
  %vm237 = vcmp.ge.f32.partialorder %v173, 0.0
  %vm238 = vcmp.ge.f32.partialorder %v174, 0.0
  %vm239 = vcmp.ge.f32.partialorder %v175, 0.0
  %vm240 = vcmp.ge.f32.partialorder %v176, 0.0
  %vm241 = vcmp.ge.f32.partialorder %v177, 0.0
  %vm242 = vcmp.ge.f32.partialorder %v178, 0.0
  %vm243 = vcmp.ge.f32.partialorder %v179, 0.0
  %vm244 = vcmp.ge.f32.partialorder %v180, 0.0
  %vm245 = vcmp.ge.f32.partialorder %v181, 0.0
  %vm246 = vcmp.ge.f32.partialorder %v182, 0.0
  %vm247 = vcmp.ge.f32.partialorder %v183, 0.0
  %vm248 = vcmp.ge.f32.partialorder %v184, 0.0
  %vm249 = vcmp.ge.f32.partialorder %v185, 0.0
  %vm250 = vcmp.ge.f32.partialorder %v186, 0.0
  %vm251 = vcmp.ge.f32.partialorder %v187, 0.0
  %vm252 = vcmp.ge.f32.partialorder %v188, 0.0
  %vm253 = vcmp.ge.f32.partialorder %v189, 0.0
  %vm254 = vcmp.ge.f32.partialorder %v190, 0.0
  %vm255 = vcmp.ge.f32.partialorder %v191, 0.0
  %vm256 = vcmp.ge.f32.partialorder %v192, 0.0
  %vm257 = vcmp.ge.f32.partialorder %v193, 0.0
  %vm258 = vcmp.ge.f32.partialorder %v194, 0.0
  %vm259 = vcmp.ge.f32.partialorder %v195, 0.0
  %vm260 = vcmp.ge.f32.partialorder %v196, 0.0
  %vm261 = vcmp.ge.f32.partialorder %v197, 0.0
  %vm262 = vcmp.ge.f32.partialorder %v198, 0.0
  %vm263 = vcmp.ge.f32.partialorder %v199, 0.0
  %vm264 = vcmp.ge.f32.partialorder %v200, 0.0
  %vm265 = vcmp.ge.f32.partialorder %v201, 0.0
  %vm266 = vcmp.ge.f32.partialorder %v202, 0.0
  %vm267 = vcmp.ge.f32.partialorder %v203, 0.0
  %vm268 = vcmp.ge.f32.partialorder %v204, 0.0
  %vm269 = vcmp.ge.f32.partialorder %v205, 0.0
  %vm270 = vcmp.ge.f32.partialorder %v206, 0.0
  %vm271 = vcmp.ge.f32.partialorder %v207, 0.0
  %vm272 = vcmp.ge.f32.partialorder %v208, 0.0
  %vm273 = vcmp.ge.f32.partialorder %v209, 0.0
  %vm274 = vcmp.ge.f32.partialorder %v210, 0.0
  %vm275 = vcmp.ge.f32.partialorder %v211, 0.0
  %vm276 = vcmp.ge.f32.partialorder %v212, 0.0
  %vm277 = vcmp.ge.f32.partialorder %v213, 0.0
  %vm278 = vcmp.ge.f32.partialorder %v214, 0.0
  %vm279 = vcmp.ge.f32.partialorder %v215, 0.0
  %vm280 = vcmp.ge.f32.partialorder %v216, 0.0
  %vm281 = vcmp.ge.f32.partialorder %v217, 0.0
  %vm282 = vcmp.ge.f32.partialorder %v218, 0.0
  %vm283 = vcmp.ge.f32.partialorder %v219, 0.0
  %v284 = vmul.f32 %v156, 0.1
  %v285 = vmul.f32 %v157, 0.1
  %v286 = vmul.f32 %v158, 0.1
  %v287 = vmul.f32 %v159, 0.1
  %v288 = vmul.f32 %v160, 0.1
  %v289 = vmul.f32 %v161, 0.1
  %v290 = vmul.f32 %v162, 0.1
  %v291 = vmul.f32 %v163, 0.1
  %v292 = vmul.f32 %v164, 0.1
  %v293 = vmul.f32 %v165, 0.1
  %v294 = vmul.f32 %v166, 0.1
  %v295 = vmul.f32 %v167, 0.1
  %v296 = vmul.f32 %v168, 0.1
  %v297 = vmul.f32 %v169, 0.1
  %v298 = vmul.f32 %v170, 0.1
  %v299 = vmul.f32 %v171, 0.1
  %v300 = vmul.f32 %v172, 0.1
  %v301 = vmul.f32 %v173, 0.1
  %v302 = vmul.f32 %v174, 0.1
  %v303 = vmul.f32 %v175, 0.1
  %v304 = vmul.f32 %v176, 0.1
  %v305 = vmul.f32 %v177, 0.1
  %v306 = vmul.f32 %v178, 0.1
  %v307 = vmul.f32 %v179, 0.1
  %v308 = vmul.f32 %v180, 0.1
  %v309 = vmul.f32 %v181, 0.1
  %v310 = vmul.f32 %v182, 0.1
  %v311 = vmul.f32 %v183, 0.1
  %v312 = vmul.f32 %v184, 0.1
  %v313 = vmul.f32 %v185, 0.1
  %v314 = vmul.f32 %v186, 0.1
  %v315 = vmul.f32 %v187, 0.1
  %v316 = vmul.f32 %v188, 0.1
  %v317 = vmul.f32 %v189, 0.1
  %v318 = vmul.f32 %v190, 0.1
  %v319 = vmul.f32 %v191, 0.1
  %v320 = vmul.f32 %v192, 0.1
  %v321 = vmul.f32 %v193, 0.1
  %v322 = vmul.f32 %v194, 0.1
  %v323 = vmul.f32 %v195, 0.1
  %v324 = vmul.f32 %v196, 0.1
  %v325 = vmul.f32 %v197, 0.1
  %v326 = vmul.f32 %v198, 0.1
  %v327 = vmul.f32 %v199, 0.1
  %v328 = vmul.f32 %v200, 0.1
  %v329 = vmul.f32 %v201, 0.1
  %v330 = vmul.f32 %v202, 0.1
  %v331 = vmul.f32 %v203, 0.1
  %v332 = vmul.f32 %v204, 0.1
  %v333 = vmul.f32 %v205, 0.1
  %v334 = vmul.f32 %v206, 0.1
  %v335 = vmul.f32 %v207, 0.1
  %v336 = vmul.f32 %v208, 0.1
  %v337 = vmul.f32 %v209, 0.1
  %v338 = vmul.f32 %v210, 0.1
  %v339 = vmul.f32 %v211, 0.1
  %v340 = vmul.f32 %v212, 0.1
  %v341 = vmul.f32 %v213, 0.1
  %v342 = vmul.f32 %v214, 0.1
  %v343 = vmul.f32 %v215, 0.1
  %v344 = vmul.f32 %v216, 0.1
  %v345 = vmul.f32 %v217, 0.1
  %v346 = vmul.f32 %v218, 0.1
  %v347 = vmul.f32 %v219, 0.1
  %v348 = vsel %vm220, %v156, %v284
  %v349 = vsel %vm221, %v157, %v285
  %v350 = vsel %vm222, %v158, %v286
  %v351 = vsel %vm223, %v159, %v287
  %v352 = vsel %vm224, %v160, %v288
  %v353 = vsel %vm225, %v161, %v289
  %v354 = vsel %vm226, %v162, %v290
  %v355 = vsel %vm227, %v163, %v291
  %v356 = vsel %vm228, %v164, %v292
  %v357 = vsel %vm229, %v165, %v293
  %v358 = vsel %vm230, %v166, %v294
  %v359 = vsel %vm231, %v167, %v295
  %v360 = vsel %vm232, %v168, %v296
  %v361 = vsel %vm233, %v169, %v297
  %v362 = vsel %vm234, %v170, %v298
  %v363 = vsel %vm235, %v171, %v299
  %v364 = vsel %vm236, %v172, %v300
  %v365 = vsel %vm237, %v173, %v301
  %v366 = vsel %vm238, %v174, %v302
  %v367 = vsel %vm239, %v175, %v303
  %v368 = vsel %vm240, %v176, %v304
  %v369 = vsel %vm241, %v177, %v305
  %v370 = vsel %vm242, %v178, %v306
  %v371 = vsel %vm243, %v179, %v307
  %v372 = vsel %vm244, %v180, %v308
  %v373 = vsel %vm245, %v181, %v309
  %v374 = vsel %vm246, %v182, %v310
  %v375 = vsel %vm247, %v183, %v311
  %v376 = vsel %vm248, %v184, %v312
  %v377 = vsel %vm249, %v185, %v313
  %v378 = vsel %vm250, %v186, %v314
  %v379 = vsel %vm251, %v187, %v315
  %v380 = vsel %vm252, %v188, %v316
  %v381 = vsel %vm253, %v189, %v317
  %v382 = vsel %vm254, %v190, %v318
  %v383 = vsel %vm255, %v191, %v319
  %v384 = vsel %vm256, %v192, %v320
  %v385 = vsel %vm257, %v193, %v321
  %v386 = vsel %vm258, %v194, %v322
  %v387 = vsel %vm259, %v195, %v323
  %v388 = vsel %vm260, %v196, %v324
  %v389 = vsel %vm261, %v197, %v325
  %v390 = vsel %vm262, %v198, %v326
  %v391 = vsel %vm263, %v199, %v327
  %v392 = vsel %vm264, %v200, %v328
  %v393 = vsel %vm265, %v201, %v329
  %v394 = vsel %vm266, %v202, %v330
  %v395 = vsel %vm267, %v203, %v331
  %v396 = vsel %vm268, %v204, %v332
  %v397 = vsel %vm269, %v205, %v333
  %v398 = vsel %vm270, %v206, %v334
  %v399 = vsel %vm271, %v207, %v335
  %v400 = vsel %vm272, %v208, %v336
  %v401 = vsel %vm273, %v209, %v337
  %v402 = vsel %vm274, %v210, %v338
  %v403 = vsel %vm275, %v211, %v339
  %v404 = vsel %vm276, %v212, %v340
  %v405 = vsel %vm277, %v213, %v341
  %v406 = vsel %vm278, %v214, %v342
  %v407 = vsel %vm279, %v215, %v343
  %v408 = vsel %vm280, %v216, %v344
  %v409 = vsel %vm281, %v217, %v345
  %v410 = vsel %vm282, %v218, %v346
  %v411 = vsel %vm283, %v219, %v347
  %v412 = vpack.c.bf16 %v349, %v348
  %v413 = vpack.c.bf16 %v351, %v350
  %v414 = vpack.c.bf16 %v353, %v352
  %v415 = vpack.c.bf16 %v355, %v354
  %v416 = vpack.c.bf16 %v357, %v356
  %v417 = vpack.c.bf16 %v359, %v358
  %v418 = vpack.c.bf16 %v361, %v360
  %v419 = vpack.c.bf16 %v363, %v362
  %v420 = vpack.c.bf16 %v365, %v364
  %v421 = vpack.c.bf16 %v367, %v366
  %v422 = vpack.c.bf16 %v369, %v368
  %v423 = vpack.c.bf16 %v371, %v370
  %v424 = vpack.c.bf16 %v373, %v372
  %v425 = vpack.c.bf16 %v375, %v374
  %v426 = vpack.c.bf16 %v377, %v376
  %v427 = vpack.c.bf16 %v379, %v378
  %v428 = vpack.c.bf16 %v381, %v380
  %v429 = vpack.c.bf16 %v383, %v382
  %v430 = vpack.c.bf16 %v385, %v384
  %v431 = vpack.c.bf16 %v387, %v386
  %v432 = vpack.c.bf16 %v389, %v388
  %v433 = vpack.c.bf16 %v391, %v390
  %v434 = vpack.c.bf16 %v393, %v392
  %v435 = vpack.c.bf16 %v395, %v394
  %v436 = vpack.c.bf16 %v397, %v396
  %v437 = vpack.c.bf16 %v399, %v398
  %v438 = vpack.c.bf16 %v401, %v400
  %v439 = vpack.c.bf16 %v403, %v402
  %v440 = vpack.c.bf16 %v405, %v404
  %v441 = vpack.c.bf16 %v407, %v406
  %v442 = vpack.c.bf16 %v409, %v408
  %v443 = vpack.c.bf16 %v411, %v410
  %v476 = vunpack.c.l.b16 %v412
  %v477 = vunpack.c.h.b16 %v412
  %v478 = vunpack.c.l.b16 %v413
  %v479 = vunpack.c.h.b16 %v413
  %v480 = vunpack.c.l.b16 %v414
  %v481 = vunpack.c.h.b16 %v414
  %v482 = vunpack.c.l.b16 %v415
  %v483 = vunpack.c.h.b16 %v415
  %v484 = vunpack.c.l.b16 %v416
  %v485 = vunpack.c.h.b16 %v416
  %v486 = vunpack.c.l.b16 %v417
  %v487 = vunpack.c.h.b16 %v417
  %v488 = vunpack.c.l.b16 %v418
  %v489 = vunpack.c.h.b16 %v418
  %v490 = vunpack.c.l.b16 %v419
  %v491 = vunpack.c.h.b16 %v419
  %v492 = vunpack.c.l.b16 %v420
  %v493 = vunpack.c.h.b16 %v420
  %v494 = vunpack.c.l.b16 %v421
  %v495 = vunpack.c.h.b16 %v421
  %v496 = vunpack.c.l.b16 %v422
  %v497 = vunpack.c.h.b16 %v422
  %v498 = vunpack.c.l.b16 %v423
  %v499 = vunpack.c.h.b16 %v423
  %v500 = vunpack.c.l.b16 %v424
  %v501 = vunpack.c.h.b16 %v424
  %v502 = vunpack.c.l.b16 %v425
  %v503 = vunpack.c.h.b16 %v425
  %v504 = vunpack.c.l.b16 %v426
  %v505 = vunpack.c.h.b16 %v426
  %v506 = vunpack.c.l.b16 %v427
  %v507 = vunpack.c.h.b16 %v427
  %v508 = vunpack.c.l.b16 %v428
  %v509 = vunpack.c.h.b16 %v428
  %v510 = vunpack.c.l.b16 %v429
  %v511 = vunpack.c.h.b16 %v429
  %v512 = vunpack.c.l.b16 %v430
  %v513 = vunpack.c.h.b16 %v430
  %v514 = vunpack.c.l.b16 %v431
  %v515 = vunpack.c.h.b16 %v431
  %v516 = vunpack.c.l.b16 %v432
  %v517 = vunpack.c.h.b16 %v432
  %v518 = vunpack.c.l.b16 %v433
  %v519 = vunpack.c.h.b16 %v433
  %v520 = vunpack.c.l.b16 %v434
  %v521 = vunpack.c.h.b16 %v434
  %v522 = vunpack.c.l.b16 %v435
  %v523 = vunpack.c.h.b16 %v435
  %v524 = vunpack.c.l.b16 %v436
  %v525 = vunpack.c.h.b16 %v436
  %v526 = vunpack.c.l.b16 %v437
  %v527 = vunpack.c.h.b16 %v437
  %v528 = vunpack.c.l.b16 %v438
  %v529 = vunpack.c.h.b16 %v438
  %v530 = vunpack.c.l.b16 %v439
  %v531 = vunpack.c.h.b16 %v439
  %v532 = vunpack.c.l.b16 %v440
  %v533 = vunpack.c.h.b16 %v440
  %v534 = vunpack.c.l.b16 %v441
  %v535 = vunpack.c.h.b16 %v441
  %v536 = vunpack.c.l.b16 %v442
  %v537 = vunpack.c.h.b16 %v442
  %v538 = vunpack.c.l.b16 %v443
  %v539 = vunpack.c.h.b16 %v443
  %v540 = vpack.c.b16 %v476, %v476
  %v541 = vpack.c.b16 %v477, %v477
  %v542 = vpack.c.b16 %v478, %v478
  %v543 = vpack.c.b16 %v479, %v479
  %v544 = vpack.c.b16 %v480, %v480
  %v545 = vpack.c.b16 %v481, %v481
  %v546 = vpack.c.b16 %v482, %v482
  %v547 = vpack.c.b16 %v483, %v483
  %v548 = vpack.c.b16 %v484, %v484
  %v549 = vpack.c.b16 %v485, %v485
  %v550 = vpack.c.b16 %v486, %v486
  %v551 = vpack.c.b16 %v487, %v487
  %v552 = vpack.c.b16 %v488, %v488
  %v553 = vpack.c.b16 %v489, %v489
  %v554 = vpack.c.b16 %v490, %v490
  %v555 = vpack.c.b16 %v491, %v491
  %v556 = vpack.c.b16 %v492, %v492
  %v557 = vpack.c.b16 %v493, %v493
  %v558 = vpack.c.b16 %v494, %v494
  %v559 = vpack.c.b16 %v495, %v495
  %v560 = vpack.c.b16 %v496, %v496
  %v561 = vpack.c.b16 %v497, %v497
  %v562 = vpack.c.b16 %v498, %v498
  %v563 = vpack.c.b16 %v499, %v499
  %v564 = vpack.c.b16 %v500, %v500
  %v565 = vpack.c.b16 %v501, %v501
  %v566 = vpack.c.b16 %v502, %v502
  %v567 = vpack.c.b16 %v503, %v503
  %v568 = vpack.c.b16 %v504, %v504
  %v569 = vpack.c.b16 %v505, %v505
  %v570 = vpack.c.b16 %v506, %v506
  %v571 = vpack.c.b16 %v507, %v507
  %v572 = vpack.c.b16 %v508, %v508
  %v573 = vpack.c.b16 %v509, %v509
  %v574 = vpack.c.b16 %v510, %v510
  %v575 = vpack.c.b16 %v511, %v511
  %v576 = vpack.c.b16 %v512, %v512
  %v577 = vpack.c.b16 %v513, %v513
  %v578 = vpack.c.b16 %v514, %v514
  %v579 = vpack.c.b16 %v515, %v515
  %v580 = vpack.c.b16 %v516, %v516
  %v581 = vpack.c.b16 %v517, %v517
  %v582 = vpack.c.b16 %v518, %v518
  %v583 = vpack.c.b16 %v519, %v519
  %v584 = vpack.c.b16 %v520, %v520
  %v585 = vpack.c.b16 %v521, %v521
  %v586 = vpack.c.b16 %v522, %v522
  %v587 = vpack.c.b16 %v523, %v523
  %v588 = vpack.c.b16 %v524, %v524
  %v589 = vpack.c.b16 %v525, %v525
  %v590 = vpack.c.b16 %v526, %v526
  %v591 = vpack.c.b16 %v527, %v527
  %v592 = vpack.c.b16 %v528, %v528
  %v593 = vpack.c.b16 %v529, %v529
  %v594 = vpack.c.b16 %v530, %v530
  %v595 = vpack.c.b16 %v531, %v531
  %v596 = vpack.c.b16 %v532, %v532
  %v597 = vpack.c.b16 %v533, %v533
  %v598 = vpack.c.b16 %v534, %v534
  %v599 = vpack.c.b16 %v535, %v535
  %v600 = vpack.c.b16 %v536, %v536
  %v601 = vpack.c.b16 %v537, %v537
  %v602 = vpack.c.b16 %v538, %v538
  %v603 = vpack.c.b16 %v539, %v539
  %668 = vst [vmem:[%s3] sm:$0xf] %v540
  %669 = vst [vmem:[%s3 + $0x4] sm:$0xf] %v541
  %670 = vst [vmem:[%s3 + $0x8] sm:$0xf] %v542
  %671 = vst [vmem:[%s3 + $0xc] sm:$0xf] %v543
  %672 = vst [vmem:[%s3 + $0x10] sm:$0xf] %v544
  %673 = vst [vmem:[%s3 + $0x14] sm:$0xf] %v545
  %674 = vst [vmem:[%s3 + $0x18] sm:$0xf] %v546
  %675 = vst [vmem:[%s3 + $0x1c] sm:$0xf] %v547
  %676 = vst [vmem:[%s3 + $0x20] sm:$0xf] %v548
  %677 = vst [vmem:[%s3 + $0x24] sm:$0xf] %v549
  %678 = vst [vmem:[%s3 + $0x28] sm:$0xf] %v550
  %679 = vst [vmem:[%s3 + $0x2c] sm:$0xf] %v551
  %680 = vst [vmem:[%s3 + $0x30] sm:$0xf] %v552
  %681 = vst [vmem:[%s3 + $0x34] sm:$0xf] %v553
  %682 = vst [vmem:[%s3 + $0x38] sm:$0xf] %v554
  %683 = vst [vmem:[%s3 + $0x3c] sm:$0xf] %v555
  %684 = vst [vmem:[%s3 + $0x40] sm:$0xf] %v556
  %685 = vst [vmem:[%s3 + $0x44] sm:$0xf] %v557
  %686 = vst [vmem:[%s3 + $0x48] sm:$0xf] %v558
  %687 = vst [vmem:[%s3 + $0x4c] sm:$0xf] %v559
  %688 = vst [vmem:[%s3 + $0x50] sm:$0xf] %v560
  %689 = vst [vmem:[%s3 + $0x54] sm:$0xf] %v561
  %690 = vst [vmem:[%s3 + $0x58] sm:$0xf] %v562
  %691 = vst [vmem:[%s3 + $0x5c] sm:$0xf] %v563
  %692 = vst [vmem:[%s3 + $0x60] sm:$0xf] %v564
  %693 = vst [vmem:[%s3 + $0x64] sm:$0xf] %v565
  %694 = vst [vmem:[%s3 + $0x68] sm:$0xf] %v566
  %695 = vst [vmem:[%s3 + $0x6c] sm:$0xf] %v567
  %696 = vst [vmem:[%s3 + $0x70] sm:$0xf] %v568
  %697 = vst [vmem:[%s3 + $0x74] sm:$0xf] %v569
  %698 = vst [vmem:[%s3 + $0x78] sm:$0xf] %v570
  %699 = vst [vmem:[%s3 + $0x7c] sm:$0xf] %v571
  %700 = vst [vmem:[%s3 + $0x80] sm:$0xf] %v572
  %701 = vst [vmem:[%s3 + $0x84] sm:$0xf] %v573
  %702 = vst [vmem:[%s3 + $0x88] sm:$0xf] %v574
  %703 = vst [vmem:[%s3 + $0x8c] sm:$0xf] %v575
  %704 = vst [vmem:[%s3 + $0x90] sm:$0xf] %v576
  %705 = vst [vmem:[%s3 + $0x94] sm:$0xf] %v577
  %706 = vst [vmem:[%s3 + $0x98] sm:$0xf] %v578
  %707 = vst [vmem:[%s3 + $0x9c] sm:$0xf] %v579
  %708 = vst [vmem:[%s3 + $0xa0] sm:$0xf] %v580
  %709 = vst [vmem:[%s3 + $0xa4] sm:$0xf] %v581
  %710 = vst [vmem:[%s3 + $0xa8] sm:$0xf] %v582
  %711 = vst [vmem:[%s3 + $0xac] sm:$0xf] %v583
  %712 = vst [vmem:[%s3 + $0xb0] sm:$0xf] %v584
  %713 = vst [vmem:[%s3 + $0xb4] sm:$0xf] %v585
  %714 = vst [vmem:[%s3 + $0xb8] sm:$0xf] %v586
  %715 = vst [vmem:[%s3 + $0xbc] sm:$0xf] %v587
  %716 = vst [vmem:[%s3 + $0xc0] sm:$0xf] %v588
  %717 = vst [vmem:[%s3 + $0xc4] sm:$0xf] %v589
  %718 = vst [vmem:[%s3 + $0xc8] sm:$0xf] %v590
  %719 = vst [vmem:[%s3 + $0xcc] sm:$0xf] %v591
  %720 = vst [vmem:[%s3 + $0xd0] sm:$0xf] %v592
  %721 = vst [vmem:[%s3 + $0xd4] sm:$0xf] %v593
  %722 = vst [vmem:[%s3 + $0xd8] sm:$0xf] %v594
  %723 = vst [vmem:[%s3 + $0xdc] sm:$0xf] %v595
  %724 = vst [vmem:[%s3 + $0xe0] sm:$0xf] %v596
  %725 = vst [vmem:[%s3 + $0xe4] sm:$0xf] %v597
  %726 = vst [vmem:[%s3 + $0xe8] sm:$0xf] %v598
  %727 = vst [vmem:[%s3 + $0xec] sm:$0xf] %v599
  %728 = vst [vmem:[%s3 + $0xf0] sm:$0xf] %v600
  %729 = vst [vmem:[%s3 + $0xf4] sm:$0xf] %v601
  %730 = vst [vmem:[%s3 + $0xf8] sm:$0xf] %v602
  %731 = vst [vmem:[%s3 + $0xfc] sm:$0xf] %v603
  // Predicated region
  $region14: #{basic_block_forward.8} parent=0 // pred_check
    _
  $region15: #{basic_block_forward.8} parent=0 // pred_check_branch
    %733 = sbr.rel (0) target = $region17
  $region16: #{basic_block_forward.8} parent=0 // pred_region
    _
  $region17: #{basic_block_forward.8} parent=0 // pred_fallthru
    _
  // Predicated region
  $region18: #{basic_block_forward.8} parent=0 // pred_check
    _
  $region19: #{basic_block_forward.8} parent=0 // pred_check_branch
    %735 = sbr.rel (0) target = $region21
  $region20: #{basic_block_forward.8} parent=0 // pred_region
    _
  $region21: #{basic_block_forward.8} parent=0 // pred_fallthru
    _

// kernel: basic_block_forward.9
$region0: #{basic_block_forward.9}
  #allocation0 [shape = 'u32[]', space=smem, size = 0x4, offset = 0x4, fixed_abs, tag = 'smem constant byte address 0x4 - core index']
  #allocation1 [shape = 'u32[144,128]{1,0:T(1,128)}', space=vmem, size = 0x12000, scoped, tag = 'internal scratch']
  #allocation2 [shape = 'f32[512,128]{1,0:T(8,128)}', space=vmem, size = 0x40000, scoped, tag = 'scratch operand']
  %s0 = inlined_call_operand.vmem [shape: bf16[512,128], index: 0, kind: input, shape index: {}]
  %s1 = inlined_call_operand.vmem [shape: bf16[128,128], index: 1, kind: input, shape index: {}]
  %s2 = inlined_call_operand.vmem [shape: f32[512,128], index: 2, kind: output, shape index: {}]
  %s3 = sld [smem:[#allocation0]]
  $region26: #{basic_block_forward.9} parent=0
    _
  %s5 = ssub.s32 1, %s3
  %s6 = scalar_select 0, %s5, %s3
  // Predicated region
  $region2: #{basic_block_forward.9} parent=0 // pred_check
    _
  $region3: #{basic_block_forward.9} parent=0 // pred_check_branch
    %8 = sbr.rel (0) target = $region5
  $region4: #{basic_block_forward.9} parent=0 // pred_region
    _
  $region5: #{basic_block_forward.9} parent=0 // pred_fallthru
    _
  // Predicated region
  $region6: #{basic_block_forward.9} parent=0 // pred_check
    _
  $region7: #{basic_block_forward.9} parent=0 // pred_check_branch
    %10 = sbr.rel (0) target = $region9
  $region8: #{basic_block_forward.9} parent=0 // pred_region
    _
  $region9: #{basic_block_forward.9} parent=0 // pred_fallthru
    _
  %p12 = scmp.eq.s32.totalorder 0, 0
  // Predicated region
  $region10: #{basic_block_forward.9} parent=0 // pred_check
    %p13 = pneg %p12
  $region11: #{basic_block_forward.9} parent=0 // pred_check_branch
    %15 = sbr.rel (%p13) target = $region13
  $region12: #{basic_block_forward.9} parent=0 // pred_region
    %16 = vst [vmem:[#allocation2] sm:$0xff] 0.0
    %17 = vst [vmem:[#allocation2 + $0x8] sm:$0xff] 0.0
    %18 = vst [vmem:[#allocation2 + $0x10] sm:$0xff] 0.0
    %19 = vst [vmem:[#allocation2 + $0x18] sm:$0xff] 0.0
    %20 = vst [vmem:[#allocation2 + $0x20] sm:$0xff] 0.0
    %21 = vst [vmem:[#allocation2 + $0x28] sm:$0xff] 0.0
    %22 = vst [vmem:[#allocation2 + $0x30] sm:$0xff] 0.0
    %23 = vst [vmem:[#allocation2 + $0x38] sm:$0xff] 0.0
    %24 = vst [vmem:[#allocation2 + $0x40] sm:$0xff] 0.0
    %25 = vst [vmem:[#allocation2 + $0x48] sm:$0xff] 0.0
    %26 = vst [vmem:[#allocation2 + $0x50] sm:$0xff] 0.0
    %27 = vst [vmem:[#allocation2 + $0x58] sm:$0xff] 0.0
    %28 = vst [vmem:[#allocation2 + $0x60] sm:$0xff] 0.0
    %29 = vst [vmem:[#allocation2 + $0x68] sm:$0xff] 0.0
    %30 = vst [vmem:[#allocation2 + $0x70] sm:$0xff] 0.0
    %31 = vst [vmem:[#allocation2 + $0x78] sm:$0xff] 0.0
    %32 = vst [vmem:[#allocation2 + $0x80] sm:$0xff] 0.0
    %33 = vst [vmem:[#allocation2 + $0x88] sm:$0xff] 0.0
    %34 = vst [vmem:[#allocation2 + $0x90] sm:$0xff] 0.0
    %35 = vst [vmem:[#allocation2 + $0x98] sm:$0xff] 0.0
    %36 = vst [vmem:[#allocation2 + $0xa0] sm:$0xff] 0.0
    %37 = vst [vmem:[#allocation2 + $0xa8] sm:$0xff] 0.0
    %38 = vst [vmem:[#allocation2 + $0xb0] sm:$0xff] 0.0
    %39 = vst [vmem:[#allocation2 + $0xb8] sm:$0xff] 0.0
    %40 = vst [vmem:[#allocation2 + $0xc0] sm:$0xff] 0.0
    %41 = vst [vmem:[#allocation2 + $0xc8] sm:$0xff] 0.0
    %42 = vst [vmem:[#allocation2 + $0xd0] sm:$0xff] 0.0
    %43 = vst [vmem:[#allocation2 + $0xd8] sm:$0xff] 0.0
    %44 = vst [vmem:[#allocation2 + $0xe0] sm:$0xff] 0.0
    %45 = vst [vmem:[#allocation2 + $0xe8] sm:$0xff] 0.0
    %46 = vst [vmem:[#allocation2 + $0xf0] sm:$0xff] 0.0
    %47 = vst [vmem:[#allocation2 + $0xf8] sm:$0xff] 0.0
    %48 = vst [vmem:[#allocation2 + $0x100] sm:$0xff] 0.0
    %49 = vst [vmem:[#allocation2 + $0x108] sm:$0xff] 0.0
    %50 = vst [vmem:[#allocation2 + $0x110] sm:$0xff] 0.0
    %51 = vst [vmem:[#allocation2 + $0x118] sm:$0xff] 0.0
    %52 = vst [vmem:[#allocation2 + $0x120] sm:$0xff] 0.0
    %53 = vst [vmem:[#allocation2 + $0x128] sm:$0xff] 0.0
    %54 = vst [vmem:[#allocation2 + $0x130] sm:$0xff] 0.0
    %55 = vst [vmem:[#allocation2 + $0x138] sm:$0xff] 0.0
    %56 = vst [vmem:[#allocation2 + $0x140] sm:$0xff] 0.0
    %57 = vst [vmem:[#allocation2 + $0x148] sm:$0xff] 0.0
    %58 = vst [vmem:[#allocation2 + $0x150] sm:$0xff] 0.0
    %59 = vst [vmem:[#allocation2 + $0x158] sm:$0xff] 0.0
    %60 = vst [vmem:[#allocation2 + $0x160] sm:$0xff] 0.0
    %61 = vst [vmem:[#allocation2 + $0x168] sm:$0xff] 0.0
    %62 = vst [vmem:[#allocation2 + $0x170] sm:$0xff] 0.0
    %63 = vst [vmem:[#allocation2 + $0x178] sm:$0xff] 0.0
    %64 = vst [vmem:[#allocation2 + $0x180] sm:$0xff] 0.0
    %65 = vst [vmem:[#allocation2 + $0x188] sm:$0xff] 0.0
    %66 = vst [vmem:[#allocation2 + $0x190] sm:$0xff] 0.0
    %67 = vst [vmem:[#allocation2 + $0x198] sm:$0xff] 0.0
    %68 = vst [vmem:[#allocation2 + $0x1a0] sm:$0xff] 0.0
    %69 = vst [vmem:[#allocation2 + $0x1a8] sm:$0xff] 0.0
    %70 = vst [vmem:[#allocation2 + $0x1b0] sm:$0xff] 0.0
    %71 = vst [vmem:[#allocation2 + $0x1b8] sm:$0xff] 0.0
    %72 = vst [vmem:[#allocation2 + $0x1c0] sm:$0xff] 0.0
    %73 = vst [vmem:[#allocation2 + $0x1c8] sm:$0xff] 0.0
    %74 = vst [vmem:[#allocation2 + $0x1d0] sm:$0xff] 0.0
    %75 = vst [vmem:[#allocation2 + $0x1d8] sm:$0xff] 0.0
    %76 = vst [vmem:[#allocation2 + $0x1e0] sm:$0xff] 0.0
    %77 = vst [vmem:[#allocation2 + $0x1e8] sm:$0xff] 0.0
    %78 = vst [vmem:[#allocation2 + $0x1f0] sm:$0xff] 0.0
    %79 = vst [vmem:[#allocation2 + $0x1f8] sm:$0xff] 0.0
  $region13: #{basic_block_forward.9} parent=0 // pred_fallthru
    _
  %v80 = vld [vmem:[#allocation2] sm:$0xff]
  %v81 = vld [vmem:[#allocation2 + $0x8] sm:$0xff]
  %v82 = vld [vmem:[#allocation2 + $0x10] sm:$0xff]
  %v83 = vld [vmem:[#allocation2 + $0x18] sm:$0xff]
  %v84 = vld [vmem:[#allocation2 + $0x20] sm:$0xff]
  %v85 = vld [vmem:[#allocation2 + $0x28] sm:$0xff]
  %v86 = vld [vmem:[#allocation2 + $0x30] sm:$0xff]
  %v87 = vld [vmem:[#allocation2 + $0x38] sm:$0xff]
  %v88 = vld [vmem:[#allocation2 + $0x40] sm:$0xff]
  %v89 = vld [vmem:[#allocation2 + $0x48] sm:$0xff]
  %v90 = vld [vmem:[#allocation2 + $0x50] sm:$0xff]
  %v91 = vld [vmem:[#allocation2 + $0x58] sm:$0xff]
  %v92 = vld [vmem:[#allocation2 + $0x60] sm:$0xff]
  %v93 = vld [vmem:[#allocation2 + $0x68] sm:$0xff]
  %v94 = vld [vmem:[#allocation2 + $0x70] sm:$0xff]
  %v95 = vld [vmem:[#allocation2 + $0x78] sm:$0xff]
  %v96 = vld [vmem:[#allocation2 + $0x80] sm:$0xff]
  %v97 = vld [vmem:[#allocation2 + $0x88] sm:$0xff]
  %v98 = vld [vmem:[#allocation2 + $0x90] sm:$0xff]
  %v99 = vld [vmem:[#allocation2 + $0x98] sm:$0xff]
  %v100 = vld [vmem:[#allocation2 + $0xa0] sm:$0xff]
  %v101 = vld [vmem:[#allocation2 + $0xa8] sm:$0xff]
  %v102 = vld [vmem:[#allocation2 + $0xb0] sm:$0xff]
  %v103 = vld [vmem:[#allocation2 + $0xb8] sm:$0xff]
  %v104 = vld [vmem:[#allocation2 + $0xc0] sm:$0xff]
  %v105 = vld [vmem:[#allocation2 + $0xc8] sm:$0xff]
  %v106 = vld [vmem:[#allocation2 + $0xd0] sm:$0xff]
  %v107 = vld [vmem:[#allocation2 + $0xd8] sm:$0xff]
  %v108 = vld [vmem:[#allocation2 + $0xe0] sm:$0xff]
  %v109 = vld [vmem:[#allocation2 + $0xe8] sm:$0xff]
  %v110 = vld [vmem:[#allocation2 + $0xf0] sm:$0xff]
  %v111 = vld [vmem:[#allocation2 + $0xf8] sm:$0xff]
  %v112 = vld [vmem:[#allocation2 + $0x100] sm:$0xff]
  %v113 = vld [vmem:[#allocation2 + $0x108] sm:$0xff]
  %v114 = vld [vmem:[#allocation2 + $0x110] sm:$0xff]
  %v115 = vld [vmem:[#allocation2 + $0x118] sm:$0xff]
  %v116 = vld [vmem:[#allocation2 + $0x120] sm:$0xff]
  %v117 = vld [vmem:[#allocation2 + $0x128] sm:$0xff]
  %v118 = vld [vmem:[#allocation2 + $0x130] sm:$0xff]
  %v119 = vld [vmem:[#allocation2 + $0x138] sm:$0xff]
  %v120 = vld [vmem:[#allocation2 + $0x140] sm:$0xff]
  %v121 = vld [vmem:[#allocation2 + $0x148] sm:$0xff]
  %v122 = vld [vmem:[#allocation2 + $0x150] sm:$0xff]
  %v123 = vld [vmem:[#allocation2 + $0x158] sm:$0xff]
  %v124 = vld [vmem:[#allocation2 + $0x160] sm:$0xff]
  %v125 = vld [vmem:[#allocation2 + $0x168] sm:$0xff]
  %v126 = vld [vmem:[#allocation2 + $0x170] sm:$0xff]
  %v127 = vld [vmem:[#allocation2 + $0x178] sm:$0xff]
  %v128 = vld [vmem:[#allocation2 + $0x180] sm:$0xff]
  %v129 = vld [vmem:[#allocation2 + $0x188] sm:$0xff]
  %v130 = vld [vmem:[#allocation2 + $0x190] sm:$0xff]
  %v131 = vld [vmem:[#allocation2 + $0x198] sm:$0xff]
  %v132 = vld [vmem:[#allocation2 + $0x1a0] sm:$0xff]
  %v133 = vld [vmem:[#allocation2 + $0x1a8] sm:$0xff]
  %v134 = vld [vmem:[#allocation2 + $0x1b0] sm:$0xff]
  %v135 = vld [vmem:[#allocation2 + $0x1b8] sm:$0xff]
  %v136 = vld [vmem:[#allocation2 + $0x1c0] sm:$0xff]
  %v137 = vld [vmem:[#allocation2 + $0x1c8] sm:$0xff]
  %v138 = vld [vmem:[#allocation2 + $0x1d0] sm:$0xff]
  %v139 = vld [vmem:[#allocation2 + $0x1d8] sm:$0xff]
  %v140 = vld [vmem:[#allocation2 + $0x1e0] sm:$0xff]
  %v141 = vld [vmem:[#allocation2 + $0x1e8] sm:$0xff]
  %v142 = vld [vmem:[#allocation2 + $0x1f0] sm:$0xff]
  %v143 = vld [vmem:[#allocation2 + $0x1f8] sm:$0xff]
  %v144 = vld [vmem:[%s0] sm:$0xf]
  %v145 = vld [vmem:[%s0 + $0x4] sm:$0xf]
  %v146 = vld [vmem:[%s0 + $0x8] sm:$0xf]
  %v147 = vld [vmem:[%s0 + $0xc] sm:$0xf]
  %v148 = vld [vmem:[%s0 + $0x10] sm:$0xf]
  %v149 = vld [vmem:[%s0 + $0x14] sm:$0xf]
  %v150 = vld [vmem:[%s0 + $0x18] sm:$0xf]
  %v151 = vld [vmem:[%s0 + $0x1c] sm:$0xf]
  %v152 = vld [vmem:[%s0 + $0x20] sm:$0xf]
  %v153 = vld [vmem:[%s0 + $0x24] sm:$0xf]
  %v154 = vld [vmem:[%s0 + $0x28] sm:$0xf]
  %v155 = vld [vmem:[%s0 + $0x2c] sm:$0xf]
  %v156 = vld [vmem:[%s0 + $0x30] sm:$0xf]
  %v157 = vld [vmem:[%s0 + $0x34] sm:$0xf]
  %v158 = vld [vmem:[%s0 + $0x38] sm:$0xf]
  %v159 = vld [vmem:[%s0 + $0x3c] sm:$0xf]
  %v160 = vld [vmem:[%s0 + $0x40] sm:$0xf]
  %v161 = vld [vmem:[%s0 + $0x44] sm:$0xf]
  %v162 = vld [vmem:[%s0 + $0x48] sm:$0xf]
  %v163 = vld [vmem:[%s0 + $0x4c] sm:$0xf]
  %v164 = vld [vmem:[%s0 + $0x50] sm:$0xf]
  %v165 = vld [vmem:[%s0 + $0x54] sm:$0xf]
  %v166 = vld [vmem:[%s0 + $0x58] sm:$0xf]
  %v167 = vld [vmem:[%s0 + $0x5c] sm:$0xf]
  %v168 = vld [vmem:[%s0 + $0x60] sm:$0xf]
  %v169 = vld [vmem:[%s0 + $0x64] sm:$0xf]
  %v170 = vld [vmem:[%s0 + $0x68] sm:$0xf]
  %v171 = vld [vmem:[%s0 + $0x6c] sm:$0xf]
  %v172 = vld [vmem:[%s0 + $0x70] sm:$0xf]
  %v173 = vld [vmem:[%s0 + $0x74] sm:$0xf]
  %v174 = vld [vmem:[%s0 + $0x78] sm:$0xf]
  %v175 = vld [vmem:[%s0 + $0x7c] sm:$0xf]
  %v176 = vld [vmem:[%s0 + $0x80] sm:$0xf]
  %v177 = vld [vmem:[%s0 + $0x84] sm:$0xf]
  %v178 = vld [vmem:[%s0 + $0x88] sm:$0xf]
  %v179 = vld [vmem:[%s0 + $0x8c] sm:$0xf]
  %v180 = vld [vmem:[%s0 + $0x90] sm:$0xf]
  %v181 = vld [vmem:[%s0 + $0x94] sm:$0xf]
  %v182 = vld [vmem:[%s0 + $0x98] sm:$0xf]
  %v183 = vld [vmem:[%s0 + $0x9c] sm:$0xf]
  %v184 = vld [vmem:[%s0 + $0xa0] sm:$0xf]
  %v185 = vld [vmem:[%s0 + $0xa4] sm:$0xf]
  %v186 = vld [vmem:[%s0 + $0xa8] sm:$0xf]
  %v187 = vld [vmem:[%s0 + $0xac] sm:$0xf]
  %v188 = vld [vmem:[%s0 + $0xb0] sm:$0xf]
  %v189 = vld [vmem:[%s0 + $0xb4] sm:$0xf]
  %v190 = vld [vmem:[%s0 + $0xb8] sm:$0xf]
  %v191 = vld [vmem:[%s0 + $0xbc] sm:$0xf]
  %v192 = vld [vmem:[%s0 + $0xc0] sm:$0xf]
  %v193 = vld [vmem:[%s0 + $0xc4] sm:$0xf]
  %v194 = vld [vmem:[%s0 + $0xc8] sm:$0xf]
  %v195 = vld [vmem:[%s0 + $0xcc] sm:$0xf]
  %v196 = vld [vmem:[%s0 + $0xd0] sm:$0xf]
  %v197 = vld [vmem:[%s0 + $0xd4] sm:$0xf]
  %v198 = vld [vmem:[%s0 + $0xd8] sm:$0xf]
  %v199 = vld [vmem:[%s0 + $0xdc] sm:$0xf]
  %v200 = vld [vmem:[%s0 + $0xe0] sm:$0xf]
  %v201 = vld [vmem:[%s0 + $0xe4] sm:$0xf]
  %v202 = vld [vmem:[%s0 + $0xe8] sm:$0xf]
  %v203 = vld [vmem:[%s0 + $0xec] sm:$0xf]
  %v204 = vld [vmem:[%s0 + $0xf0] sm:$0xf]
  %v205 = vld [vmem:[%s0 + $0xf4] sm:$0xf]
  %v206 = vld [vmem:[%s0 + $0xf8] sm:$0xf]
  %v207 = vld [vmem:[%s0 + $0xfc] sm:$0xf]
  %v208 = vld [vmem:[%s1] sm:$0xf]
  %v209 = vld [vmem:[%s1 + $0x4] sm:$0xf]
  %v210 = vld [vmem:[%s1 + $0x8] sm:$0xf]
  %v211 = vld [vmem:[%s1 + $0xc] sm:$0xf]
  %v212 = vld [vmem:[%s1 + $0x10] sm:$0xf]
  %v213 = vld [vmem:[%s1 + $0x14] sm:$0xf]
  %v214 = vld [vmem:[%s1 + $0x18] sm:$0xf]
  %v215 = vld [vmem:[%s1 + $0x1c] sm:$0xf]
  %v216 = vld [vmem:[%s1 + $0x20] sm:$0xf]
  %v217 = vld [vmem:[%s1 + $0x24] sm:$0xf]
  %v218 = vld [vmem:[%s1 + $0x28] sm:$0xf]
  %v219 = vld [vmem:[%s1 + $0x2c] sm:$0xf]
  %v220 = vld [vmem:[%s1 + $0x30] sm:$0xf]
  %v221 = vld [vmem:[%s1 + $0x34] sm:$0xf]
  %v222 = vld [vmem:[%s1 + $0x38] sm:$0xf]
  %v223 = vld [vmem:[%s1 + $0x3c] sm:$0xf]
  %v288 = vunpack.c.l.b16 %v144
  %v289 = vunpack.c.l.b16 %v145
  %v290 = vunpack.c.l.b16 %v146
  %v291 = vunpack.c.l.b16 %v147
  %v292 = vunpack.c.l.b16 %v148
  %v293 = vunpack.c.l.b16 %v149
  %v294 = vunpack.c.l.b16 %v150
  %v295 = vunpack.c.l.b16 %v151
  %v296 = vunpack.c.l.b16 %v152
  %v297 = vunpack.c.l.b16 %v153
  %v298 = vunpack.c.l.b16 %v154
  %v299 = vunpack.c.l.b16 %v155
  %v300 = vunpack.c.l.b16 %v156
  %v301 = vunpack.c.l.b16 %v157
  %v302 = vunpack.c.l.b16 %v158
  %v303 = vunpack.c.l.b16 %v159
  %v304 = vunpack.c.l.b16 %v160
  %v305 = vunpack.c.l.b16 %v161
  %v306 = vunpack.c.l.b16 %v162
  %v307 = vunpack.c.l.b16 %v163
  %v308 = vunpack.c.l.b16 %v164
  %v309 = vunpack.c.l.b16 %v165
  %v310 = vunpack.c.l.b16 %v166
  %v311 = vunpack.c.l.b16 %v167
  %v312 = vunpack.c.l.b16 %v168
  %v313 = vunpack.c.l.b16 %v169
  %v314 = vunpack.c.l.b16 %v170
  %v315 = vunpack.c.l.b16 %v171
  %v316 = vunpack.c.l.b16 %v172
  %v317 = vunpack.c.l.b16 %v173
  %v318 = vunpack.c.l.b16 %v174
  %v319 = vunpack.c.l.b16 %v175
  %v320 = vunpack.c.l.b16 %v176
  %v321 = vunpack.c.l.b16 %v177
  %v322 = vunpack.c.l.b16 %v178
  %v323 = vunpack.c.l.b16 %v179
  %v324 = vunpack.c.l.b16 %v180
  %v325 = vunpack.c.l.b16 %v181
  %v326 = vunpack.c.l.b16 %v182
  %v327 = vunpack.c.l.b16 %v183
  %v328 = vunpack.c.l.b16 %v184
  %v329 = vunpack.c.l.b16 %v185
  %v330 = vunpack.c.l.b16 %v186
  %v331 = vunpack.c.l.b16 %v187
  %v332 = vunpack.c.l.b16 %v188
  %v333 = vunpack.c.l.b16 %v189
  %v334 = vunpack.c.l.b16 %v190
  %v335 = vunpack.c.l.b16 %v191
  %v336 = vunpack.c.l.b16 %v192
  %v337 = vunpack.c.l.b16 %v193
  %v338 = vunpack.c.l.b16 %v194
  %v339 = vunpack.c.l.b16 %v195
  %v340 = vunpack.c.l.b16 %v196
  %v341 = vunpack.c.l.b16 %v197
  %v342 = vunpack.c.l.b16 %v198
  %v343 = vunpack.c.l.b16 %v199
  %v344 = vunpack.c.l.b16 %v200
  %v345 = vunpack.c.l.b16 %v201
  %v346 = vunpack.c.l.b16 %v202
  %v347 = vunpack.c.l.b16 %v203
  %v348 = vunpack.c.l.b16 %v204
  %v349 = vunpack.c.l.b16 %v205
  %v350 = vunpack.c.l.b16 %v206
  %v351 = vunpack.c.l.b16 %v207
  %v352 = vpack.c.b16 %v289, %v288
  %v353 = vpack.c.b16 %v291, %v290
  %v354 = vpack.c.b16 %v293, %v292
  %v355 = vpack.c.b16 %v295, %v294
  %v356 = vpack.c.b16 %v297, %v296
  %v357 = vpack.c.b16 %v299, %v298
  %v358 = vpack.c.b16 %v301, %v300
  %v359 = vpack.c.b16 %v303, %v302
  %v360 = vpack.c.b16 %v305, %v304
  %v361 = vpack.c.b16 %v307, %v306
  %v362 = vpack.c.b16 %v309, %v308
  %v363 = vpack.c.b16 %v311, %v310
  %v364 = vpack.c.b16 %v313, %v312
  %v365 = vpack.c.b16 %v315, %v314
  %v366 = vpack.c.b16 %v317, %v316
  %v367 = vpack.c.b16 %v319, %v318
  %v368 = vpack.c.b16 %v321, %v320
  %v369 = vpack.c.b16 %v323, %v322
  %v370 = vpack.c.b16 %v325, %v324
  %v371 = vpack.c.b16 %v327, %v326
  %v372 = vpack.c.b16 %v329, %v328
  %v373 = vpack.c.b16 %v331, %v330
  %v374 = vpack.c.b16 %v333, %v332
  %v375 = vpack.c.b16 %v335, %v334
  %v376 = vpack.c.b16 %v337, %v336
  %v377 = vpack.c.b16 %v339, %v338
  %v378 = vpack.c.b16 %v341, %v340
  %v379 = vpack.c.b16 %v343, %v342
  %v380 = vpack.c.b16 %v345, %v344
  %v381 = vpack.c.b16 %v347, %v346
  %v382 = vpack.c.b16 %v349, %v348
  %v383 = vpack.c.b16 %v351, %v350
  %v432 = vunpack.c.l.b16 %v208
  %v433 = vunpack.c.l.b16 %v209
  %v434 = vunpack.c.l.b16 %v210
  %v435 = vunpack.c.l.b16 %v211
  %v436 = vunpack.c.l.b16 %v212
  %v437 = vunpack.c.l.b16 %v213
  %v438 = vunpack.c.l.b16 %v214
  %v439 = vunpack.c.l.b16 %v215
  %v440 = vunpack.c.l.b16 %v216
  %v441 = vunpack.c.l.b16 %v217
  %v442 = vunpack.c.l.b16 %v218
  %v443 = vunpack.c.l.b16 %v219
  %v444 = vunpack.c.l.b16 %v220
  %v445 = vunpack.c.l.b16 %v221
  %v446 = vunpack.c.l.b16 %v222
  %v447 = vunpack.c.l.b16 %v223
  %v448 = vpack.c.b16 %v433, %v432
  %v449 = vpack.c.b16 %v435, %v434
  %v450 = vpack.c.b16 %v437, %v436
  %v451 = vpack.c.b16 %v439, %v438
  %v452 = vpack.c.b16 %v441, %v440
  %v453 = vpack.c.b16 %v443, %v442
  %v454 = vpack.c.b16 %v445, %v444
  %v455 = vpack.c.b16 %v447, %v446
  %464 = vmatprep.subr.bf16.mxu0 0
  %465 = vmatpush1.bf16.msra.mxu0 %v448
  %466 = vmatprep.subr.bf16.mxu0 0
  %467 = vmatpush1.bf16.msra.mxu0 %v449
  %468 = vmatprep.subr.bf16.mxu0 0
  %469 = vmatpush1.bf16.msra.mxu0 %v450
  %470 = vmatprep.subr.bf16.mxu0 0
  %471 = vmatpush1.bf16.msra.mxu0 %v451
  %472 = vmatprep.subr.bf16.mxu0 0
  %473 = vmatpush1.bf16.msra.mxu0 %v452
  %474 = vmatprep.subr.bf16.mxu0 0
  %475 = vmatpush1.bf16.msra.mxu0 %v453
  %476 = vmatprep.subr.bf16.mxu0 0
  %477 = vmatpush1.bf16.msra.mxu0 %v454
  %478 = vmatprep.subr.bf16.mxu0 0
  %479 = vmatpush1.bf16.msra.mxu0 %v455
  %480 = vmatprep.subr.bf16.mxu0 0
  %481 = vmatpush1.bf16.msra.mxu0 0
  %482 = vmatprep.subr.bf16.mxu0 0
  %483 = vmatpush1.bf16.msra.mxu0 0
  %484 = vmatprep.subr.bf16.mxu0 0
  %485 = vmatpush1.bf16.msra.mxu0 0
  %486 = vmatprep.subr.bf16.mxu0 0
  %487 = vmatpush1.bf16.msra.mxu0 0
  %488 = vmatprep.subr.bf16.mxu0 0
  %489 = vmatpush1.bf16.msra.mxu0 0
  %490 = vmatprep.subr.bf16.mxu0 0
  %491 = vmatpush1.bf16.msra.mxu0 0
  %492 = vmatprep.subr.bf16.mxu0 0
  %493 = vmatpush1.bf16.msra.mxu0 0
  %494 = vmatprep.subr.bf16.mxu0 0
  %495 = vmatpush1.bf16.msra.mxu0 0
  %496 = vmatprep.mubr.bf16.mxu0 0
  %497 = vmatmul.mubr.bf16.gmra.mrb[0].mxu0 %v352
  %v498 = vpop.f32.mrb[0].mxu0
  %v499 = vadd.f32 0.0, %v498
  %v500 = vpop.f32.mrb[0].mxu0
  %v501 = vpop.f32.mrb[0].mxu0
  %v502 = vadd.f32 0.0, %v501
  %v503 = vpop.f32.mrb[0].mxu0
  %504 = vmatprep.mubr.bf16.mxu0 0
  %505 = vmatmul.mubr.bf16.gmra.mrb[0].mxu0 %v353
  %v506 = vpop.f32.mrb[0].mxu0
  %v507 = vadd.f32 0.0, %v506
  %v508 = vpop.f32.mrb[0].mxu0
  %v509 = vpop.f32.mrb[0].mxu0
  %v510 = vadd.f32 0.0, %v509
  %v511 = vpop.f32.mrb[0].mxu0
  %512 = vmatprep.mubr.bf16.mxu0 0
  %513 = vmatmul.mubr.bf16.gmra.mrb[0].mxu0 %v354
  %v514 = vpop.f32.mrb[0].mxu0
  %v515 = vadd.f32 0.0, %v514
  %v516 = vpop.f32.mrb[0].mxu0
  %v517 = vpop.f32.mrb[0].mxu0
  %v518 = vadd.f32 0.0, %v517
  %v519 = vpop.f32.mrb[0].mxu0
  %520 = vmatprep.mubr.bf16.mxu0 0
  %521 = vmatmul.mubr.bf16.gmra.mrb[0].mxu0 %v355
  %v522 = vpop.f32.mrb[0].mxu0
  %v523 = vadd.f32 0.0, %v522
  %v524 = vpop.f32.mrb[0].mxu0
  %v525 = vpop.f32.mrb[0].mxu0
  %v526 = vadd.f32 0.0, %v525
  %v527 = vpop.f32.mrb[0].mxu0
  %528 = vmatprep.mubr.bf16.mxu0 0
  %529 = vmatmul.mubr.bf16.gmra.mrb[0].mxu0 %v356
  %v530 = vpop.f32.mrb[0].mxu0
  %v531 = vadd.f32 0.0, %v530
  %v532 = vpop.f32.mrb[0].mxu0
  %v533 = vpop.f32.mrb[0].mxu0
  %v534 = vadd.f32 0.0, %v533
  %v535 = vpop.f32.mrb[0].mxu0
  %536 = vmatprep.mubr.bf16.mxu0 0
  %537 = vmatmul.mubr.bf16.gmra.mrb[0].mxu0 %v357
  %v538 = vpop.f32.mrb[0].mxu0
  %v539 = vadd.f32 0.0, %v538
  %v540 = vpop.f32.mrb[0].mxu0
  %v541 = vpop.f32.mrb[0].mxu0
  %v542 = vadd.f32 0.0, %v541
  %v543 = vpop.f32.mrb[0].mxu0
  %544 = vmatprep.mubr.bf16.mxu0 0
  %545 = vmatmul.mubr.bf16.gmra.mrb[0].mxu0 %v358
  %v546 = vpop.f32.mrb[0].mxu0
  %v547 = vadd.f32 0.0, %v546
  %v548 = vpop.f32.mrb[0].mxu0
  %v549 = vpop.f32.mrb[0].mxu0
  %v550 = vadd.f32 0.0, %v549
  %v551 = vpop.f32.mrb[0].mxu0
  %552 = vmatprep.mubr.bf16.mxu0 0
  %553 = vmatmul.mubr.bf16.gmra.mrb[0].mxu0 %v359
  %v554 = vpop.f32.mrb[0].mxu0
  %v555 = vadd.f32 0.0, %v554
  %v556 = vpop.f32.mrb[0].mxu0
  %v557 = vpop.f32.mrb[0].mxu0
  %v558 = vadd.f32 0.0, %v557
  %v559 = vpop.f32.mrb[0].mxu0
  %560 = vmatprep.mubr.bf16.mxu0 0
  %561 = vmatmul.mubr.bf16.gmra.mrb[0].mxu0 %v360
  %v562 = vpop.f32.mrb[0].mxu0
  %v563 = vadd.f32 0.0, %v562
  %v564 = vpop.f32.mrb[0].mxu0
  %v565 = vpop.f32.mrb[0].mxu0
  %v566 = vadd.f32 0.0, %v565
  %v567 = vpop.f32.mrb[0].mxu0
  %568 = vmatprep.mubr.bf16.mxu0 0
  %569 = vmatmul.mubr.bf16.gmra.mrb[0].mxu0 %v361
  %v570 = vpop.f32.mrb[0].mxu0
  %v571 = vadd.f32 0.0, %v570
  %v572 = vpop.f32.mrb[0].mxu0
  %v573 = vpop.f32.mrb[0].mxu0
  %v574 = vadd.f32 0.0, %v573
  %v575 = vpop.f32.mrb[0].mxu0
  %576 = vmatprep.mubr.bf16.mxu0 0
  %577 = vmatmul.mubr.bf16.gmra.mrb[0].mxu0 %v362
  %v578 = vpop.f32.mrb[0].mxu0
  %v579 = vadd.f32 0.0, %v578
  %v580 = vpop.f32.mrb[0].mxu0
  %v581 = vpop.f32.mrb[0].mxu0
  %v582 = vadd.f32 0.0, %v581
  %v583 = vpop.f32.mrb[0].mxu0
  %584 = vmatprep.mubr.bf16.mxu0 0
  %585 = vmatmul.mubr.bf16.gmra.mrb[0].mxu0 %v363
  %v586 = vpop.f32.mrb[0].mxu0
  %v587 = vadd.f32 0.0, %v586
  %v588 = vpop.f32.mrb[0].mxu0
  %v589 = vpop.f32.mrb[0].mxu0
  %v590 = vadd.f32 0.0, %v589
  %v591 = vpop.f32.mrb[0].mxu0
  %592 = vmatprep.mubr.bf16.mxu0 0
  %593 = vmatmul.mubr.bf16.gmra.mrb[0].mxu0 %v364
  %v594 = vpop.f32.mrb[0].mxu0
  %v595 = vadd.f32 0.0, %v594
  %v596 = vpop.f32.mrb[0].mxu0
  %v597 = vpop.f32.mrb[0].mxu0
  %v598 = vadd.f32 0.0, %v597
  %v599 = vpop.f32.mrb[0].mxu0
  %600 = vmatprep.mubr.bf16.mxu0 0
  %601 = vmatmul.mubr.bf16.gmra.mrb[0].mxu0 %v365
  %v602 = vpop.f32.mrb[0].mxu0
  %v603 = vadd.f32 0.0, %v602
  %v604 = vpop.f32.mrb[0].mxu0
  %v605 = vpop.f32.mrb[0].mxu0
  %v606 = vadd.f32 0.0, %v605
  %v607 = vpop.f32.mrb[0].mxu0
  %608 = vmatprep.mubr.bf16.mxu0 0
  %609 = vmatmul.mubr.bf16.gmra.mrb[0].mxu0 %v366
  %v610 = vpop.f32.mrb[0].mxu0
  %v611 = vadd.f32 0.0, %v610
  %v612 = vpop.f32.mrb[0].mxu0
  %v613 = vpop.f32.mrb[0].mxu0
  %v614 = vadd.f32 0.0, %v613
  %v615 = vpop.f32.mrb[0].mxu0
  %616 = vmatprep.mubr.bf16.mxu0 0
  %617 = vmatmul.mubr.bf16.gmra.mrb[0].mxu0 %v367
  %v618 = vpop.f32.mrb[0].mxu0
  %v619 = vadd.f32 0.0, %v618
  %v620 = vpop.f32.mrb[0].mxu0
  %v621 = vpop.f32.mrb[0].mxu0
  %v622 = vadd.f32 0.0, %v621
  %v623 = vpop.f32.mrb[0].mxu0
  %624 = vmatprep.mubr.bf16.mxu0 0
  %625 = vmatmul.mubr.bf16.gmra.mrb[0].mxu0 %v368
  %v626 = vpop.f32.mrb[0].mxu0
  %v627 = vadd.f32 0.0, %v626
  %v628 = vpop.f32.mrb[0].mxu0
  %v629 = vpop.f32.mrb[0].mxu0
  %v630 = vadd.f32 0.0, %v629
  %v631 = vpop.f32.mrb[0].mxu0
  %632 = vmatprep.mubr.bf16.mxu0 0
  %633 = vmatmul.mubr.bf16.gmra.mrb[0].mxu0 %v369
  %v634 = vpop.f32.mrb[0].mxu0
  %v635 = vadd.f32 0.0, %v634
  %v636 = vpop.f32.mrb[0].mxu0
  %v637 = vpop.f32.mrb[0].mxu0
  %v638 = vadd.f32 0.0, %v637
  %v639 = vpop.f32.mrb[0].mxu0
  %640 = vmatprep.mubr.bf16.mxu0 0
  %641 = vmatmul.mubr.bf16.gmra.mrb[0].mxu0 %v370
  %v642 = vpop.f32.mrb[0].mxu0
  %v643 = vadd.f32 0.0, %v642
  %v644 = vpop.f32.mrb[0].mxu0
  %v645 = vpop.f32.mrb[0].mxu0
  %v646 = vadd.f32 0.0, %v645
  %v647 = vpop.f32.mrb[0].mxu0
  %648 = vmatprep.mubr.bf16.mxu0 0
  %649 = vmatmul.mubr.bf16.gmra.mrb[0].mxu0 %v371
  %v650 = vpop.f32.mrb[0].mxu0
  %v651 = vadd.f32 0.0, %v650
  %v652 = vpop.f32.mrb[0].mxu0
  %v653 = vpop.f32.mrb[0].mxu0
  %v654 = vadd.f32 0.0, %v653
  %v655 = vpop.f32.mrb[0].mxu0
  %656 = vmatprep.mubr.bf16.mxu0 0
  %657 = vmatmul.mubr.bf16.gmra.mrb[0].mxu0 %v372
  %v658 = vpop.f32.mrb[0].mxu0
  %v659 = vadd.f32 0.0, %v658
  %v660 = vpop.f32.mrb[0].mxu0
  %v661 = vpop.f32.mrb[0].mxu0
  %v662 = vadd.f32 0.0, %v661
  %v663 = vpop.f32.mrb[0].mxu0
  %664 = vmatprep.mubr.bf16.mxu0 0
  %665 = vmatmul.mubr.bf16.gmra.mrb[0].mxu0 %v373
  %v666 = vpop.f32.mrb[0].mxu0
  %v667 = vadd.f32 0.0, %v666
  %v668 = vpop.f32.mrb[0].mxu0
  %v669 = vpop.f32.mrb[0].mxu0
  %v670 = vadd.f32 0.0, %v669
  %v671 = vpop.f32.mrb[0].mxu0
  %672 = vmatprep.mubr.bf16.mxu0 0
  %673 = vmatmul.mubr.bf16.gmra.mrb[0].mxu0 %v374
  %v674 = vpop.f32.mrb[0].mxu0
  %v675 = vadd.f32 0.0, %v674
  %v676 = vpop.f32.mrb[0].mxu0
  %v677 = vpop.f32.mrb[0].mxu0
  %v678 = vadd.f32 0.0, %v677
  %v679 = vpop.f32.mrb[0].mxu0
  %680 = vmatprep.mubr.bf16.mxu0 0
  %681 = vmatmul.mubr.bf16.gmra.mrb[0].mxu0 %v375
  %v682 = vpop.f32.mrb[0].mxu0
  %v683 = vadd.f32 0.0, %v682
  %v684 = vpop.f32.mrb[0].mxu0
  %v685 = vpop.f32.mrb[0].mxu0
  %v686 = vadd.f32 0.0, %v685
  %v687 = vpop.f32.mrb[0].mxu0
  %688 = vmatprep.mubr.bf16.mxu0 0
  %689 = vmatmul.mubr.bf16.gmra.mrb[0].mxu0 %v376
  %v690 = vpop.f32.mrb[0].mxu0
  %v691 = vadd.f32 0.0, %v690
  %v692 = vpop.f32.mrb[0].mxu0
  %v693 = vpop.f32.mrb[0].mxu0
  %v694 = vadd.f32 0.0, %v693
  %v695 = vpop.f32.mrb[0].mxu0
  %696 = vmatprep.mubr.bf16.mxu0 0
  %697 = vmatmul.mubr.bf16.gmra.mrb[0].mxu0 %v377
  %v698 = vpop.f32.mrb[0].mxu0
  %v699 = vadd.f32 0.0, %v698
  %v700 = vpop.f32.mrb[0].mxu0
  %v701 = vpop.f32.mrb[0].mxu0
  %v702 = vadd.f32 0.0, %v701
  %v703 = vpop.f32.mrb[0].mxu0
  %704 = vmatprep.mubr.bf16.mxu0 0
  %705 = vmatmul.mubr.bf16.gmra.mrb[0].mxu0 %v378
  %v706 = vpop.f32.mrb[0].mxu0
  %v707 = vadd.f32 0.0, %v706
  %v708 = vpop.f32.mrb[0].mxu0
  %v709 = vpop.f32.mrb[0].mxu0
  %v710 = vadd.f32 0.0, %v709
  %v711 = vpop.f32.mrb[0].mxu0
  %712 = vmatprep.mubr.bf16.mxu0 0
  %713 = vmatmul.mubr.bf16.gmra.mrb[0].mxu0 %v379
  %v714 = vpop.f32.mrb[0].mxu0
  %v715 = vadd.f32 0.0, %v714
  %v716 = vpop.f32.mrb[0].mxu0
  %v717 = vpop.f32.mrb[0].mxu0
  %v718 = vadd.f32 0.0, %v717
  %v719 = vpop.f32.mrb[0].mxu0
  %720 = vmatprep.mubr.bf16.mxu0 0
  %721 = vmatmul.mubr.bf16.gmra.mrb[0].mxu0 %v380
  %v722 = vpop.f32.mrb[0].mxu0
  %v723 = vadd.f32 0.0, %v722
  %v724 = vpop.f32.mrb[0].mxu0
  %v725 = vpop.f32.mrb[0].mxu0
  %v726 = vadd.f32 0.0, %v725
  %v727 = vpop.f32.mrb[0].mxu0
  %728 = vmatprep.mubr.bf16.mxu0 0
  %729 = vmatmul.mubr.bf16.gmra.mrb[0].mxu0 %v381
  %v730 = vpop.f32.mrb[0].mxu0
  %v731 = vadd.f32 0.0, %v730
  %v732 = vpop.f32.mrb[0].mxu0
  %v733 = vpop.f32.mrb[0].mxu0
  %v734 = vadd.f32 0.0, %v733
  %v735 = vpop.f32.mrb[0].mxu0
  %736 = vmatprep.mubr.bf16.mxu0 0
  %737 = vmatmul.mubr.bf16.gmra.mrb[0].mxu0 %v382
  %v738 = vpop.f32.mrb[0].mxu0
  %v739 = vadd.f32 0.0, %v738
  %v740 = vpop.f32.mrb[0].mxu0
  %v741 = vpop.f32.mrb[0].mxu0
  %v742 = vadd.f32 0.0, %v741
  %v743 = vpop.f32.mrb[0].mxu0
  %744 = vmatprep.mubr.bf16.mxu0 0
  %745 = vmatmul.mubr.bf16.gmra.mrb[0].mxu0 %v383
  %v746 = vpop.f32.mrb[0].mxu0
  %v747 = vadd.f32 0.0, %v746
  %v748 = vpop.f32.mrb[0].mxu0
  %v749 = vpop.f32.mrb[0].mxu0
  %v750 = vadd.f32 0.0, %v749
  %v751 = vpop.f32.mrb[0].mxu0
  %752 = vdwg.mxu0
  %v753 = vadd.f32 %v80, %v499
  %v754 = vadd.f32 %v81, %v502
  %v755 = vadd.f32 %v82, %v507
  %v756 = vadd.f32 %v83, %v510
  %v757 = vadd.f32 %v84, %v515
  %v758 = vadd.f32 %v85, %v518
  %v759 = vadd.f32 %v86, %v523
  %v760 = vadd.f32 %v87, %v526
  %v761 = vadd.f32 %v88, %v531
  %v762 = vadd.f32 %v89, %v534
  %v763 = vadd.f32 %v90, %v539
  %v764 = vadd.f32 %v91, %v542
  %v765 = vadd.f32 %v92, %v547
  %v766 = vadd.f32 %v93, %v550
  %v767 = vadd.f32 %v94, %v555
  %v768 = vadd.f32 %v95, %v558
  %v769 = vadd.f32 %v96, %v563
  %v770 = vadd.f32 %v97, %v566
  %v771 = vadd.f32 %v98, %v571
  %v772 = vadd.f32 %v99, %v574
  %v773 = vadd.f32 %v100, %v579
  %v774 = vadd.f32 %v101, %v582
  %v775 = vadd.f32 %v102, %v587
  %v776 = vadd.f32 %v103, %v590
  %v777 = vadd.f32 %v104, %v595
  %v778 = vadd.f32 %v105, %v598
  %v779 = vadd.f32 %v106, %v603
  %v780 = vadd.f32 %v107, %v606
  %v781 = vadd.f32 %v108, %v611
  %v782 = vadd.f32 %v109, %v614
  %v783 = vadd.f32 %v110, %v619
  %v784 = vadd.f32 %v111, %v622
  %v785 = vadd.f32 %v112, %v627
  %v786 = vadd.f32 %v113, %v630
  %v787 = vadd.f32 %v114, %v635
  %v788 = vadd.f32 %v115, %v638
  %v789 = vadd.f32 %v116, %v643
  %v790 = vadd.f32 %v117, %v646
  %v791 = vadd.f32 %v118, %v651
  %v792 = vadd.f32 %v119, %v654
  %v793 = vadd.f32 %v120, %v659
  %v794 = vadd.f32 %v121, %v662
  %v795 = vadd.f32 %v122, %v667
  %v796 = vadd.f32 %v123, %v670
  %v797 = vadd.f32 %v124, %v675
  %v798 = vadd.f32 %v125, %v678
  %v799 = vadd.f32 %v126, %v683
  %v800 = vadd.f32 %v127, %v686
  %v801 = vadd.f32 %v128, %v691
  %v802 = vadd.f32 %v129, %v694
  %v803 = vadd.f32 %v130, %v699
  %v804 = vadd.f32 %v131, %v702
  %v805 = vadd.f32 %v132, %v707
  %v806 = vadd.f32 %v133, %v710
  %v807 = vadd.f32 %v134, %v715
  %v808 = vadd.f32 %v135, %v718
  %v809 = vadd.f32 %v136, %v723
  %v810 = vadd.f32 %v137, %v726
  %v811 = vadd.f32 %v138, %v731
  %v812 = vadd.f32 %v139, %v734
  %v813 = vadd.f32 %v140, %v739
  %v814 = vadd.f32 %v141, %v742
  %v815 = vadd.f32 %v142, %v747
  %v816 = vadd.f32 %v143, %v750
  %817 = vst [vmem:[#allocation2] sm:$0xff] %v753
  %818 = vst [vmem:[#allocation2 + $0x8] sm:$0xff] %v754
  %819 = vst [vmem:[#allocation2 + $0x10] sm:$0xff] %v755
  %820 = vst [vmem:[#allocation2 + $0x18] sm:$0xff] %v756
  %821 = vst [vmem:[#allocation2 + $0x20] sm:$0xff] %v757
  %822 = vst [vmem:[#allocation2 + $0x28] sm:$0xff] %v758
  %823 = vst [vmem:[#allocation2 + $0x30] sm:$0xff] %v759
  %824 = vst [vmem:[#allocation2 + $0x38] sm:$0xff] %v760
  %825 = vst [vmem:[#allocation2 + $0x40] sm:$0xff] %v761
  %826 = vst [vmem:[#allocation2 + $0x48] sm:$0xff] %v762
  %827 = vst [vmem:[#allocation2 + $0x50] sm:$0xff] %v763
  %828 = vst [vmem:[#allocation2 + $0x58] sm:$0xff] %v764
  %829 = vst [vmem:[#allocation2 + $0x60] sm:$0xff] %v765
  %830 = vst [vmem:[#allocation2 + $0x68] sm:$0xff] %v766
  %831 = vst [vmem:[#allocation2 + $0x70] sm:$0xff] %v767
  %832 = vst [vmem:[#allocation2 + $0x78] sm:$0xff] %v768
  %833 = vst [vmem:[#allocation2 + $0x80] sm:$0xff] %v769
  %834 = vst [vmem:[#allocation2 + $0x88] sm:$0xff] %v770
  %835 = vst [vmem:[#allocation2 + $0x90] sm:$0xff] %v771
  %836 = vst [vmem:[#allocation2 + $0x98] sm:$0xff] %v772
  %837 = vst [vmem:[#allocation2 + $0xa0] sm:$0xff] %v773
  %838 = vst [vmem:[#allocation2 + $0xa8] sm:$0xff] %v774
  %839 = vst [vmem:[#allocation2 + $0xb0] sm:$0xff] %v775
  %840 = vst [vmem:[#allocation2 + $0xb8] sm:$0xff] %v776
  %841 = vst [vmem:[#allocation2 + $0xc0] sm:$0xff] %v777
  %842 = vst [vmem:[#allocation2 + $0xc8] sm:$0xff] %v778
  %843 = vst [vmem:[#allocation2 + $0xd0] sm:$0xff] %v779
  %844 = vst [vmem:[#allocation2 + $0xd8] sm:$0xff] %v780
  %845 = vst [vmem:[#allocation2 + $0xe0] sm:$0xff] %v781
  %846 = vst [vmem:[#allocation2 + $0xe8] sm:$0xff] %v782
  %847 = vst [vmem:[#allocation2 + $0xf0] sm:$0xff] %v783
  %848 = vst [vmem:[#allocation2 + $0xf8] sm:$0xff] %v784
  %849 = vst [vmem:[#allocation2 + $0x100] sm:$0xff] %v785
  %850 = vst [vmem:[#allocation2 + $0x108] sm:$0xff] %v786
  %851 = vst [vmem:[#allocation2 + $0x110] sm:$0xff] %v787
  %852 = vst [vmem:[#allocation2 + $0x118] sm:$0xff] %v788
  %853 = vst [vmem:[#allocation2 + $0x120] sm:$0xff] %v789
  %854 = vst [vmem:[#allocation2 + $0x128] sm:$0xff] %v790
  %855 = vst [vmem:[#allocation2 + $0x130] sm:$0xff] %v791
  %856 = vst [vmem:[#allocation2 + $0x138] sm:$0xff] %v792
  %857 = vst [vmem:[#allocation2 + $0x140] sm:$0xff] %v793
  %858 = vst [vmem:[#allocation2 + $0x148] sm:$0xff] %v794
  %859 = vst [vmem:[#allocation2 + $0x150] sm:$0xff] %v795
  %860 = vst [vmem:[#allocation2 + $0x158] sm:$0xff] %v796
  %861 = vst [vmem:[#allocation2 + $0x160] sm:$0xff] %v797
  %862 = vst [vmem:[#allocation2 + $0x168] sm:$0xff] %v798
  %863 = vst [vmem:[#allocation2 + $0x170] sm:$0xff] %v799
  %864 = vst [vmem:[#allocation2 + $0x178] sm:$0xff] %v800
  %865 = vst [vmem:[#allocation2 + $0x180] sm:$0xff] %v801
  %866 = vst [vmem:[#allocation2 + $0x188] sm:$0xff] %v802
  %867 = vst [vmem:[#allocation2 + $0x190] sm:$0xff] %v803
  %868 = vst [vmem:[#allocation2 + $0x198] sm:$0xff] %v804
  %869 = vst [vmem:[#allocation2 + $0x1a0] sm:$0xff] %v805
  %870 = vst [vmem:[#allocation2 + $0x1a8] sm:$0xff] %v806
  %871 = vst [vmem:[#allocation2 + $0x1b0] sm:$0xff] %v807
  %872 = vst [vmem:[#allocation2 + $0x1b8] sm:$0xff] %v808
  %873 = vst [vmem:[#allocation2 + $0x1c0] sm:$0xff] %v809
  %874 = vst [vmem:[#allocation2 + $0x1c8] sm:$0xff] %v810
  %875 = vst [vmem:[#allocation2 + $0x1d0] sm:$0xff] %v811
  %876 = vst [vmem:[#allocation2 + $0x1d8] sm:$0xff] %v812
  %877 = vst [vmem:[#allocation2 + $0x1e0] sm:$0xff] %v813
  %878 = vst [vmem:[#allocation2 + $0x1e8] sm:$0xff] %v814
  %879 = vst [vmem:[#allocation2 + $0x1f0] sm:$0xff] %v815
  %880 = vst [vmem:[#allocation2 + $0x1f8] sm:$0xff] %v816
  // Predicated region
  $region14: #{basic_block_forward.9} parent=0 // pred_check
    %p881 = pneg %p12
  $region15: #{basic_block_forward.9} parent=0 // pred_check_branch
    %883 = sbr.rel (%p881) target = $region17
  $region16: #{basic_block_forward.9} parent=0 // pred_region
    %v884 = vld [vmem:[#allocation2] sm:$0xff]
    %v885 = vld [vmem:[#allocation2 + $0x8] sm:$0xff]
    %v886 = vld [vmem:[#allocation2 + $0x10] sm:$0xff]
    %v887 = vld [vmem:[#allocation2 + $0x18] sm:$0xff]
    %v888 = vld [vmem:[#allocation2 + $0x20] sm:$0xff]
    %v889 = vld [vmem:[#allocation2 + $0x28] sm:$0xff]
    %v890 = vld [vmem:[#allocation2 + $0x30] sm:$0xff]
    %v891 = vld [vmem:[#allocation2 + $0x38] sm:$0xff]
    %v892 = vld [vmem:[#allocation2 + $0x40] sm:$0xff]
    %v893 = vld [vmem:[#allocation2 + $0x48] sm:$0xff]
    %v894 = vld [vmem:[#allocation2 + $0x50] sm:$0xff]
    %v895 = vld [vmem:[#allocation2 + $0x58] sm:$0xff]
    %v896 = vld [vmem:[#allocation2 + $0x60] sm:$0xff]
    %v897 = vld [vmem:[#allocation2 + $0x68] sm:$0xff]
    %v898 = vld [vmem:[#allocation2 + $0x70] sm:$0xff]
    %v899 = vld [vmem:[#allocation2 + $0x78] sm:$0xff]
    %v900 = vld [vmem:[#allocation2 + $0x80] sm:$0xff]
    %v901 = vld [vmem:[#allocation2 + $0x88] sm:$0xff]
    %v902 = vld [vmem:[#allocation2 + $0x90] sm:$0xff]
    %v903 = vld [vmem:[#allocation2 + $0x98] sm:$0xff]
    %v904 = vld [vmem:[#allocation2 + $0xa0] sm:$0xff]
    %v905 = vld [vmem:[#allocation2 + $0xa8] sm:$0xff]
    %v906 = vld [vmem:[#allocation2 + $0xb0] sm:$0xff]
    %v907 = vld [vmem:[#allocation2 + $0xb8] sm:$0xff]
    %v908 = vld [vmem:[#allocation2 + $0xc0] sm:$0xff]
    %v909 = vld [vmem:[#allocation2 + $0xc8] sm:$0xff]
    %v910 = vld [vmem:[#allocation2 + $0xd0] sm:$0xff]
    %v911 = vld [vmem:[#allocation2 + $0xd8] sm:$0xff]
    %v912 = vld [vmem:[#allocation2 + $0xe0] sm:$0xff]
    %v913 = vld [vmem:[#allocation2 + $0xe8] sm:$0xff]
    %v914 = vld [vmem:[#allocation2 + $0xf0] sm:$0xff]
    %v915 = vld [vmem:[#allocation2 + $0xf8] sm:$0xff]
    %v916 = vld [vmem:[#allocation2 + $0x100] sm:$0xff]
    %v917 = vld [vmem:[#allocation2 + $0x108] sm:$0xff]
    %v918 = vld [vmem:[#allocation2 + $0x110] sm:$0xff]
    %v919 = vld [vmem:[#allocation2 + $0x118] sm:$0xff]
    %v920 = vld [vmem:[#allocation2 + $0x120] sm:$0xff]
    %v921 = vld [vmem:[#allocation2 + $0x128] sm:$0xff]
    %v922 = vld [vmem:[#allocation2 + $0x130] sm:$0xff]
    %v923 = vld [vmem:[#allocation2 + $0x138] sm:$0xff]
    %v924 = vld [vmem:[#allocation2 + $0x140] sm:$0xff]
    %v925 = vld [vmem:[#allocation2 + $0x148] sm:$0xff]
    %v926 = vld [vmem:[#allocation2 + $0x150] sm:$0xff]
    %v927 = vld [vmem:[#allocation2 + $0x158] sm:$0xff]
    %v928 = vld [vmem:[#allocation2 + $0x160] sm:$0xff]
    %v929 = vld [vmem:[#allocation2 + $0x168] sm:$0xff]
    %v930 = vld [vmem:[#allocation2 + $0x170] sm:$0xff]
    %v931 = vld [vmem:[#allocation2 + $0x178] sm:$0xff]
    %v932 = vld [vmem:[#allocation2 + $0x180] sm:$0xff]
    %v933 = vld [vmem:[#allocation2 + $0x188] sm:$0xff]
    %v934 = vld [vmem:[#allocation2 + $0x190] sm:$0xff]
    %v935 = vld [vmem:[#allocation2 + $0x198] sm:$0xff]
    %v936 = vld [vmem:[#allocation2 + $0x1a0] sm:$0xff]
    %v937 = vld [vmem:[#allocation2 + $0x1a8] sm:$0xff]
    %v938 = vld [vmem:[#allocation2 + $0x1b0] sm:$0xff]
    %v939 = vld [vmem:[#allocation2 + $0x1b8] sm:$0xff]
    %v940 = vld [vmem:[#allocation2 + $0x1c0] sm:$0xff]
    %v941 = vld [vmem:[#allocation2 + $0x1c8] sm:$0xff]
    %v942 = vld [vmem:[#allocation2 + $0x1d0] sm:$0xff]
    %v943 = vld [vmem:[#allocation2 + $0x1d8] sm:$0xff]
    %v944 = vld [vmem:[#allocation2 + $0x1e0] sm:$0xff]
    %v945 = vld [vmem:[#allocation2 + $0x1e8] sm:$0xff]
    %v946 = vld [vmem:[#allocation2 + $0x1f0] sm:$0xff]
    %v947 = vld [vmem:[#allocation2 + $0x1f8] sm:$0xff]
    %948 = vst [vmem:[%s2] sm:$0xff] %v884
    %949 = vst [vmem:[%s2 + $0x8] sm:$0xff] %v885
    %950 = vst [vmem:[%s2 + $0x10] sm:$0xff] %v886
    %951 = vst [vmem:[%s2 + $0x18] sm:$0xff] %v887
    %952 = vst [vmem:[%s2 + $0x20] sm:$0xff] %v888
    %953 = vst [vmem:[%s2 + $0x28] sm:$0xff] %v889
    %954 = vst [vmem:[%s2 + $0x30] sm:$0xff] %v890
    %955 = vst [vmem:[%s2 + $0x38] sm:$0xff] %v891
    %956 = vst [vmem:[%s2 + $0x40] sm:$0xff] %v892
    %957 = vst [vmem:[%s2 + $0x48] sm:$0xff] %v893
    %958 = vst [vmem:[%s2 + $0x50] sm:$0xff] %v894
    %959 = vst [vmem:[%s2 + $0x58] sm:$0xff] %v895
    %960 = vst [vmem:[%s2 + $0x60] sm:$0xff] %v896
    %961 = vst [vmem:[%s2 + $0x68] sm:$0xff] %v897
    %962 = vst [vmem:[%s2 + $0x70] sm:$0xff] %v898
    %963 = vst [vmem:[%s2 + $0x78] sm:$0xff] %v899
    %964 = vst [vmem:[%s2 + $0x80] sm:$0xff] %v900
    %965 = vst [vmem:[%s2 + $0x88] sm:$0xff] %v901
    %966 = vst [vmem:[%s2 + $0x90] sm:$0xff] %v902
    %967 = vst [vmem:[%s2 + $0x98] sm:$0xff] %v903
    %968 = vst [vmem:[%s2 + $0xa0] sm:$0xff] %v904
    %969 = vst [vmem:[%s2 + $0xa8] sm:$0xff] %v905
    %970 = vst [vmem:[%s2 + $0xb0] sm:$0xff] %v906
    %971 = vst [vmem:[%s2 + $0xb8] sm:$0xff] %v907
    %972 = vst [vmem:[%s2 + $0xc0] sm:$0xff] %v908
    %973 = vst [vmem:[%s2 + $0xc8] sm:$0xff] %v909
    %974 = vst [vmem:[%s2 + $0xd0] sm:$0xff] %v910
    %975 = vst [vmem:[%s2 + $0xd8] sm:$0xff] %v911
    %976 = vst [vmem:[%s2 + $0xe0] sm:$0xff] %v912
    %977 = vst [vmem:[%s2 + $0xe8] sm:$0xff] %v913
    %978 = vst [vmem:[%s2 + $0xf0] sm:$0xff] %v914
    %979 = vst [vmem:[%s2 + $0xf8] sm:$0xff] %v915
    %980 = vst [vmem:[%s2 + $0x100] sm:$0xff] %v916
    %981 = vst [vmem:[%s2 + $0x108] sm:$0xff] %v917
    %982 = vst [vmem:[%s2 + $0x110] sm:$0xff] %v918
    %983 = vst [vmem:[%s2 + $0x118] sm:$0xff] %v919
    %984 = vst [vmem:[%s2 + $0x120] sm:$0xff] %v920
    %985 = vst [vmem:[%s2 + $0x128] sm:$0xff] %v921
    %986 = vst [vmem:[%s2 + $0x130] sm:$0xff] %v922
    %987 = vst [vmem:[%s2 + $0x138] sm:$0xff] %v923
    %988 = vst [vmem:[%s2 + $0x140] sm:$0xff] %v924
    %989 = vst [vmem:[%s2 + $0x148] sm:$0xff] %v925
    %990 = vst [vmem:[%s2 + $0x150] sm:$0xff] %v926
    %991 = vst [vmem:[%s2 + $0x158] sm:$0xff] %v927
    %992 = vst [vmem:[%s2 + $0x160] sm:$0xff] %v928
    %993 = vst [vmem:[%s2 + $0x168] sm:$0xff] %v929
    %994 = vst [vmem:[%s2 + $0x170] sm:$0xff] %v930
    %995 = vst [vmem:[%s2 + $0x178] sm:$0xff] %v931
    %996 = vst [vmem:[%s2 + $0x180] sm:$0xff] %v932
    %997 = vst [vmem:[%s2 + $0x188] sm:$0xff] %v933
    %998 = vst [vmem:[%s2 + $0x190] sm:$0xff] %v934
    %999 = vst [vmem:[%s2 + $0x198] sm:$0xff] %v935
    %1000 = vst [vmem:[%s2 + $0x1a0] sm:$0xff] %v936
    %1001 = vst [vmem:[%s2 + $0x1a8] sm:$0xff] %v937
    %1002 = vst [vmem:[%s2 + $0x1b0] sm:$0xff] %v938
    %1003 = vst [vmem:[%s2 + $0x1b8] sm:$0xff] %v939
    %1004 = vst [vmem:[%s2 + $0x1c0] sm:$0xff] %v940
    %1005 = vst [vmem:[%s2 + $0x1c8] sm:$0xff] %v941
    %1006 = vst [vmem:[%s2 + $0x1d0] sm:$0xff] %v942
    %1007 = vst [vmem:[%s2 + $0x1d8] sm:$0xff] %v943
    %1008 = vst [vmem:[%s2 + $0x1e0] sm:$0xff] %v944
    %1009 = vst [vmem:[%s2 + $0x1e8] sm:$0xff] %v945
    %1010 = vst [vmem:[%s2 + $0x1f0] sm:$0xff] %v946
    %1011 = vst [vmem:[%s2 + $0x1f8] sm:$0xff] %v947
  $region17: #{basic_block_forward.9} parent=0 // pred_fallthru
    _
  // Predicated region
  $region18: #{basic_block_forward.9} parent=0 // pred_check
    _
  $region19: #{basic_block_forward.9} parent=0 // pred_check_branch
    %1013 = sbr.rel (0) target = $region21
  $region20: #{basic_block_forward.9} parent=0 // pred_region
    _
  $region21: #{basic_block_forward.9} parent=0 // pred_fallthru
    _
  // Predicated region
  $region22: #{basic_block_forward.9} parent=0 // pred_check
    _
  $region23: #{basic_block_forward.9} parent=0 // pred_check_branch
    %1015 = sbr.rel (0) target = $region25
  $region24: #{basic_block_forward.9} parent=0 // pred_region
    _
  $region25: #{basic_block_forward.9} parent=0 // pred_fallthru
    _

// kernel: basic_block_forward.13
$region0: #{basic_block_forward.13}
  #allocation0 [shape = 'u32[]', space=smem, size = 0x4, offset = 0x4, fixed_abs, tag = 'smem constant byte address 0x4 - core index']
  #allocation1 [shape = 'u32[144,128]{1,0:T(1,128)}', space=vmem, size = 0x12000, scoped, tag = 'internal scratch']
  #allocation2 [shape = 'f32[512,128]{1,0:T(8,128)}', space=vmem, size = 0x40000, scoped, tag = 'scratch operand']
  %s0 = inlined_call_operand.vmem [shape: bf16[512,128], index: 0, kind: input, shape index: {}]
  %s1 = inlined_call_operand.vmem [shape: bf16[128,128], index: 1, kind: input, shape index: {}]
  %s2 = inlined_call_operand.vmem [shape: f32[512,128], index: 2, kind: input, shape index: {}]
  %s3 = inlined_call_operand.vmem [shape: f32[512,128], index: 3, kind: output, shape index: {}]
  %s4 = sld [smem:[#allocation0]]
  $region30: #{basic_block_forward.13} parent=0
    _
  %s6 = ssub.s32 1, %s4
  %s7 = scalar_select 0, %s6, %s4
  // Predicated region
  $region2: #{basic_block_forward.13} parent=0 // pred_check
    _
  $region3: #{basic_block_forward.13} parent=0 // pred_check_branch
    %9 = sbr.rel (0) target = $region5
  $region4: #{basic_block_forward.13} parent=0 // pred_region
    _
  $region5: #{basic_block_forward.13} parent=0 // pred_fallthru
    _
  // Predicated region
  $region6: #{basic_block_forward.13} parent=0 // pred_check
    _
  $region7: #{basic_block_forward.13} parent=0 // pred_check_branch
    %11 = sbr.rel (0) target = $region9
  $region8: #{basic_block_forward.13} parent=0 // pred_region
    _
  $region9: #{basic_block_forward.13} parent=0 // pred_fallthru
    _
  // Predicated region
  $region10: #{basic_block_forward.13} parent=0 // pred_check
    _
  $region11: #{basic_block_forward.13} parent=0 // pred_check_branch
    %13 = sbr.rel (0) target = $region13
  $region12: #{basic_block_forward.13} parent=0 // pred_region
    _
  $region13: #{basic_block_forward.13} parent=0 // pred_fallthru
    _
  %p15 = scmp.eq.s32.totalorder 0, 0
  // Predicated region
  $region14: #{basic_block_forward.13} parent=0 // pred_check
    %p16 = pneg %p15
  $region15: #{basic_block_forward.13} parent=0 // pred_check_branch
    %18 = sbr.rel (%p16) target = $region17
  $region16: #{basic_block_forward.13} parent=0 // pred_region
    %19 = vst [vmem:[#allocation2] sm:$0xff] 0.0
    %20 = vst [vmem:[#allocation2 + $0x8] sm:$0xff] 0.0
    %21 = vst [vmem:[#allocation2 + $0x10] sm:$0xff] 0.0
    %22 = vst [vmem:[#allocation2 + $0x18] sm:$0xff] 0.0
    %23 = vst [vmem:[#allocation2 + $0x20] sm:$0xff] 0.0
    %24 = vst [vmem:[#allocation2 + $0x28] sm:$0xff] 0.0
    %25 = vst [vmem:[#allocation2 + $0x30] sm:$0xff] 0.0
    %26 = vst [vmem:[#allocation2 + $0x38] sm:$0xff] 0.0
    %27 = vst [vmem:[#allocation2 + $0x40] sm:$0xff] 0.0
    %28 = vst [vmem:[#allocation2 + $0x48] sm:$0xff] 0.0
    %29 = vst [vmem:[#allocation2 + $0x50] sm:$0xff] 0.0
    %30 = vst [vmem:[#allocation2 + $0x58] sm:$0xff] 0.0
    %31 = vst [vmem:[#allocation2 + $0x60] sm:$0xff] 0.0
    %32 = vst [vmem:[#allocation2 + $0x68] sm:$0xff] 0.0
    %33 = vst [vmem:[#allocation2 + $0x70] sm:$0xff] 0.0
    %34 = vst [vmem:[#allocation2 + $0x78] sm:$0xff] 0.0
    %35 = vst [vmem:[#allocation2 + $0x80] sm:$0xff] 0.0
    %36 = vst [vmem:[#allocation2 + $0x88] sm:$0xff] 0.0
    %37 = vst [vmem:[#allocation2 + $0x90] sm:$0xff] 0.0
    %38 = vst [vmem:[#allocation2 + $0x98] sm:$0xff] 0.0
    %39 = vst [vmem:[#allocation2 + $0xa0] sm:$0xff] 0.0
    %40 = vst [vmem:[#allocation2 + $0xa8] sm:$0xff] 0.0
    %41 = vst [vmem:[#allocation2 + $0xb0] sm:$0xff] 0.0
    %42 = vst [vmem:[#allocation2 + $0xb8] sm:$0xff] 0.0
    %43 = vst [vmem:[#allocation2 + $0xc0] sm:$0xff] 0.0
    %44 = vst [vmem:[#allocation2 + $0xc8] sm:$0xff] 0.0
    %45 = vst [vmem:[#allocation2 + $0xd0] sm:$0xff] 0.0
    %46 = vst [vmem:[#allocation2 + $0xd8] sm:$0xff] 0.0
    %47 = vst [vmem:[#allocation2 + $0xe0] sm:$0xff] 0.0
    %48 = vst [vmem:[#allocation2 + $0xe8] sm:$0xff] 0.0
    %49 = vst [vmem:[#allocation2 + $0xf0] sm:$0xff] 0.0
    %50 = vst [vmem:[#allocation2 + $0xf8] sm:$0xff] 0.0
    %51 = vst [vmem:[#allocation2 + $0x100] sm:$0xff] 0.0
    %52 = vst [vmem:[#allocation2 + $0x108] sm:$0xff] 0.0
    %53 = vst [vmem:[#allocation2 + $0x110] sm:$0xff] 0.0
    %54 = vst [vmem:[#allocation2 + $0x118] sm:$0xff] 0.0
    %55 = vst [vmem:[#allocation2 + $0x120] sm:$0xff] 0.0
    %56 = vst [vmem:[#allocation2 + $0x128] sm:$0xff] 0.0
    %57 = vst [vmem:[#allocation2 + $0x130] sm:$0xff] 0.0
    %58 = vst [vmem:[#allocation2 + $0x138] sm:$0xff] 0.0
    %59 = vst [vmem:[#allocation2 + $0x140] sm:$0xff] 0.0
    %60 = vst [vmem:[#allocation2 + $0x148] sm:$0xff] 0.0
    %61 = vst [vmem:[#allocation2 + $0x150] sm:$0xff] 0.0
    %62 = vst [vmem:[#allocation2 + $0x158] sm:$0xff] 0.0
    %63 = vst [vmem:[#allocation2 + $0x160] sm:$0xff] 0.0
    %64 = vst [vmem:[#allocation2 + $0x168] sm:$0xff] 0.0
    %65 = vst [vmem:[#allocation2 + $0x170] sm:$0xff] 0.0
    %66 = vst [vmem:[#allocation2 + $0x178] sm:$0xff] 0.0
    %67 = vst [vmem:[#allocation2 + $0x180] sm:$0xff] 0.0
    %68 = vst [vmem:[#allocation2 + $0x188] sm:$0xff] 0.0
    %69 = vst [vmem:[#allocation2 + $0x190] sm:$0xff] 0.0
    %70 = vst [vmem:[#allocation2 + $0x198] sm:$0xff] 0.0
    %71 = vst [vmem:[#allocation2 + $0x1a0] sm:$0xff] 0.0
    %72 = vst [vmem:[#allocation2 + $0x1a8] sm:$0xff] 0.0
    %73 = vst [vmem:[#allocation2 + $0x1b0] sm:$0xff] 0.0
    %74 = vst [vmem:[#allocation2 + $0x1b8] sm:$0xff] 0.0
    %75 = vst [vmem:[#allocation2 + $0x1c0] sm:$0xff] 0.0
    %76 = vst [vmem:[#allocation2 + $0x1c8] sm:$0xff] 0.0
    %77 = vst [vmem:[#allocation2 + $0x1d0] sm:$0xff] 0.0
    %78 = vst [vmem:[#allocation2 + $0x1d8] sm:$0xff] 0.0
    %79 = vst [vmem:[#allocation2 + $0x1e0] sm:$0xff] 0.0
    %80 = vst [vmem:[#allocation2 + $0x1e8] sm:$0xff] 0.0
    %81 = vst [vmem:[#allocation2 + $0x1f0] sm:$0xff] 0.0
    %82 = vst [vmem:[#allocation2 + $0x1f8] sm:$0xff] 0.0
  $region17: #{basic_block_forward.13} parent=0 // pred_fallthru
    _
  %v83 = vld [vmem:[#allocation2] sm:$0xff]
  %v84 = vld [vmem:[#allocation2 + $0x8] sm:$0xff]
  %v85 = vld [vmem:[#allocation2 + $0x10] sm:$0xff]
  %v86 = vld [vmem:[#allocation2 + $0x18] sm:$0xff]
  %v87 = vld [vmem:[#allocation2 + $0x20] sm:$0xff]
  %v88 = vld [vmem:[#allocation2 + $0x28] sm:$0xff]
  %v89 = vld [vmem:[#allocation2 + $0x30] sm:$0xff]
  %v90 = vld [vmem:[#allocation2 + $0x38] sm:$0xff]
  %v91 = vld [vmem:[#allocation2 + $0x40] sm:$0xff]
  %v92 = vld [vmem:[#allocation2 + $0x48] sm:$0xff]
  %v93 = vld [vmem:[#allocation2 + $0x50] sm:$0xff]
  %v94 = vld [vmem:[#allocation2 + $0x58] sm:$0xff]
  %v95 = vld [vmem:[#allocation2 + $0x60] sm:$0xff]
  %v96 = vld [vmem:[#allocation2 + $0x68] sm:$0xff]
  %v97 = vld [vmem:[#allocation2 + $0x70] sm:$0xff]
  %v98 = vld [vmem:[#allocation2 + $0x78] sm:$0xff]
  %v99 = vld [vmem:[#allocation2 + $0x80] sm:$0xff]
  %v100 = vld [vmem:[#allocation2 + $0x88] sm:$0xff]
  %v101 = vld [vmem:[#allocation2 + $0x90] sm:$0xff]
  %v102 = vld [vmem:[#allocation2 + $0x98] sm:$0xff]
  %v103 = vld [vmem:[#allocation2 + $0xa0] sm:$0xff]
  %v104 = vld [vmem:[#allocation2 + $0xa8] sm:$0xff]
  %v105 = vld [vmem:[#allocation2 + $0xb0] sm:$0xff]
  %v106 = vld [vmem:[#allocation2 + $0xb8] sm:$0xff]
  %v107 = vld [vmem:[#allocation2 + $0xc0] sm:$0xff]
  %v108 = vld [vmem:[#allocation2 + $0xc8] sm:$0xff]
  %v109 = vld [vmem:[#allocation2 + $0xd0] sm:$0xff]
  %v110 = vld [vmem:[#allocation2 + $0xd8] sm:$0xff]
  %v111 = vld [vmem:[#allocation2 + $0xe0] sm:$0xff]
  %v112 = vld [vmem:[#allocation2 + $0xe8] sm:$0xff]
  %v113 = vld [vmem:[#allocation2 + $0xf0] sm:$0xff]
  %v114 = vld [vmem:[#allocation2 + $0xf8] sm:$0xff]
  %v115 = vld [vmem:[#allocation2 + $0x100] sm:$0xff]
  %v116 = vld [vmem:[#allocation2 + $0x108] sm:$0xff]
  %v117 = vld [vmem:[#allocation2 + $0x110] sm:$0xff]
  %v118 = vld [vmem:[#allocation2 + $0x118] sm:$0xff]
  %v119 = vld [vmem:[#allocation2 + $0x120] sm:$0xff]
  %v120 = vld [vmem:[#allocation2 + $0x128] sm:$0xff]
  %v121 = vld [vmem:[#allocation2 + $0x130] sm:$0xff]
  %v122 = vld [vmem:[#allocation2 + $0x138] sm:$0xff]
  %v123 = vld [vmem:[#allocation2 + $0x140] sm:$0xff]
  %v124 = vld [vmem:[#allocation2 + $0x148] sm:$0xff]
  %v125 = vld [vmem:[#allocation2 + $0x150] sm:$0xff]
  %v126 = vld [vmem:[#allocation2 + $0x158] sm:$0xff]
  %v127 = vld [vmem:[#allocation2 + $0x160] sm:$0xff]
  %v128 = vld [vmem:[#allocation2 + $0x168] sm:$0xff]
  %v129 = vld [vmem:[#allocation2 + $0x170] sm:$0xff]
  %v130 = vld [vmem:[#allocation2 + $0x178] sm:$0xff]
  %v131 = vld [vmem:[#allocation2 + $0x180] sm:$0xff]
  %v132 = vld [vmem:[#allocation2 + $0x188] sm:$0xff]
  %v133 = vld [vmem:[#allocation2 + $0x190] sm:$0xff]
  %v134 = vld [vmem:[#allocation2 + $0x198] sm:$0xff]
  %v135 = vld [vmem:[#allocation2 + $0x1a0] sm:$0xff]
  %v136 = vld [vmem:[#allocation2 + $0x1a8] sm:$0xff]
  %v137 = vld [vmem:[#allocation2 + $0x1b0] sm:$0xff]
  %v138 = vld [vmem:[#allocation2 + $0x1b8] sm:$0xff]
  %v139 = vld [vmem:[#allocation2 + $0x1c0] sm:$0xff]
  %v140 = vld [vmem:[#allocation2 + $0x1c8] sm:$0xff]
  %v141 = vld [vmem:[#allocation2 + $0x1d0] sm:$0xff]
  %v142 = vld [vmem:[#allocation2 + $0x1d8] sm:$0xff]
  %v143 = vld [vmem:[#allocation2 + $0x1e0] sm:$0xff]
  %v144 = vld [vmem:[#allocation2 + $0x1e8] sm:$0xff]
  %v145 = vld [vmem:[#allocation2 + $0x1f0] sm:$0xff]
  %v146 = vld [vmem:[#allocation2 + $0x1f8] sm:$0xff]
  %v147 = vld [vmem:[%s0] sm:$0xf]
  %v148 = vld [vmem:[%s0 + $0x4] sm:$0xf]
  %v149 = vld [vmem:[%s0 + $0x8] sm:$0xf]
  %v150 = vld [vmem:[%s0 + $0xc] sm:$0xf]
  %v151 = vld [vmem:[%s0 + $0x10] sm:$0xf]
  %v152 = vld [vmem:[%s0 + $0x14] sm:$0xf]
  %v153 = vld [vmem:[%s0 + $0x18] sm:$0xf]
  %v154 = vld [vmem:[%s0 + $0x1c] sm:$0xf]
  %v155 = vld [vmem:[%s0 + $0x20] sm:$0xf]
  %v156 = vld [vmem:[%s0 + $0x24] sm:$0xf]
  %v157 = vld [vmem:[%s0 + $0x28] sm:$0xf]
  %v158 = vld [vmem:[%s0 + $0x2c] sm:$0xf]
  %v159 = vld [vmem:[%s0 + $0x30] sm:$0xf]
  %v160 = vld [vmem:[%s0 + $0x34] sm:$0xf]
  %v161 = vld [vmem:[%s0 + $0x38] sm:$0xf]
  %v162 = vld [vmem:[%s0 + $0x3c] sm:$0xf]
  %v163 = vld [vmem:[%s0 + $0x40] sm:$0xf]
  %v164 = vld [vmem:[%s0 + $0x44] sm:$0xf]
  %v165 = vld [vmem:[%s0 + $0x48] sm:$0xf]
  %v166 = vld [vmem:[%s0 + $0x4c] sm:$0xf]
  %v167 = vld [vmem:[%s0 + $0x50] sm:$0xf]
  %v168 = vld [vmem:[%s0 + $0x54] sm:$0xf]
  %v169 = vld [vmem:[%s0 + $0x58] sm:$0xf]
  %v170 = vld [vmem:[%s0 + $0x5c] sm:$0xf]
  %v171 = vld [vmem:[%s0 + $0x60] sm:$0xf]
  %v172 = vld [vmem:[%s0 + $0x64] sm:$0xf]
  %v173 = vld [vmem:[%s0 + $0x68] sm:$0xf]
  %v174 = vld [vmem:[%s0 + $0x6c] sm:$0xf]
  %v175 = vld [vmem:[%s0 + $0x70] sm:$0xf]
  %v176 = vld [vmem:[%s0 + $0x74] sm:$0xf]
  %v177 = vld [vmem:[%s0 + $0x78] sm:$0xf]
  %v178 = vld [vmem:[%s0 + $0x7c] sm:$0xf]
  %v179 = vld [vmem:[%s0 + $0x80] sm:$0xf]
  %v180 = vld [vmem:[%s0 + $0x84] sm:$0xf]
  %v181 = vld [vmem:[%s0 + $0x88] sm:$0xf]
  %v182 = vld [vmem:[%s0 + $0x8c] sm:$0xf]
  %v183 = vld [vmem:[%s0 + $0x90] sm:$0xf]
  %v184 = vld [vmem:[%s0 + $0x94] sm:$0xf]
  %v185 = vld [vmem:[%s0 + $0x98] sm:$0xf]
  %v186 = vld [vmem:[%s0 + $0x9c] sm:$0xf]
  %v187 = vld [vmem:[%s0 + $0xa0] sm:$0xf]
  %v188 = vld [vmem:[%s0 + $0xa4] sm:$0xf]
  %v189 = vld [vmem:[%s0 + $0xa8] sm:$0xf]
  %v190 = vld [vmem:[%s0 + $0xac] sm:$0xf]
  %v191 = vld [vmem:[%s0 + $0xb0] sm:$0xf]
  %v192 = vld [vmem:[%s0 + $0xb4] sm:$0xf]
  %v193 = vld [vmem:[%s0 + $0xb8] sm:$0xf]
  %v194 = vld [vmem:[%s0 + $0xbc] sm:$0xf]
  %v195 = vld [vmem:[%s0 + $0xc0] sm:$0xf]
  %v196 = vld [vmem:[%s0 + $0xc4] sm:$0xf]
  %v197 = vld [vmem:[%s0 + $0xc8] sm:$0xf]
  %v198 = vld [vmem:[%s0 + $0xcc] sm:$0xf]
  %v199 = vld [vmem:[%s0 + $0xd0] sm:$0xf]
  %v200 = vld [vmem:[%s0 + $0xd4] sm:$0xf]
  %v201 = vld [vmem:[%s0 + $0xd8] sm:$0xf]
  %v202 = vld [vmem:[%s0 + $0xdc] sm:$0xf]
  %v203 = vld [vmem:[%s0 + $0xe0] sm:$0xf]
  %v204 = vld [vmem:[%s0 + $0xe4] sm:$0xf]
  %v205 = vld [vmem:[%s0 + $0xe8] sm:$0xf]
  %v206 = vld [vmem:[%s0 + $0xec] sm:$0xf]
  %v207 = vld [vmem:[%s0 + $0xf0] sm:$0xf]
  %v208 = vld [vmem:[%s0 + $0xf4] sm:$0xf]
  %v209 = vld [vmem:[%s0 + $0xf8] sm:$0xf]
  %v210 = vld [vmem:[%s0 + $0xfc] sm:$0xf]
  %v211 = vld [vmem:[%s1] sm:$0xf]
  %v212 = vld [vmem:[%s1 + $0x4] sm:$0xf]
  %v213 = vld [vmem:[%s1 + $0x8] sm:$0xf]
  %v214 = vld [vmem:[%s1 + $0xc] sm:$0xf]
  %v215 = vld [vmem:[%s1 + $0x10] sm:$0xf]
  %v216 = vld [vmem:[%s1 + $0x14] sm:$0xf]
  %v217 = vld [vmem:[%s1 + $0x18] sm:$0xf]
  %v218 = vld [vmem:[%s1 + $0x1c] sm:$0xf]
  %v219 = vld [vmem:[%s1 + $0x20] sm:$0xf]
  %v220 = vld [vmem:[%s1 + $0x24] sm:$0xf]
  %v221 = vld [vmem:[%s1 + $0x28] sm:$0xf]
  %v222 = vld [vmem:[%s1 + $0x2c] sm:$0xf]
  %v223 = vld [vmem:[%s1 + $0x30] sm:$0xf]
  %v224 = vld [vmem:[%s1 + $0x34] sm:$0xf]
  %v225 = vld [vmem:[%s1 + $0x38] sm:$0xf]
  %v226 = vld [vmem:[%s1 + $0x3c] sm:$0xf]
  %v291 = vunpack.c.l.b16 %v147
  %v292 = vunpack.c.l.b16 %v148
  %v293 = vunpack.c.l.b16 %v149
  %v294 = vunpack.c.l.b16 %v150
  %v295 = vunpack.c.l.b16 %v151
  %v296 = vunpack.c.l.b16 %v152
  %v297 = vunpack.c.l.b16 %v153
  %v298 = vunpack.c.l.b16 %v154
  %v299 = vunpack.c.l.b16 %v155
  %v300 = vunpack.c.l.b16 %v156
  %v301 = vunpack.c.l.b16 %v157
  %v302 = vunpack.c.l.b16 %v158
  %v303 = vunpack.c.l.b16 %v159
  %v304 = vunpack.c.l.b16 %v160
  %v305 = vunpack.c.l.b16 %v161
  %v306 = vunpack.c.l.b16 %v162
  %v307 = vunpack.c.l.b16 %v163
  %v308 = vunpack.c.l.b16 %v164
  %v309 = vunpack.c.l.b16 %v165
  %v310 = vunpack.c.l.b16 %v166
  %v311 = vunpack.c.l.b16 %v167
  %v312 = vunpack.c.l.b16 %v168
  %v313 = vunpack.c.l.b16 %v169
  %v314 = vunpack.c.l.b16 %v170
  %v315 = vunpack.c.l.b16 %v171
  %v316 = vunpack.c.l.b16 %v172
  %v317 = vunpack.c.l.b16 %v173
  %v318 = vunpack.c.l.b16 %v174
  %v319 = vunpack.c.l.b16 %v175
  %v320 = vunpack.c.l.b16 %v176
  %v321 = vunpack.c.l.b16 %v177
  %v322 = vunpack.c.l.b16 %v178
  %v323 = vunpack.c.l.b16 %v179
  %v324 = vunpack.c.l.b16 %v180
  %v325 = vunpack.c.l.b16 %v181
  %v326 = vunpack.c.l.b16 %v182
  %v327 = vunpack.c.l.b16 %v183
  %v328 = vunpack.c.l.b16 %v184
  %v329 = vunpack.c.l.b16 %v185
  %v330 = vunpack.c.l.b16 %v186
  %v331 = vunpack.c.l.b16 %v187
  %v332 = vunpack.c.l.b16 %v188
  %v333 = vunpack.c.l.b16 %v189
  %v334 = vunpack.c.l.b16 %v190
  %v335 = vunpack.c.l.b16 %v191
  %v336 = vunpack.c.l.b16 %v192
  %v337 = vunpack.c.l.b16 %v193
  %v338 = vunpack.c.l.b16 %v194
  %v339 = vunpack.c.l.b16 %v195
  %v340 = vunpack.c.l.b16 %v196
  %v341 = vunpack.c.l.b16 %v197
  %v342 = vunpack.c.l.b16 %v198
  %v343 = vunpack.c.l.b16 %v199
  %v344 = vunpack.c.l.b16 %v200
  %v345 = vunpack.c.l.b16 %v201
  %v346 = vunpack.c.l.b16 %v202
  %v347 = vunpack.c.l.b16 %v203
  %v348 = vunpack.c.l.b16 %v204
  %v349 = vunpack.c.l.b16 %v205
  %v350 = vunpack.c.l.b16 %v206
  %v351 = vunpack.c.l.b16 %v207
  %v352 = vunpack.c.l.b16 %v208
  %v353 = vunpack.c.l.b16 %v209
  %v354 = vunpack.c.l.b16 %v210
  %v355 = vpack.c.b16 %v292, %v291
  %v356 = vpack.c.b16 %v294, %v293
  %v357 = vpack.c.b16 %v296, %v295
  %v358 = vpack.c.b16 %v298, %v297
  %v359 = vpack.c.b16 %v300, %v299
  %v360 = vpack.c.b16 %v302, %v301
  %v361 = vpack.c.b16 %v304, %v303
  %v362 = vpack.c.b16 %v306, %v305
  %v363 = vpack.c.b16 %v308, %v307
  %v364 = vpack.c.b16 %v310, %v309
  %v365 = vpack.c.b16 %v312, %v311
  %v366 = vpack.c.b16 %v314, %v313
  %v367 = vpack.c.b16 %v316, %v315
  %v368 = vpack.c.b16 %v318, %v317
  %v369 = vpack.c.b16 %v320, %v319
  %v370 = vpack.c.b16 %v322, %v321
  %v371 = vpack.c.b16 %v324, %v323
  %v372 = vpack.c.b16 %v326, %v325
  %v373 = vpack.c.b16 %v328, %v327
  %v374 = vpack.c.b16 %v330, %v329
  %v375 = vpack.c.b16 %v332, %v331
  %v376 = vpack.c.b16 %v334, %v333
  %v377 = vpack.c.b16 %v336, %v335
  %v378 = vpack.c.b16 %v338, %v337
  %v379 = vpack.c.b16 %v340, %v339
  %v380 = vpack.c.b16 %v342, %v341
  %v381 = vpack.c.b16 %v344, %v343
  %v382 = vpack.c.b16 %v346, %v345
  %v383 = vpack.c.b16 %v348, %v347
  %v384 = vpack.c.b16 %v350, %v349
  %v385 = vpack.c.b16 %v352, %v351
  %v386 = vpack.c.b16 %v354, %v353
  %v435 = vunpack.c.l.b16 %v211
  %v436 = vunpack.c.l.b16 %v212
  %v437 = vunpack.c.l.b16 %v213
  %v438 = vunpack.c.l.b16 %v214
  %v439 = vunpack.c.l.b16 %v215
  %v440 = vunpack.c.l.b16 %v216
  %v441 = vunpack.c.l.b16 %v217
  %v442 = vunpack.c.l.b16 %v218
  %v443 = vunpack.c.l.b16 %v219
  %v444 = vunpack.c.l.b16 %v220
  %v445 = vunpack.c.l.b16 %v221
  %v446 = vunpack.c.l.b16 %v222
  %v447 = vunpack.c.l.b16 %v223
  %v448 = vunpack.c.l.b16 %v224
  %v449 = vunpack.c.l.b16 %v225
  %v450 = vunpack.c.l.b16 %v226
  %v451 = vpack.c.b16 %v436, %v435
  %v452 = vpack.c.b16 %v438, %v437
  %v453 = vpack.c.b16 %v440, %v439
  %v454 = vpack.c.b16 %v442, %v441
  %v455 = vpack.c.b16 %v444, %v443
  %v456 = vpack.c.b16 %v446, %v445
  %v457 = vpack.c.b16 %v448, %v447
  %v458 = vpack.c.b16 %v450, %v449
  %467 = vmatprep.subr.bf16.mxu0 0
  %468 = vmatpush1.bf16.msra.mxu0 %v451
  %469 = vmatprep.subr.bf16.mxu0 0
  %470 = vmatpush1.bf16.msra.mxu0 %v452
  %471 = vmatprep.subr.bf16.mxu0 0
  %472 = vmatpush1.bf16.msra.mxu0 %v453
  %473 = vmatprep.subr.bf16.mxu0 0
  %474 = vmatpush1.bf16.msra.mxu0 %v454
  %475 = vmatprep.subr.bf16.mxu0 0
  %476 = vmatpush1.bf16.msra.mxu0 %v455
  %477 = vmatprep.subr.bf16.mxu0 0
  %478 = vmatpush1.bf16.msra.mxu0 %v456
  %479 = vmatprep.subr.bf16.mxu0 0
  %480 = vmatpush1.bf16.msra.mxu0 %v457
  %481 = vmatprep.subr.bf16.mxu0 0
  %482 = vmatpush1.bf16.msra.mxu0 %v458
  %483 = vmatprep.subr.bf16.mxu0 0
  %484 = vmatpush1.bf16.msra.mxu0 0
  %485 = vmatprep.subr.bf16.mxu0 0
  %486 = vmatpush1.bf16.msra.mxu0 0
  %487 = vmatprep.subr.bf16.mxu0 0
  %488 = vmatpush1.bf16.msra.mxu0 0
  %489 = vmatprep.subr.bf16.mxu0 0
  %490 = vmatpush1.bf16.msra.mxu0 0
  %491 = vmatprep.subr.bf16.mxu0 0
  %492 = vmatpush1.bf16.msra.mxu0 0
  %493 = vmatprep.subr.bf16.mxu0 0
  %494 = vmatpush1.bf16.msra.mxu0 0
  %495 = vmatprep.subr.bf16.mxu0 0
  %496 = vmatpush1.bf16.msra.mxu0 0
  %497 = vmatprep.subr.bf16.mxu0 0
  %498 = vmatpush1.bf16.msra.mxu0 0
  %499 = vmatprep.mubr.bf16.mxu0 0
  %500 = vmatmul.mubr.bf16.gmra.mrb[0].mxu0 %v355
  %v501 = vpop.f32.mrb[0].mxu0
  %v502 = vadd.f32 0.0, %v501
  %v503 = vpop.f32.mrb[0].mxu0
  %v504 = vpop.f32.mrb[0].mxu0
  %v505 = vadd.f32 0.0, %v504
  %v506 = vpop.f32.mrb[0].mxu0
  %507 = vmatprep.mubr.bf16.mxu0 0
  %508 = vmatmul.mubr.bf16.gmra.mrb[0].mxu0 %v356
  %v509 = vpop.f32.mrb[0].mxu0
  %v510 = vadd.f32 0.0, %v509
  %v511 = vpop.f32.mrb[0].mxu0
  %v512 = vpop.f32.mrb[0].mxu0
  %v513 = vadd.f32 0.0, %v512
  %v514 = vpop.f32.mrb[0].mxu0
  %515 = vmatprep.mubr.bf16.mxu0 0
  %516 = vmatmul.mubr.bf16.gmra.mrb[0].mxu0 %v357
  %v517 = vpop.f32.mrb[0].mxu0
  %v518 = vadd.f32 0.0, %v517
  %v519 = vpop.f32.mrb[0].mxu0
  %v520 = vpop.f32.mrb[0].mxu0
  %v521 = vadd.f32 0.0, %v520
  %v522 = vpop.f32.mrb[0].mxu0
  %523 = vmatprep.mubr.bf16.mxu0 0
  %524 = vmatmul.mubr.bf16.gmra.mrb[0].mxu0 %v358
  %v525 = vpop.f32.mrb[0].mxu0
  %v526 = vadd.f32 0.0, %v525
  %v527 = vpop.f32.mrb[0].mxu0
  %v528 = vpop.f32.mrb[0].mxu0
  %v529 = vadd.f32 0.0, %v528
  %v530 = vpop.f32.mrb[0].mxu0
  %531 = vmatprep.mubr.bf16.mxu0 0
  %532 = vmatmul.mubr.bf16.gmra.mrb[0].mxu0 %v359
  %v533 = vpop.f32.mrb[0].mxu0
  %v534 = vadd.f32 0.0, %v533
  %v535 = vpop.f32.mrb[0].mxu0
  %v536 = vpop.f32.mrb[0].mxu0
  %v537 = vadd.f32 0.0, %v536
  %v538 = vpop.f32.mrb[0].mxu0
  %539 = vmatprep.mubr.bf16.mxu0 0
  %540 = vmatmul.mubr.bf16.gmra.mrb[0].mxu0 %v360
  %v541 = vpop.f32.mrb[0].mxu0
  %v542 = vadd.f32 0.0, %v541
  %v543 = vpop.f32.mrb[0].mxu0
  %v544 = vpop.f32.mrb[0].mxu0
  %v545 = vadd.f32 0.0, %v544
  %v546 = vpop.f32.mrb[0].mxu0
  %547 = vmatprep.mubr.bf16.mxu0 0
  %548 = vmatmul.mubr.bf16.gmra.mrb[0].mxu0 %v361
  %v549 = vpop.f32.mrb[0].mxu0
  %v550 = vadd.f32 0.0, %v549
  %v551 = vpop.f32.mrb[0].mxu0
  %v552 = vpop.f32.mrb[0].mxu0
  %v553 = vadd.f32 0.0, %v552
  %v554 = vpop.f32.mrb[0].mxu0
  %555 = vmatprep.mubr.bf16.mxu0 0
  %556 = vmatmul.mubr.bf16.gmra.mrb[0].mxu0 %v362
  %v557 = vpop.f32.mrb[0].mxu0
  %v558 = vadd.f32 0.0, %v557
  %v559 = vpop.f32.mrb[0].mxu0
  %v560 = vpop.f32.mrb[0].mxu0
  %v561 = vadd.f32 0.0, %v560
  %v562 = vpop.f32.mrb[0].mxu0
  %563 = vmatprep.mubr.bf16.mxu0 0
  %564 = vmatmul.mubr.bf16.gmra.mrb[0].mxu0 %v363
  %v565 = vpop.f32.mrb[0].mxu0
  %v566 = vadd.f32 0.0, %v565
  %v567 = vpop.f32.mrb[0].mxu0
  %v568 = vpop.f32.mrb[0].mxu0
  %v569 = vadd.f32 0.0, %v568
  %v570 = vpop.f32.mrb[0].mxu0
  %571 = vmatprep.mubr.bf16.mxu0 0
  %572 = vmatmul.mubr.bf16.gmra.mrb[0].mxu0 %v364
  %v573 = vpop.f32.mrb[0].mxu0
  %v574 = vadd.f32 0.0, %v573
  %v575 = vpop.f32.mrb[0].mxu0
  %v576 = vpop.f32.mrb[0].mxu0
  %v577 = vadd.f32 0.0, %v576
  %v578 = vpop.f32.mrb[0].mxu0
  %579 = vmatprep.mubr.bf16.mxu0 0
  %580 = vmatmul.mubr.bf16.gmra.mrb[0].mxu0 %v365
  %v581 = vpop.f32.mrb[0].mxu0
  %v582 = vadd.f32 0.0, %v581
  %v583 = vpop.f32.mrb[0].mxu0
  %v584 = vpop.f32.mrb[0].mxu0
  %v585 = vadd.f32 0.0, %v584
  %v586 = vpop.f32.mrb[0].mxu0
  %587 = vmatprep.mubr.bf16.mxu0 0
  %588 = vmatmul.mubr.bf16.gmra.mrb[0].mxu0 %v366
  %v589 = vpop.f32.mrb[0].mxu0
  %v590 = vadd.f32 0.0, %v589
  %v591 = vpop.f32.mrb[0].mxu0
  %v592 = vpop.f32.mrb[0].mxu0
  %v593 = vadd.f32 0.0, %v592
  %v594 = vpop.f32.mrb[0].mxu0
  %595 = vmatprep.mubr.bf16.mxu0 0
  %596 = vmatmul.mubr.bf16.gmra.mrb[0].mxu0 %v367
  %v597 = vpop.f32.mrb[0].mxu0
  %v598 = vadd.f32 0.0, %v597
  %v599 = vpop.f32.mrb[0].mxu0
  %v600 = vpop.f32.mrb[0].mxu0
  %v601 = vadd.f32 0.0, %v600
  %v602 = vpop.f32.mrb[0].mxu0
  %603 = vmatprep.mubr.bf16.mxu0 0
  %604 = vmatmul.mubr.bf16.gmra.mrb[0].mxu0 %v368
  %v605 = vpop.f32.mrb[0].mxu0
  %v606 = vadd.f32 0.0, %v605
  %v607 = vpop.f32.mrb[0].mxu0
  %v608 = vpop.f32.mrb[0].mxu0
  %v609 = vadd.f32 0.0, %v608
  %v610 = vpop.f32.mrb[0].mxu0
  %611 = vmatprep.mubr.bf16.mxu0 0
  %612 = vmatmul.mubr.bf16.gmra.mrb[0].mxu0 %v369
  %v613 = vpop.f32.mrb[0].mxu0
  %v614 = vadd.f32 0.0, %v613
  %v615 = vpop.f32.mrb[0].mxu0
  %v616 = vpop.f32.mrb[0].mxu0
  %v617 = vadd.f32 0.0, %v616
  %v618 = vpop.f32.mrb[0].mxu0
  %619 = vmatprep.mubr.bf16.mxu0 0
  %620 = vmatmul.mubr.bf16.gmra.mrb[0].mxu0 %v370
  %v621 = vpop.f32.mrb[0].mxu0
  %v622 = vadd.f32 0.0, %v621
  %v623 = vpop.f32.mrb[0].mxu0
  %v624 = vpop.f32.mrb[0].mxu0
  %v625 = vadd.f32 0.0, %v624
  %v626 = vpop.f32.mrb[0].mxu0
  %627 = vmatprep.mubr.bf16.mxu0 0
  %628 = vmatmul.mubr.bf16.gmra.mrb[0].mxu0 %v371
  %v629 = vpop.f32.mrb[0].mxu0
  %v630 = vadd.f32 0.0, %v629
  %v631 = vpop.f32.mrb[0].mxu0
  %v632 = vpop.f32.mrb[0].mxu0
  %v633 = vadd.f32 0.0, %v632
  %v634 = vpop.f32.mrb[0].mxu0
  %635 = vmatprep.mubr.bf16.mxu0 0
  %636 = vmatmul.mubr.bf16.gmra.mrb[0].mxu0 %v372
  %v637 = vpop.f32.mrb[0].mxu0
  %v638 = vadd.f32 0.0, %v637
  %v639 = vpop.f32.mrb[0].mxu0
  %v640 = vpop.f32.mrb[0].mxu0
  %v641 = vadd.f32 0.0, %v640
  %v642 = vpop.f32.mrb[0].mxu0
  %643 = vmatprep.mubr.bf16.mxu0 0
  %644 = vmatmul.mubr.bf16.gmra.mrb[0].mxu0 %v373
  %v645 = vpop.f32.mrb[0].mxu0
  %v646 = vadd.f32 0.0, %v645
  %v647 = vpop.f32.mrb[0].mxu0
  %v648 = vpop.f32.mrb[0].mxu0
  %v649 = vadd.f32 0.0, %v648
  %v650 = vpop.f32.mrb[0].mxu0
  %651 = vmatprep.mubr.bf16.mxu0 0
  %652 = vmatmul.mubr.bf16.gmra.mrb[0].mxu0 %v374
  %v653 = vpop.f32.mrb[0].mxu0
  %v654 = vadd.f32 0.0, %v653
  %v655 = vpop.f32.mrb[0].mxu0
  %v656 = vpop.f32.mrb[0].mxu0
  %v657 = vadd.f32 0.0, %v656
  %v658 = vpop.f32.mrb[0].mxu0
  %659 = vmatprep.mubr.bf16.mxu0 0
  %660 = vmatmul.mubr.bf16.gmra.mrb[0].mxu0 %v375
  %v661 = vpop.f32.mrb[0].mxu0
  %v662 = vadd.f32 0.0, %v661
  %v663 = vpop.f32.mrb[0].mxu0
  %v664 = vpop.f32.mrb[0].mxu0
  %v665 = vadd.f32 0.0, %v664
  %v666 = vpop.f32.mrb[0].mxu0
  %667 = vmatprep.mubr.bf16.mxu0 0
  %668 = vmatmul.mubr.bf16.gmra.mrb[0].mxu0 %v376
  %v669 = vpop.f32.mrb[0].mxu0
  %v670 = vadd.f32 0.0, %v669
  %v671 = vpop.f32.mrb[0].mxu0
  %v672 = vpop.f32.mrb[0].mxu0
  %v673 = vadd.f32 0.0, %v672
  %v674 = vpop.f32.mrb[0].mxu0
  %675 = vmatprep.mubr.bf16.mxu0 0
  %676 = vmatmul.mubr.bf16.gmra.mrb[0].mxu0 %v377
  %v677 = vpop.f32.mrb[0].mxu0
  %v678 = vadd.f32 0.0, %v677
  %v679 = vpop.f32.mrb[0].mxu0
  %v680 = vpop.f32.mrb[0].mxu0
  %v681 = vadd.f32 0.0, %v680
  %v682 = vpop.f32.mrb[0].mxu0
  %683 = vmatprep.mubr.bf16.mxu0 0
  %684 = vmatmul.mubr.bf16.gmra.mrb[0].mxu0 %v378
  %v685 = vpop.f32.mrb[0].mxu0
  %v686 = vadd.f32 0.0, %v685
  %v687 = vpop.f32.mrb[0].mxu0
  %v688 = vpop.f32.mrb[0].mxu0
  %v689 = vadd.f32 0.0, %v688
  %v690 = vpop.f32.mrb[0].mxu0
  %691 = vmatprep.mubr.bf16.mxu0 0
  %692 = vmatmul.mubr.bf16.gmra.mrb[0].mxu0 %v379
  %v693 = vpop.f32.mrb[0].mxu0
  %v694 = vadd.f32 0.0, %v693
  %v695 = vpop.f32.mrb[0].mxu0
  %v696 = vpop.f32.mrb[0].mxu0
  %v697 = vadd.f32 0.0, %v696
  %v698 = vpop.f32.mrb[0].mxu0
  %699 = vmatprep.mubr.bf16.mxu0 0
  %700 = vmatmul.mubr.bf16.gmra.mrb[0].mxu0 %v380
  %v701 = vpop.f32.mrb[0].mxu0
  %v702 = vadd.f32 0.0, %v701
  %v703 = vpop.f32.mrb[0].mxu0
  %v704 = vpop.f32.mrb[0].mxu0
  %v705 = vadd.f32 0.0, %v704
  %v706 = vpop.f32.mrb[0].mxu0
  %707 = vmatprep.mubr.bf16.mxu0 0
  %708 = vmatmul.mubr.bf16.gmra.mrb[0].mxu0 %v381
  %v709 = vpop.f32.mrb[0].mxu0
  %v710 = vadd.f32 0.0, %v709
  %v711 = vpop.f32.mrb[0].mxu0
  %v712 = vpop.f32.mrb[0].mxu0
  %v713 = vadd.f32 0.0, %v712
  %v714 = vpop.f32.mrb[0].mxu0
  %715 = vmatprep.mubr.bf16.mxu0 0
  %716 = vmatmul.mubr.bf16.gmra.mrb[0].mxu0 %v382
  %v717 = vpop.f32.mrb[0].mxu0
  %v718 = vadd.f32 0.0, %v717
  %v719 = vpop.f32.mrb[0].mxu0
  %v720 = vpop.f32.mrb[0].mxu0
  %v721 = vadd.f32 0.0, %v720
  %v722 = vpop.f32.mrb[0].mxu0
  %723 = vmatprep.mubr.bf16.mxu0 0
  %724 = vmatmul.mubr.bf16.gmra.mrb[0].mxu0 %v383
  %v725 = vpop.f32.mrb[0].mxu0
  %v726 = vadd.f32 0.0, %v725
  %v727 = vpop.f32.mrb[0].mxu0
  %v728 = vpop.f32.mrb[0].mxu0
  %v729 = vadd.f32 0.0, %v728
  %v730 = vpop.f32.mrb[0].mxu0
  %731 = vmatprep.mubr.bf16.mxu0 0
  %732 = vmatmul.mubr.bf16.gmra.mrb[0].mxu0 %v384
  %v733 = vpop.f32.mrb[0].mxu0
  %v734 = vadd.f32 0.0, %v733
  %v735 = vpop.f32.mrb[0].mxu0
  %v736 = vpop.f32.mrb[0].mxu0
  %v737 = vadd.f32 0.0, %v736
  %v738 = vpop.f32.mrb[0].mxu0
  %739 = vmatprep.mubr.bf16.mxu0 0
  %740 = vmatmul.mubr.bf16.gmra.mrb[0].mxu0 %v385
  %v741 = vpop.f32.mrb[0].mxu0
  %v742 = vadd.f32 0.0, %v741
  %v743 = vpop.f32.mrb[0].mxu0
  %v744 = vpop.f32.mrb[0].mxu0
  %v745 = vadd.f32 0.0, %v744
  %v746 = vpop.f32.mrb[0].mxu0
  %747 = vmatprep.mubr.bf16.mxu0 0
  %748 = vmatmul.mubr.bf16.gmra.mrb[0].mxu0 %v386
  %v749 = vpop.f32.mrb[0].mxu0
  %v750 = vadd.f32 0.0, %v749
  %v751 = vpop.f32.mrb[0].mxu0
  %v752 = vpop.f32.mrb[0].mxu0
  %v753 = vadd.f32 0.0, %v752
  %v754 = vpop.f32.mrb[0].mxu0
  %755 = vdwg.mxu0
  %v756 = vadd.f32 %v83, %v502
  %v757 = vadd.f32 %v84, %v505
  %v758 = vadd.f32 %v85, %v510
  %v759 = vadd.f32 %v86, %v513
  %v760 = vadd.f32 %v87, %v518
  %v761 = vadd.f32 %v88, %v521
  %v762 = vadd.f32 %v89, %v526
  %v763 = vadd.f32 %v90, %v529
  %v764 = vadd.f32 %v91, %v534
  %v765 = vadd.f32 %v92, %v537
  %v766 = vadd.f32 %v93, %v542
  %v767 = vadd.f32 %v94, %v545
  %v768 = vadd.f32 %v95, %v550
  %v769 = vadd.f32 %v96, %v553
  %v770 = vadd.f32 %v97, %v558
  %v771 = vadd.f32 %v98, %v561
  %v772 = vadd.f32 %v99, %v566
  %v773 = vadd.f32 %v100, %v569
  %v774 = vadd.f32 %v101, %v574
  %v775 = vadd.f32 %v102, %v577
  %v776 = vadd.f32 %v103, %v582
  %v777 = vadd.f32 %v104, %v585
  %v778 = vadd.f32 %v105, %v590
  %v779 = vadd.f32 %v106, %v593
  %v780 = vadd.f32 %v107, %v598
  %v781 = vadd.f32 %v108, %v601
  %v782 = vadd.f32 %v109, %v606
  %v783 = vadd.f32 %v110, %v609
  %v784 = vadd.f32 %v111, %v614
  %v785 = vadd.f32 %v112, %v617
  %v786 = vadd.f32 %v113, %v622
  %v787 = vadd.f32 %v114, %v625
  %v788 = vadd.f32 %v115, %v630
  %v789 = vadd.f32 %v116, %v633
  %v790 = vadd.f32 %v117, %v638
  %v791 = vadd.f32 %v118, %v641
  %v792 = vadd.f32 %v119, %v646
  %v793 = vadd.f32 %v120, %v649
  %v794 = vadd.f32 %v121, %v654
  %v795 = vadd.f32 %v122, %v657
  %v796 = vadd.f32 %v123, %v662
  %v797 = vadd.f32 %v124, %v665
  %v798 = vadd.f32 %v125, %v670
  %v799 = vadd.f32 %v126, %v673
  %v800 = vadd.f32 %v127, %v678
  %v801 = vadd.f32 %v128, %v681
  %v802 = vadd.f32 %v129, %v686
  %v803 = vadd.f32 %v130, %v689
  %v804 = vadd.f32 %v131, %v694
  %v805 = vadd.f32 %v132, %v697
  %v806 = vadd.f32 %v133, %v702
  %v807 = vadd.f32 %v134, %v705
  %v808 = vadd.f32 %v135, %v710
  %v809 = vadd.f32 %v136, %v713
  %v810 = vadd.f32 %v137, %v718
  %v811 = vadd.f32 %v138, %v721
  %v812 = vadd.f32 %v139, %v726
  %v813 = vadd.f32 %v140, %v729
  %v814 = vadd.f32 %v141, %v734
  %v815 = vadd.f32 %v142, %v737
  %v816 = vadd.f32 %v143, %v742
  %v817 = vadd.f32 %v144, %v745
  %v818 = vadd.f32 %v145, %v750
  %v819 = vadd.f32 %v146, %v753
  %820 = vst [vmem:[#allocation2] sm:$0xff] %v756
  %821 = vst [vmem:[#allocation2 + $0x8] sm:$0xff] %v757
  %822 = vst [vmem:[#allocation2 + $0x10] sm:$0xff] %v758
  %823 = vst [vmem:[#allocation2 + $0x18] sm:$0xff] %v759
  %824 = vst [vmem:[#allocation2 + $0x20] sm:$0xff] %v760
  %825 = vst [vmem:[#allocation2 + $0x28] sm:$0xff] %v761
  %826 = vst [vmem:[#allocation2 + $0x30] sm:$0xff] %v762
  %827 = vst [vmem:[#allocation2 + $0x38] sm:$0xff] %v763
  %828 = vst [vmem:[#allocation2 + $0x40] sm:$0xff] %v764
  %829 = vst [vmem:[#allocation2 + $0x48] sm:$0xff] %v765
  %830 = vst [vmem:[#allocation2 + $0x50] sm:$0xff] %v766
  %831 = vst [vmem:[#allocation2 + $0x58] sm:$0xff] %v767
  %832 = vst [vmem:[#allocation2 + $0x60] sm:$0xff] %v768
  %833 = vst [vmem:[#allocation2 + $0x68] sm:$0xff] %v769
  %834 = vst [vmem:[#allocation2 + $0x70] sm:$0xff] %v770
  %835 = vst [vmem:[#allocation2 + $0x78] sm:$0xff] %v771
  %836 = vst [vmem:[#allocation2 + $0x80] sm:$0xff] %v772
  %837 = vst [vmem:[#allocation2 + $0x88] sm:$0xff] %v773
  %838 = vst [vmem:[#allocation2 + $0x90] sm:$0xff] %v774
  %839 = vst [vmem:[#allocation2 + $0x98] sm:$0xff] %v775
  %840 = vst [vmem:[#allocation2 + $0xa0] sm:$0xff] %v776
  %841 = vst [vmem:[#allocation2 + $0xa8] sm:$0xff] %v777
  %842 = vst [vmem:[#allocation2 + $0xb0] sm:$0xff] %v778
  %843 = vst [vmem:[#allocation2 + $0xb8] sm:$0xff] %v779
  %844 = vst [vmem:[#allocation2 + $0xc0] sm:$0xff] %v780
  %845 = vst [vmem:[#allocation2 + $0xc8] sm:$0xff] %v781
  %846 = vst [vmem:[#allocation2 + $0xd0] sm:$0xff] %v782
  %847 = vst [vmem:[#allocation2 + $0xd8] sm:$0xff] %v783
  %848 = vst [vmem:[#allocation2 + $0xe0] sm:$0xff] %v784
  %849 = vst [vmem:[#allocation2 + $0xe8] sm:$0xff] %v785
  %850 = vst [vmem:[#allocation2 + $0xf0] sm:$0xff] %v786
  %851 = vst [vmem:[#allocation2 + $0xf8] sm:$0xff] %v787
  %852 = vst [vmem:[#allocation2 + $0x100] sm:$0xff] %v788
  %853 = vst [vmem:[#allocation2 + $0x108] sm:$0xff] %v789
  %854 = vst [vmem:[#allocation2 + $0x110] sm:$0xff] %v790
  %855 = vst [vmem:[#allocation2 + $0x118] sm:$0xff] %v791
  %856 = vst [vmem:[#allocation2 + $0x120] sm:$0xff] %v792
  %857 = vst [vmem:[#allocation2 + $0x128] sm:$0xff] %v793
  %858 = vst [vmem:[#allocation2 + $0x130] sm:$0xff] %v794
  %859 = vst [vmem:[#allocation2 + $0x138] sm:$0xff] %v795
  %860 = vst [vmem:[#allocation2 + $0x140] sm:$0xff] %v796
  %861 = vst [vmem:[#allocation2 + $0x148] sm:$0xff] %v797
  %862 = vst [vmem:[#allocation2 + $0x150] sm:$0xff] %v798
  %863 = vst [vmem:[#allocation2 + $0x158] sm:$0xff] %v799
  %864 = vst [vmem:[#allocation2 + $0x160] sm:$0xff] %v800
  %865 = vst [vmem:[#allocation2 + $0x168] sm:$0xff] %v801
  %866 = vst [vmem:[#allocation2 + $0x170] sm:$0xff] %v802
  %867 = vst [vmem:[#allocation2 + $0x178] sm:$0xff] %v803
  %868 = vst [vmem:[#allocation2 + $0x180] sm:$0xff] %v804
  %869 = vst [vmem:[#allocation2 + $0x188] sm:$0xff] %v805
  %870 = vst [vmem:[#allocation2 + $0x190] sm:$0xff] %v806
  %871 = vst [vmem:[#allocation2 + $0x198] sm:$0xff] %v807
  %872 = vst [vmem:[#allocation2 + $0x1a0] sm:$0xff] %v808
  %873 = vst [vmem:[#allocation2 + $0x1a8] sm:$0xff] %v809
  %874 = vst [vmem:[#allocation2 + $0x1b0] sm:$0xff] %v810
  %875 = vst [vmem:[#allocation2 + $0x1b8] sm:$0xff] %v811
  %876 = vst [vmem:[#allocation2 + $0x1c0] sm:$0xff] %v812
  %877 = vst [vmem:[#allocation2 + $0x1c8] sm:$0xff] %v813
  %878 = vst [vmem:[#allocation2 + $0x1d0] sm:$0xff] %v814
  %879 = vst [vmem:[#allocation2 + $0x1d8] sm:$0xff] %v815
  %880 = vst [vmem:[#allocation2 + $0x1e0] sm:$0xff] %v816
  %881 = vst [vmem:[#allocation2 + $0x1e8] sm:$0xff] %v817
  %882 = vst [vmem:[#allocation2 + $0x1f0] sm:$0xff] %v818
  %883 = vst [vmem:[#allocation2 + $0x1f8] sm:$0xff] %v819
  // Predicated region
  $region18: #{basic_block_forward.13} parent=0 // pred_check
    %p884 = pneg %p15
  $region19: #{basic_block_forward.13} parent=0 // pred_check_branch
    %886 = sbr.rel (%p884) target = $region21
  $region20: #{basic_block_forward.13} parent=0 // pred_region
    %v887 = vld [vmem:[#allocation2] sm:$0xff]
    %v888 = vld [vmem:[#allocation2 + $0x8] sm:$0xff]
    %v889 = vld [vmem:[#allocation2 + $0x10] sm:$0xff]
    %v890 = vld [vmem:[#allocation2 + $0x18] sm:$0xff]
    %v891 = vld [vmem:[#allocation2 + $0x20] sm:$0xff]
    %v892 = vld [vmem:[#allocation2 + $0x28] sm:$0xff]
    %v893 = vld [vmem:[#allocation2 + $0x30] sm:$0xff]
    %v894 = vld [vmem:[#allocation2 + $0x38] sm:$0xff]
    %v895 = vld [vmem:[#allocation2 + $0x40] sm:$0xff]
    %v896 = vld [vmem:[#allocation2 + $0x48] sm:$0xff]
    %v897 = vld [vmem:[#allocation2 + $0x50] sm:$0xff]
    %v898 = vld [vmem:[#allocation2 + $0x58] sm:$0xff]
    %v899 = vld [vmem:[#allocation2 + $0x60] sm:$0xff]
    %v900 = vld [vmem:[#allocation2 + $0x68] sm:$0xff]
    %v901 = vld [vmem:[#allocation2 + $0x70] sm:$0xff]
    %v902 = vld [vmem:[#allocation2 + $0x78] sm:$0xff]
    %v903 = vld [vmem:[#allocation2 + $0x80] sm:$0xff]
    %v904 = vld [vmem:[#allocation2 + $0x88] sm:$0xff]
    %v905 = vld [vmem:[#allocation2 + $0x90] sm:$0xff]
    %v906 = vld [vmem:[#allocation2 + $0x98] sm:$0xff]
    %v907 = vld [vmem:[#allocation2 + $0xa0] sm:$0xff]
    %v908 = vld [vmem:[#allocation2 + $0xa8] sm:$0xff]
    %v909 = vld [vmem:[#allocation2 + $0xb0] sm:$0xff]
    %v910 = vld [vmem:[#allocation2 + $0xb8] sm:$0xff]
    %v911 = vld [vmem:[#allocation2 + $0xc0] sm:$0xff]
    %v912 = vld [vmem:[#allocation2 + $0xc8] sm:$0xff]
    %v913 = vld [vmem:[#allocation2 + $0xd0] sm:$0xff]
    %v914 = vld [vmem:[#allocation2 + $0xd8] sm:$0xff]
    %v915 = vld [vmem:[#allocation2 + $0xe0] sm:$0xff]
    %v916 = vld [vmem:[#allocation2 + $0xe8] sm:$0xff]
    %v917 = vld [vmem:[#allocation2 + $0xf0] sm:$0xff]
    %v918 = vld [vmem:[#allocation2 + $0xf8] sm:$0xff]
    %v919 = vld [vmem:[#allocation2 + $0x100] sm:$0xff]
    %v920 = vld [vmem:[#allocation2 + $0x108] sm:$0xff]
    %v921 = vld [vmem:[#allocation2 + $0x110] sm:$0xff]
    %v922 = vld [vmem:[#allocation2 + $0x118] sm:$0xff]
    %v923 = vld [vmem:[#allocation2 + $0x120] sm:$0xff]
    %v924 = vld [vmem:[#allocation2 + $0x128] sm:$0xff]
    %v925 = vld [vmem:[#allocation2 + $0x130] sm:$0xff]
    %v926 = vld [vmem:[#allocation2 + $0x138] sm:$0xff]
    %v927 = vld [vmem:[#allocation2 + $0x140] sm:$0xff]
    %v928 = vld [vmem:[#allocation2 + $0x148] sm:$0xff]
    %v929 = vld [vmem:[#allocation2 + $0x150] sm:$0xff]
    %v930 = vld [vmem:[#allocation2 + $0x158] sm:$0xff]
    %v931 = vld [vmem:[#allocation2 + $0x160] sm:$0xff]
    %v932 = vld [vmem:[#allocation2 + $0x168] sm:$0xff]
    %v933 = vld [vmem:[#allocation2 + $0x170] sm:$0xff]
    %v934 = vld [vmem:[#allocation2 + $0x178] sm:$0xff]
    %v935 = vld [vmem:[#allocation2 + $0x180] sm:$0xff]
    %v936 = vld [vmem:[#allocation2 + $0x188] sm:$0xff]
    %v937 = vld [vmem:[#allocation2 + $0x190] sm:$0xff]
    %v938 = vld [vmem:[#allocation2 + $0x198] sm:$0xff]
    %v939 = vld [vmem:[#allocation2 + $0x1a0] sm:$0xff]
    %v940 = vld [vmem:[#allocation2 + $0x1a8] sm:$0xff]
    %v941 = vld [vmem:[#allocation2 + $0x1b0] sm:$0xff]
    %v942 = vld [vmem:[#allocation2 + $0x1b8] sm:$0xff]
    %v943 = vld [vmem:[#allocation2 + $0x1c0] sm:$0xff]
    %v944 = vld [vmem:[#allocation2 + $0x1c8] sm:$0xff]
    %v945 = vld [vmem:[#allocation2 + $0x1d0] sm:$0xff]
    %v946 = vld [vmem:[#allocation2 + $0x1d8] sm:$0xff]
    %v947 = vld [vmem:[#allocation2 + $0x1e0] sm:$0xff]
    %v948 = vld [vmem:[#allocation2 + $0x1e8] sm:$0xff]
    %v949 = vld [vmem:[#allocation2 + $0x1f0] sm:$0xff]
    %v950 = vld [vmem:[#allocation2 + $0x1f8] sm:$0xff]
    %v951 = vld [vmem:[%s2] sm:$0xff]
    %v952 = vld [vmem:[%s2 + $0x8] sm:$0xff]
    %v953 = vld [vmem:[%s2 + $0x10] sm:$0xff]
    %v954 = vld [vmem:[%s2 + $0x18] sm:$0xff]
    %v955 = vld [vmem:[%s2 + $0x20] sm:$0xff]
    %v956 = vld [vmem:[%s2 + $0x28] sm:$0xff]
    %v957 = vld [vmem:[%s2 + $0x30] sm:$0xff]
    %v958 = vld [vmem:[%s2 + $0x38] sm:$0xff]
    %v959 = vld [vmem:[%s2 + $0x40] sm:$0xff]
    %v960 = vld [vmem:[%s2 + $0x48] sm:$0xff]
    %v961 = vld [vmem:[%s2 + $0x50] sm:$0xff]
    %v962 = vld [vmem:[%s2 + $0x58] sm:$0xff]
    %v963 = vld [vmem:[%s2 + $0x60] sm:$0xff]
    %v964 = vld [vmem:[%s2 + $0x68] sm:$0xff]
    %v965 = vld [vmem:[%s2 + $0x70] sm:$0xff]
    %v966 = vld [vmem:[%s2 + $0x78] sm:$0xff]
    %v967 = vld [vmem:[%s2 + $0x80] sm:$0xff]
    %v968 = vld [vmem:[%s2 + $0x88] sm:$0xff]
    %v969 = vld [vmem:[%s2 + $0x90] sm:$0xff]
    %v970 = vld [vmem:[%s2 + $0x98] sm:$0xff]
    %v971 = vld [vmem:[%s2 + $0xa0] sm:$0xff]
    %v972 = vld [vmem:[%s2 + $0xa8] sm:$0xff]
    %v973 = vld [vmem:[%s2 + $0xb0] sm:$0xff]
    %v974 = vld [vmem:[%s2 + $0xb8] sm:$0xff]
    %v975 = vld [vmem:[%s2 + $0xc0] sm:$0xff]
    %v976 = vld [vmem:[%s2 + $0xc8] sm:$0xff]
    %v977 = vld [vmem:[%s2 + $0xd0] sm:$0xff]
    %v978 = vld [vmem:[%s2 + $0xd8] sm:$0xff]
    %v979 = vld [vmem:[%s2 + $0xe0] sm:$0xff]
    %v980 = vld [vmem:[%s2 + $0xe8] sm:$0xff]
    %v981 = vld [vmem:[%s2 + $0xf0] sm:$0xff]
    %v982 = vld [vmem:[%s2 + $0xf8] sm:$0xff]
    %v983 = vld [vmem:[%s2 + $0x100] sm:$0xff]
    %v984 = vld [vmem:[%s2 + $0x108] sm:$0xff]
    %v985 = vld [vmem:[%s2 + $0x110] sm:$0xff]
    %v986 = vld [vmem:[%s2 + $0x118] sm:$0xff]
    %v987 = vld [vmem:[%s2 + $0x120] sm:$0xff]
    %v988 = vld [vmem:[%s2 + $0x128] sm:$0xff]
    %v989 = vld [vmem:[%s2 + $0x130] sm:$0xff]
    %v990 = vld [vmem:[%s2 + $0x138] sm:$0xff]
    %v991 = vld [vmem:[%s2 + $0x140] sm:$0xff]
    %v992 = vld [vmem:[%s2 + $0x148] sm:$0xff]
    %v993 = vld [vmem:[%s2 + $0x150] sm:$0xff]
    %v994 = vld [vmem:[%s2 + $0x158] sm:$0xff]
    %v995 = vld [vmem:[%s2 + $0x160] sm:$0xff]
    %v996 = vld [vmem:[%s2 + $0x168] sm:$0xff]
    %v997 = vld [vmem:[%s2 + $0x170] sm:$0xff]
    %v998 = vld [vmem:[%s2 + $0x178] sm:$0xff]
    %v999 = vld [vmem:[%s2 + $0x180] sm:$0xff]
    %v1000 = vld [vmem:[%s2 + $0x188] sm:$0xff]
    %v1001 = vld [vmem:[%s2 + $0x190] sm:$0xff]
    %v1002 = vld [vmem:[%s2 + $0x198] sm:$0xff]
    %v1003 = vld [vmem:[%s2 + $0x1a0] sm:$0xff]
    %v1004 = vld [vmem:[%s2 + $0x1a8] sm:$0xff]
    %v1005 = vld [vmem:[%s2 + $0x1b0] sm:$0xff]
    %v1006 = vld [vmem:[%s2 + $0x1b8] sm:$0xff]
    %v1007 = vld [vmem:[%s2 + $0x1c0] sm:$0xff]
    %v1008 = vld [vmem:[%s2 + $0x1c8] sm:$0xff]
    %v1009 = vld [vmem:[%s2 + $0x1d0] sm:$0xff]
    %v1010 = vld [vmem:[%s2 + $0x1d8] sm:$0xff]
    %v1011 = vld [vmem:[%s2 + $0x1e0] sm:$0xff]
    %v1012 = vld [vmem:[%s2 + $0x1e8] sm:$0xff]
    %v1013 = vld [vmem:[%s2 + $0x1f0] sm:$0xff]
    %v1014 = vld [vmem:[%s2 + $0x1f8] sm:$0xff]
    %v1015 = vadd.f32 %v887, %v951
    %v1016 = vadd.f32 %v888, %v952
    %v1017 = vadd.f32 %v889, %v953
    %v1018 = vadd.f32 %v890, %v954
    %v1019 = vadd.f32 %v891, %v955
    %v1020 = vadd.f32 %v892, %v956
    %v1021 = vadd.f32 %v893, %v957
    %v1022 = vadd.f32 %v894, %v958
    %v1023 = vadd.f32 %v895, %v959
    %v1024 = vadd.f32 %v896, %v960
    %v1025 = vadd.f32 %v897, %v961
    %v1026 = vadd.f32 %v898, %v962
    %v1027 = vadd.f32 %v899, %v963
    %v1028 = vadd.f32 %v900, %v964
    %v1029 = vadd.f32 %v901, %v965
    %v1030 = vadd.f32 %v902, %v966
    %v1031 = vadd.f32 %v903, %v967
    %v1032 = vadd.f32 %v904, %v968
    %v1033 = vadd.f32 %v905, %v969
    %v1034 = vadd.f32 %v906, %v970
    %v1035 = vadd.f32 %v907, %v971
    %v1036 = vadd.f32 %v908, %v972
    %v1037 = vadd.f32 %v909, %v973
    %v1038 = vadd.f32 %v910, %v974
    %v1039 = vadd.f32 %v911, %v975
    %v1040 = vadd.f32 %v912, %v976
    %v1041 = vadd.f32 %v913, %v977
    %v1042 = vadd.f32 %v914, %v978
    %v1043 = vadd.f32 %v915, %v979
    %v1044 = vadd.f32 %v916, %v980
    %v1045 = vadd.f32 %v917, %v981
    %v1046 = vadd.f32 %v918, %v982
    %v1047 = vadd.f32 %v919, %v983
    %v1048 = vadd.f32 %v920, %v984
    %v1049 = vadd.f32 %v921, %v985
    %v1050 = vadd.f32 %v922, %v986
    %v1051 = vadd.f32 %v923, %v987
    %v1052 = vadd.f32 %v924, %v988
    %v1053 = vadd.f32 %v925, %v989
    %v1054 = vadd.f32 %v926, %v990
    %v1055 = vadd.f32 %v927, %v991
    %v1056 = vadd.f32 %v928, %v992
    %v1057 = vadd.f32 %v929, %v993
    %v1058 = vadd.f32 %v930, %v994
    %v1059 = vadd.f32 %v931, %v995
    %v1060 = vadd.f32 %v932, %v996
    %v1061 = vadd.f32 %v933, %v997
    %v1062 = vadd.f32 %v934, %v998
    %v1063 = vadd.f32 %v935, %v999
    %v1064 = vadd.f32 %v936, %v1000
    %v1065 = vadd.f32 %v937, %v1001
    %v1066 = vadd.f32 %v938, %v1002
    %v1067 = vadd.f32 %v939, %v1003
    %v1068 = vadd.f32 %v940, %v1004
    %v1069 = vadd.f32 %v941, %v1005
    %v1070 = vadd.f32 %v942, %v1006
    %v1071 = vadd.f32 %v943, %v1007
    %v1072 = vadd.f32 %v944, %v1008
    %v1073 = vadd.f32 %v945, %v1009
    %v1074 = vadd.f32 %v946, %v1010
    %v1075 = vadd.f32 %v947, %v1011
    %v1076 = vadd.f32 %v948, %v1012
    %v1077 = vadd.f32 %v949, %v1013
    %v1078 = vadd.f32 %v950, %v1014
    %1079 = vst [vmem:[%s3] sm:$0xff] %v1015
    %1080 = vst [vmem:[%s3 + $0x8] sm:$0xff] %v1016
    %1081 = vst [vmem:[%s3 + $0x10] sm:$0xff] %v1017
    %1082 = vst [vmem:[%s3 + $0x18] sm:$0xff] %v1018
    %1083 = vst [vmem:[%s3 + $0x20] sm:$0xff] %v1019
    %1084 = vst [vmem:[%s3 + $0x28] sm:$0xff] %v1020
    %1085 = vst [vmem:[%s3 + $0x30] sm:$0xff] %v1021
    %1086 = vst [vmem:[%s3 + $0x38] sm:$0xff] %v1022
    %1087 = vst [vmem:[%s3 + $0x40] sm:$0xff] %v1023
    %1088 = vst [vmem:[%s3 + $0x48] sm:$0xff] %v1024
    %1089 = vst [vmem:[%s3 + $0x50] sm:$0xff] %v1025
    %1090 = vst [vmem:[%s3 + $0x58] sm:$0xff] %v1026
    %1091 = vst [vmem:[%s3 + $0x60] sm:$0xff] %v1027
    %1092 = vst [vmem:[%s3 + $0x68] sm:$0xff] %v1028
    %1093 = vst [vmem:[%s3 + $0x70] sm:$0xff] %v1029
    %1094 = vst [vmem:[%s3 + $0x78] sm:$0xff] %v1030
    %1095 = vst [vmem:[%s3 + $0x80] sm:$0xff] %v1031
    %1096 = vst [vmem:[%s3 + $0x88] sm:$0xff] %v1032
    %1097 = vst [vmem:[%s3 + $0x90] sm:$0xff] %v1033
    %1098 = vst [vmem:[%s3 + $0x98] sm:$0xff] %v1034
    %1099 = vst [vmem:[%s3 + $0xa0] sm:$0xff] %v1035
    %1100 = vst [vmem:[%s3 + $0xa8] sm:$0xff] %v1036
    %1101 = vst [vmem:[%s3 + $0xb0] sm:$0xff] %v1037
    %1102 = vst [vmem:[%s3 + $0xb8] sm:$0xff] %v1038
    %1103 = vst [vmem:[%s3 + $0xc0] sm:$0xff] %v1039
    %1104 = vst [vmem:[%s3 + $0xc8] sm:$0xff] %v1040
    %1105 = vst [vmem:[%s3 + $0xd0] sm:$0xff] %v1041
    %1106 = vst [vmem:[%s3 + $0xd8] sm:$0xff] %v1042
    %1107 = vst [vmem:[%s3 + $0xe0] sm:$0xff] %v1043
    %1108 = vst [vmem:[%s3 + $0xe8] sm:$0xff] %v1044
    %1109 = vst [vmem:[%s3 + $0xf0] sm:$0xff] %v1045
    %1110 = vst [vmem:[%s3 + $0xf8] sm:$0xff] %v1046
    %1111 = vst [vmem:[%s3 + $0x100] sm:$0xff] %v1047
    %1112 = vst [vmem:[%s3 + $0x108] sm:$0xff] %v1048
    %1113 = vst [vmem:[%s3 + $0x110] sm:$0xff] %v1049
    %1114 = vst [vmem:[%s3 + $0x118] sm:$0xff] %v1050
    %1115 = vst [vmem:[%s3 + $0x120] sm:$0xff] %v1051
    %1116 = vst [vmem:[%s3 + $0x128] sm:$0xff] %v1052
    %1117 = vst [vmem:[%s3 + $0x130] sm:$0xff] %v1053
    %1118 = vst [vmem:[%s3 + $0x138] sm:$0xff] %v1054
    %1119 = vst [vmem:[%s3 + $0x140] sm:$0xff] %v1055
    %1120 = vst [vmem:[%s3 + $0x148] sm:$0xff] %v1056
    %1121 = vst [vmem:[%s3 + $0x150] sm:$0xff] %v1057
    %1122 = vst [vmem:[%s3 + $0x158] sm:$0xff] %v1058
    %1123 = vst [vmem:[%s3 + $0x160] sm:$0xff] %v1059
    %1124 = vst [vmem:[%s3 + $0x168] sm:$0xff] %v1060
    %1125 = vst [vmem:[%s3 + $0x170] sm:$0xff] %v1061
    %1126 = vst [vmem:[%s3 + $0x178] sm:$0xff] %v1062
    %1127 = vst [vmem:[%s3 + $0x180] sm:$0xff] %v1063
    %1128 = vst [vmem:[%s3 + $0x188] sm:$0xff] %v1064
    %1129 = vst [vmem:[%s3 + $0x190] sm:$0xff] %v1065
    %1130 = vst [vmem:[%s3 + $0x198] sm:$0xff] %v1066
    %1131 = vst [vmem:[%s3 + $0x1a0] sm:$0xff] %v1067
    %1132 = vst [vmem:[%s3 + $0x1a8] sm:$0xff] %v1068
    %1133 = vst [vmem:[%s3 + $0x1b0] sm:$0xff] %v1069
    %1134 = vst [vmem:[%s3 + $0x1b8] sm:$0xff] %v1070
    %1135 = vst [vmem:[%s3 + $0x1c0] sm:$0xff] %v1071
    %1136 = vst [vmem:[%s3 + $0x1c8] sm:$0xff] %v1072
    %1137 = vst [vmem:[%s3 + $0x1d0] sm:$0xff] %v1073
    %1138 = vst [vmem:[%s3 + $0x1d8] sm:$0xff] %v1074
    %1139 = vst [vmem:[%s3 + $0x1e0] sm:$0xff] %v1075
    %1140 = vst [vmem:[%s3 + $0x1e8] sm:$0xff] %v1076
    %1141 = vst [vmem:[%s3 + $0x1f0] sm:$0xff] %v1077
    %1142 = vst [vmem:[%s3 + $0x1f8] sm:$0xff] %v1078
  $region21: #{basic_block_forward.13} parent=0 // pred_fallthru
    _
  // Predicated region
  $region22: #{basic_block_forward.13} parent=0 // pred_check
    _
  $region23: #{basic_block_forward.13} parent=0 // pred_check_branch
    %1144 = sbr.rel (0) target = $region25
  $region24: #{basic_block_forward.13} parent=0 // pred_region
    _
  $region25: #{basic_block_forward.13} parent=0 // pred_fallthru
    _
  // Predicated region
  $region26: #{basic_block_forward.13} parent=0 // pred_check
    _
  $region27: #{basic_block_forward.13} parent=0 // pred_check_branch
    %1146 = sbr.rel (0) target = $region29
  $region28: #{basic_block_forward.13} parent=0 // pred_region
    _
  $region29: #{basic_block_forward.13} parent=0 // pred_fallthru
    _

</llo_original>
